<compile_context>
chip_gen: v5e
topology: v5e:2x2
jax: 0.10.0
libtpu: 0.0.40
codegen_flags: <defaults>
</compile_context>

<pallas_src>
from functools import partial

import jax
import jax.numpy as jnp
from jax.experimental import pallas as pl
from jax.experimental.pallas import tpu as pltpu

BN_EPS = 0.01


# ----------------------------- kernels -------------------------------------

def _branch_kernel(x_ref, w_open_ref, w_hk_ref, w_wk_ref,
                   b2c_ref, s1_ref, q1_ref, s2_ref, q2_ref,
                   padh_ref, padw_ref):
    """Fused per-image branch computation.

    x_ref      : (1, H, W, Cin)
    w_open_ref : (Cin, 6b + 4b)     -- [w_b1 | w_b2a] concatenated on lanes
    w_hk_ref   : (7*4b, 5b)         -- (7,1) conv weights, im2col layout
    w_wk_ref   : (7*5b, 6b)         -- (1,7) conv weights, im2col layout
    b2c_ref    : (1, H, W, 6b)      -- branch-2 output (pre-BN)
    s*/q*_ref  : (1, 1, C)          -- per-image sum / sum-of-squares for BN
    padh_ref   : VMEM (H+6, W, 4b)  -- H-major scratch for the (7,1) conv
    padw_ref   : VMEM (W+6, H, 5b)  -- W-major scratch for the (1,7) conv
    """
    _, H, W, Cin = x_ref.shape
    C1 = s1_ref.shape[-1]
    C2a = padh_ref.shape[-1]
    C2b = padw_ref.shape[-1]
    C2c = b2c_ref.shape[-1]

    # --- fused opening 1x1 convs: one MXU matmul, split on the lane axis ----
    x2d = x_ref[0].reshape(H * W, Cin)
    h = jnp.maximum(
        jnp.dot(x2d, w_open_ref[...], preferred_element_type=jnp.float32), 0.0)
    b1 = h[:, :C1]          # only needed here for BN1 statistics
    b2a = h[:, C1:]

    s1_ref[0] = jnp.sum(b1, axis=0, keepdims=True)
    q1_ref[0] = jnp.sum(b1 * b1, axis=0, keepdims=True)

    # --- (7,1) conv along H: H-major scratch, free leading-axis tap slices ---
    # Only the 6 halo rows need zeroing; the interior is fully overwritten.
    zh = jnp.zeros((3, W, C2a), jnp.float32)
    padh_ref[0:3, :, :] = zh
    padh_ref[H + 3:H + 6, :, :] = zh
    padh_ref[3:3 + H, :, :] = b2a.reshape(H, W, C2a)
    cols_h = jnp.concatenate(
        [padh_ref[kh:kh + H, :, :].reshape(H * W, C2a) for kh in range(7)],
        axis=1)                                              # (H*W, 7*4b)
    b2b = jnp.maximum(
        jnp.dot(cols_h, w_hk_ref[...], preferred_element_type=jnp.float32), 0.0)

    # --- (1,7) conv along W: W-major scratch (one einshape transpose in, one
    # back-transpose of the result) so tap reads are free leading-axis slices.
    zw = jnp.zeros((3, H, C2b), jnp.float32)
    padw_ref[0:3, :, :] = zw
    padw_ref[W + 3:W + 6, :, :] = zw
    padw_ref[3:3 + W, :, :] = pltpu.einshape("hwc->whc", b2b.reshape(H, W, C2b))
    cols_w = jnp.concatenate(
        [padw_ref[kw:kw + W, :, :].reshape(W * H, C2b) for kw in range(7)],
        axis=1)                                              # (W*H, 7*5b)
    b2c_t = jnp.maximum(
        jnp.dot(cols_w, w_wk_ref[...], preferred_element_type=jnp.float32), 0.0)

    # BN statistics are order-independent -> take them in (w, h) row order.
    s2_ref[0] = jnp.sum(b2c_t, axis=0, keepdims=True)
    q2_ref[0] = jnp.sum(b2c_t * b2c_t, axis=0, keepdims=True)
    b2c_ref[0] = pltpu.einshape("whc->hwc", b2c_t.reshape(W, H, C2c))


def _final_kernel(lin_act, x_ref, b2_ref, w_b1_ref, wc1_ref, wc2_ref,
                  bn_ref, o_ref):
    """Recompute b1, apply folded BNs, two comb matmuls (no lane concat),
    lin_act scale + residual + final ReLU.  bn_ref rows:
    [scale1, shift1, scale2, shift2]."""
    _, th, W, C = x_ref.shape
    C2 = b2_ref.shape[-1]
    rows = th * W

    x2 = x_ref[0].reshape(rows, C)
    b1 = jnp.maximum(
        jnp.dot(x2, w_b1_ref[...], preferred_element_type=jnp.float32), 0.0)
    b1n = b1 * bn_ref[0:1, :] + bn_ref[1:2, :]
    b2n = b2_ref[0].reshape(rows, C2) * bn_ref[2:3, :] + bn_ref[3:4, :]

    # Two dots: with 6*base < 128 the K dim pads to one MXU pass anyway, so the
    # cross-lane concatenate would only add XLU/vreg pressure.
    y = (jnp.dot(b1n, wc1_ref[...], preferred_element_type=jnp.float32)
         + jnp.dot(b2n, wc2_ref[...], preferred_element_type=jnp.float32))
    o_ref[0] = jnp.maximum(x2 + lin_act * y, 0.0).reshape(th, W, C)


# ----------------------------- wrapper --------------------------------------

def _round_up_lanes(c):
    return -(-c // 128) * 128


def _vmem_limit(nbytes):
    # Explicit scoped-VMEM budget (review): 2x head-room over the estimated live
    # set, floor 32 MiB, capped at 56 MiB so it also fits v7x's 64 MiB/TC.
    # TODO(synk): raise toward ~100 MiB on v5e/v6e for very large H, W.
    return int(min(max(2 * nbytes, 32 << 20), 56 << 20))


def _pick_h_tile(H, W, c_x, c_b2, budget=4 << 20):
    """Largest H-tile (divisor of H, multiple of 8 or H itself) whose x / b2 /
    out blocks stay under `budget` bytes with double-buffering."""
    per_row = 2 * W * (2 * c_x + c_b2) * 4
    valid = [t for t in range(H, 0, -1) if H % t == 0 and (t % 8 == 0 or t == H)]
    for t in valid:
        if t * per_row <= budget:
            return t
    return valid[-1]


def incept_b_forward(x_nchw, params, lin_act=0.1):
    """Forward pass of module B. Input/output are NCHW like PyTorch."""
    N, C, H, W = x_nchw.shape
    assert H % 8 == 0 and W % 8 == 0, "H and W must be multiples of 8"
    x = jnp.transpose(x_nchw, (0, 2, 3, 1))                  # NCHW -> NHWC
    f32 = jnp.float32

    w_b1 = params["w_b1"]
    C1 = w_b1.shape[1]
    C2a = params["w_b2a"].shape[1]
    C2b = params["w_b2b"].shape[2]
    C2c = params["w_b2c"].shape[2]

    # Stage-1 weights: fused opening 1x1 + im2col-reshaped spatial convs.
    w_open = jnp.concatenate([w_b1, params["w_b2a"]], axis=1)    # (Cin, 10b)
    w_hk = params["w_b2b"].reshape(7 * C2a, C2b)                 # (7*4b, 5b)
    w_wk = params["w_b2c"].reshape(7 * C2b, C2c)                 # (7*5b, 6b)

    lp = _round_up_lanes
    est_branch = (4 * H * W * (2 * lp(C) + 2 * lp(C2c) + lp(C1 + C2a)
                               + 7 * C2a + 7 * C2b + lp(C2b) + lp(C2c))
                  + 4 * ((H + 6) * W * lp(C2a) + (W + 6) * H * lp(C2b)))

    b2c, s1, q1, s2, q2 = pl.pallas_call(
        _branch_kernel,
        out_shape=(
            jax.ShapeDtypeStruct((N, H, W, C2c), f32),
            jax.ShapeDtypeStruct((N, 1, C1), f32),
            jax.ShapeDtypeStruct((N, 1, C1), f32),
            jax.ShapeDtypeStruct((N, 1, C2c), f32),
            jax.ShapeDtypeStruct((N, 1, C2c), f32),
        ),
        grid=(N,),
        in_specs=[
            pl.BlockSpec((1, H, W, C), lambda n: (n, 0, 0, 0)),
            pl.BlockSpec(w_open.shape, lambda n: (0, 0)),
            pl.BlockSpec(w_hk.shape, lambda n: (0, 0)),
            pl.BlockSpec(w_wk.shape, lambda n: (0, 0)),
        ],
        out_specs=[
            pl.BlockSpec((1, H, W, C2c), lambda n: (n, 0, 0, 0)),
            pl.BlockSpec((1, 1, C1), lambda n: (n, 0, 0)),
            pl.BlockSpec((1, 1, C1), lambda n: (n, 0, 0)),
            pl.BlockSpec((1, 1, C2c), lambda n: (n, 0, 0)),
            pl.BlockSpec((1, 1, C2c), lambda n: (n, 0, 0)),
        ],
        scratch_shapes=[
            pltpu.VMEM((H + 6, W, C2a), f32),   # H-major (7,1)-conv scratch
            pltpu.VMEM((W + 6, H, C2b), f32),   # W-major (1,7)-conv scratch
        ],
        compiler_params=pltpu.CompilerParams(
            dimension_semantics=("parallel",),
            vmem_limit_bytes=_vmem_limit(est_branch)),
    )(x, w_open, w_hk, w_wk)

    # Global BatchNorm batch statistics (reduced over images in the wrapper —
    # a handful of floats), folded into per-channel scale/shift so the tiled
    # final kernel stays exact.  Sums stay in f32 (one-pass variance).
    m = float(N * H * W)
    mean1 = jnp.sum(s1, axis=(0, 1)) / m
    var1 = jnp.sum(q1, axis=(0, 1)) / m - mean1 * mean1
    scale1 = params["bn1_gamma"] * jax.lax.rsqrt(var1 + BN_EPS)
    shift1 = params["bn1_beta"] - mean1 * scale1
    mean2 = jnp.sum(s2, axis=(0, 1)) / m
    var2 = jnp.sum(q2, axis=(0, 1)) / m - mean2 * mean2
    scale2 = params["bn2_gamma"] * jax.lax.rsqrt(var2 + BN_EPS)
    shift2 = params["bn2_beta"] - mean2 * scale2
    bn_aff = jnp.stack([scale1, shift1, scale2, shift2], axis=0)  # (4, 6b)

    th = _pick_h_tile(H, W, C, C2c)
    est_final = (4 * th * W * (4 * lp(C) + 2 * lp(C2c) + 2 * lp(C1))
                 + 4 * (C * lp(C1 + C) + 2 * C1 * lp(C)))

    out = pl.pallas_call(
        partial(_final_kernel, lin_act),
        out_shape=jax.ShapeDtypeStruct((N, H, W, C), f32),
        grid=(N, H // th),
        in_specs=[
            pl.BlockSpec((1, th, W, C), lambda n, i: (n, i, 0, 0)),
            pl.BlockSpec((1, th, W, C2c), lambda n, i: (n, i, 0, 0)),
            pl.BlockSpec(w_b1.shape, lambda n, i: (0, 0)),
            pl.BlockSpec(params["w_comb1"].shape, lambda n, i: (0, 0)),
            pl.BlockSpec(params["w_comb2"].shape, lambda n, i: (0, 0)),
            pl.BlockSpec(bn_aff.shape, lambda n, i: (0, 0)),
        ],
        out_specs=pl.BlockSpec((1, th, W, C), lambda n, i: (n, i, 0, 0)),
        compiler_params=pltpu.CompilerParams(
            dimension_semantics=("parallel", "parallel"),
            vmem_limit_bytes=_vmem_limit(est_final)),
    )(x, b2c, w_b1, params["w_comb1"], params["w_comb2"], bn_aff)

    return jnp.transpose(out, (0, 3, 1, 2))                  # NHWC -> NCHW


# ------------------------- reference (plain JAX) ----------------------------

def reference_forward(x_nchw, params, lin_act=0.1):
    x = jnp.transpose(x_nchw, (0, 2, 3, 1))
    N, H, W, C = x.shape

    def bn(y, gamma, beta):
        mean = jnp.mean(y, axis=(0, 1, 2), keepdims=True)
        var = jnp.mean((y - mean) ** 2, axis=(0, 1, 2), keepdims=True)
        return (y - mean) * jax.lax.rsqrt(var + BN_EPS) * gamma + beta

    pw = lambda t, w: jnp.einsum("nhwc,cd->nhwd", t, w)

    b1 = bn(jax.nn.relu(pw(x, params["w_b1"])), params["bn1_gamma"], params["bn1_beta"])

    b2 = jax.nn.relu(pw(x, params["w_b2a"]))
    xp = jnp.pad(b2, ((0, 0), (3, 3), (0, 0), (0, 0)))
    b2 = jax.nn.relu(sum(pw(xp[:, k:k + H], params["w_b2b"][k]) for k in range(7)))
    xp = jnp.pad(b2, ((0, 0), (0, 0), (3, 3), (0, 0)))
    b2 = jax.nn.relu(sum(pw(xp[:, :, k:k + W], params["w_b2c"][k]) for k in range(7)))
    b2 = bn(b2, params["bn2_gamma"], params["bn2_beta"])

    y = pw(b1, params["w_comb1"]) + pw(b2, params["w_comb2"])
    out = jax.nn.relu(x + lin_act * y)
    return jnp.transpose(out, (0, 3, 1, 2))


# ----------------------------- params ---------------------------------------

def make_params(key, in_size, base):
    # Weight shape mapping from PyTorch Conv2d (Cout, Cin, kh, kw):
    #   1x1 conv         -> (Cin, Cout)
    #   (7,1)/(1,7) conv -> (7, Cin, Cout)
    #   comb (1x1 on concat[b1, b2]) split into (6*base, Cin) + (6*base, Cin)
    ks = jax.random.split(key, 10)

    def w(k, shape, fan_in):
        return (jax.random.normal(k, shape, jnp.float32) / jnp.sqrt(fan_in))

    return dict(
        w_b1=w(ks[0], (in_size, 6 * base), in_size),
        w_b2a=w(ks[1], (in_size, 4 * base), in_size),
        w_b2b=w(ks[2], (7, 4 * base, 5 * base), 7 * 4 * base),
        w_b2c=w(ks[3], (7, 5 * base, 6 * base), 7 * 5 * base),
        w_comb1=w(ks[4], (6 * base, in_size), 12 * base),
        w_comb2=w(ks[5], (6 * base, in_size), 12 * base),
        bn1_gamma=1.0 + 0.1 * jax.random.normal(ks[6], (6 * base,), jnp.float32),
        bn1_beta=0.1 * jax.random.normal(ks[7], (6 * base,), jnp.float32),
        bn2_gamma=1.0 + 0.1 * jax.random.normal(ks[8], (6 * base,), jnp.float32),
        bn2_beta=0.1 * jax.random.normal(ks[9], (6 * base,), jnp.float32),
    )


if __name__ == "__main__":
    key = jax.random.PRNGKey(0)
    kx, kp = jax.random.split(key)

    N, Cin, H, W = 2, 4, 16, 16
    base = 8
    x = jax.random.normal(kx, (N, Cin, H, W), jnp.float32)
    params = make_params(kp, Cin, base)

    fwd = jax.jit(partial(incept_b_forward, lin_act=0.1))
    out = jax.block_until_ready(fwd(x, params))

    ref = reference_forward(x, params, lin_act=0.1)
    assert out.shape == (N, Cin, H, W)
    err = float(jnp.max(jnp.abs(out - ref)))
    assert jnp.allclose(out, ref, atol=2e-4, rtol=2e-4), err
    print("KERNEL_OK")
</pallas_src>

<mosaic_0001>
module attributes {stable_mosaic.version = 11 : i64} {
  func.func @_branch_kernel(%arg0: i32, %arg1: memref<1x16x16x4xf32, #tpu.memory_space<vmem>>, %arg2: memref<4x80xf32, #tpu.memory_space<vmem>>, %arg3: memref<224x40xf32, #tpu.memory_space<vmem>>, %arg4: memref<280x48xf32, #tpu.memory_space<vmem>>, %arg5: memref<1x16x16x48xf32, #tpu.memory_space<vmem>>, %arg6: memref<1x1x48xf32, #tpu.memory_space<vmem>>, %arg7: memref<1x1x48xf32, #tpu.memory_space<vmem>>, %arg8: memref<1x1x48xf32, #tpu.memory_space<vmem>>, %arg9: memref<1x1x48xf32, #tpu.memory_space<vmem>>, %arg10: memref<22x16x32xf32, #tpu.memory_space<vmem>>, %arg11: memref<22x16x40xf32, #tpu.memory_space<vmem>>) attributes {dimension_semantics = [#tpu.dimension_semantics<parallel>], iteration_bounds = array<i64: 2>, scalar_prefetch = 0 : i64, scratch_operands = 2 : i64, tpu.core_type = #tpu.core_type<tc>, window_params = [{transform_indices = @transform_0, window_bounds = array<i64: 1, 16, 16, 4>}, {pipeline_mode = #tpu.pipeline_mode<synchronous>, transform_indices = @transform_1, window_bounds = array<i64: 4, 80>}, {pipeline_mode = #tpu.pipeline_mode<synchronous>, transform_indices = @transform_2, window_bounds = array<i64: 224, 40>}, {pipeline_mode = #tpu.pipeline_mode<synchronous>, transform_indices = @transform_3, window_bounds = array<i64: 280, 48>}, {transform_indices = @transform_4, window_bounds = array<i64: 1, 16, 16, 48>}, {transform_indices = @transform_5, window_bounds = array<i64: 1, 1, 48>}, {transform_indices = @transform_6, window_bounds = array<i64: 1, 1, 48>}, {transform_indices = @transform_7, window_bounds = array<i64: 1, 1, 48>}, {transform_indices = @transform_8, window_bounds = array<i64: 1, 1, 48>}]} {
    %c0 = arith.constant 0 : index
    %c0_0 = arith.constant 0 : index
    %c0_1 = arith.constant 0 : index
    %c0_2 = arith.constant 0 : index
    %0 = vector.load %arg1[%c0, %c0_0, %c0_1, %c0_2] : memref<1x16x16x4xf32, #tpu.memory_space<vmem>>, vector<1x16x16x4xf32>
    %1 = vector.shape_cast %0 : vector<1x16x16x4xf32> to vector<16x16x4xf32>
    %2 = vector.shape_cast %1 : vector<16x16x4xf32> to vector<256x4xf32>
    %c0_3 = arith.constant 0 : index
    %c0_4 = arith.constant 0 : index
    %3 = vector.load %arg2[%c0_3, %c0_4] : memref<4x80xf32, #tpu.memory_space<vmem>>, vector<4x80xf32>
    %cst = arith.constant dense<0.000000e+00> : vector<256x80xf32>
    %4 = tpu.matmul %2, %3, %cst {dimension_numbers = #tpu.dot_dimension_numbers<[1], [0], [0], [1], [0, 0, 1, 1], [], []>} : vector<256x4xf32>, vector<4x80xf32>, vector<256x80xf32> -> vector<256x80xf32>
    %cst_5 = arith.constant 0.000000e+00 : f32
    %5 = vector.broadcast %cst_5 : f32 to vector<256x80xf32>
    %6 = arith.maximumf %4, %5 : vector<256x80xf32>
    %7 = vector.extract_strided_slice %6 {offsets = [0, 0], sizes = [256, 48], strides = [1, 1]} : vector<256x80xf32> to vector<256x48xf32>
    %8 = vector.extract_strided_slice %6 {offsets = [0, 48], sizes = [256, 32], strides = [1, 1]} : vector<256x80xf32> to vector<256x32xf32>
    %cst_6 = arith.constant dense<0.000000e+00> : vector<48xf32>
    %9 = vector.multi_reduction <add>, %7, %cst_6 [0] : vector<256x48xf32> to vector<48xf32>
    %10 = vector.shape_cast %9 : vector<48xf32> to vector<1x48xf32>
    %c0_7 = arith.constant 0 : index
    %c0_8 = arith.constant 0 : index
    %c0_9 = arith.constant 0 : index
    %11 = vector.load %arg6[%c0_7, %c0_8, %c0_9] : memref<1x1x48xf32, #tpu.memory_space<vmem>>, vector<1x1x48xf32>
    %12 = vector.shape_cast %11 : vector<1x1x48xf32> to vector<1x48xf32>
    %13 = vector.shape_cast %10 : vector<1x48xf32> to vector<1x1x48xf32>
    tpu.vector_store %arg6[%c0_7, %c0_8, %c0_9], %13 {strides = array<i32>} : memref<1x1x48xf32, #tpu.memory_space<vmem>>, vector<1x1x48xf32>,
    %14 = arith.mulf %7, %7 : vector<256x48xf32>
    %cst_10 = arith.constant dense<0.000000e+00> : vector<48xf32>
    %15 = vector.multi_reduction <add>, %14, %cst_10 [0] : vector<256x48xf32> to vector<48xf32>
    %16 = vector.shape_cast %15 : vector<48xf32> to vector<1x48xf32>
    %c0_11 = arith.constant 0 : index
    %c0_12 = arith.constant 0 : index
    %c0_13 = arith.constant 0 : index
    %17 = vector.load %arg7[%c0_11, %c0_12, %c0_13] : memref<1x1x48xf32, #tpu.memory_space<vmem>>, vector<1x1x48xf32>
    %18 = vector.shape_cast %17 : vector<1x1x48xf32> to vector<1x48xf32>
    %19 = vector.shape_cast %16 : vector<1x48xf32> to vector<1x1x48xf32>
    tpu.vector_store %arg7[%c0_11, %c0_12, %c0_13], %19 {strides = array<i32>} : memref<1x1x48xf32, #tpu.memory_space<vmem>>, vector<1x1x48xf32>,
    %cst_14 = arith.constant 0.000000e+00 : f32
    %20 = vector.broadcast %cst_14 : f32 to vector<3x16x32xf32>
    %c0_15 = arith.constant 0 : index
    %c0_16 = arith.constant 0 : index
    %c0_17 = arith.constant 0 : index
    %21 = vector.load %arg10[%c0_15, %c0_16, %c0_17] : memref<22x16x32xf32, #tpu.memory_space<vmem>>, vector<3x16x32xf32>
    tpu.vector_store %arg10[%c0_15, %c0_16, %c0_17], %20 {strides = array<i32>} : memref<22x16x32xf32, #tpu.memory_space<vmem>>, vector<3x16x32xf32>,
    %c19 = arith.constant 19 : index
    %c0_18 = arith.constant 0 : index
    %c0_19 = arith.constant 0 : index
    %22 = vector.load %arg10[%c19, %c0_18, %c0_19] : memref<22x16x32xf32, #tpu.memory_space<vmem>>, vector<3x16x32xf32>
    tpu.vector_store %arg10[%c19, %c0_18, %c0_19], %20 {strides = array<i32>} : memref<22x16x32xf32, #tpu.memory_space<vmem>>, vector<3x16x32xf32>,
    %23 = vector.shape_cast %8 : vector<256x32xf32> to vector<16x16x32xf32>
    %c3 = arith.constant 3 : index
    %c0_20 = arith.constant 0 : index
    %c0_21 = arith.constant 0 : index
    %24 = vector.load %arg10[%c3, %c0_20, %c0_21] : memref<22x16x32xf32, #tpu.memory_space<vmem>>, vector<16x16x32xf32>
    tpu.vector_store %arg10[%c3, %c0_20, %c0_21], %23 {strides = array<i32>} : memref<22x16x32xf32, #tpu.memory_space<vmem>>, vector<16x16x32xf32>,
    %c0_22 = arith.constant 0 : index
    %c0_23 = arith.constant 0 : index
    %c0_24 = arith.constant 0 : index
    %25 = vector.load %arg10[%c0_22, %c0_23, %c0_24] : memref<22x16x32xf32, #tpu.memory_space<vmem>>, vector<16x16x32xf32>
    %26 = vector.shape_cast %25 : vector<16x16x32xf32> to vector<256x32xf32>
    %c1 = arith.constant 1 : index
    %c0_25 = arith.constant 0 : index
    %c0_26 = arith.constant 0 : index
    %27 = vector.load %arg10[%c1, %c0_25, %c0_26] : memref<22x16x32xf32, #tpu.memory_space<vmem>>, vector<16x16x32xf32>
    %28 = vector.shape_cast %27 : vector<16x16x32xf32> to vector<256x32xf32>
    %c2 = arith.constant 2 : index
    %c0_27 = arith.constant 0 : index
    %c0_28 = arith.constant 0 : index
    %29 = vector.load %arg10[%c2, %c0_27, %c0_28] : memref<22x16x32xf32, #tpu.memory_space<vmem>>, vector<16x16x32xf32>
    %30 = vector.shape_cast %29 : vector<16x16x32xf32> to vector<256x32xf32>
    %c3_29 = arith.constant 3 : index
    %c0_30 = arith.constant 0 : index
    %c0_31 = arith.constant 0 : index
    %31 = vector.load %arg10[%c3_29, %c0_30, %c0_31] : memref<22x16x32xf32, #tpu.memory_space<vmem>>, vector<16x16x32xf32>
    %32 = vector.shape_cast %31 : vector<16x16x32xf32> to vector<256x32xf32>
    %c4 = arith.constant 4 : index
    %c0_32 = arith.constant 0 : index
    %c0_33 = arith.constant 0 : index
    %33 = vector.load %arg10[%c4, %c0_32, %c0_33] : memref<22x16x32xf32, #tpu.memory_space<vmem>>, vector<16x16x32xf32>
    %34 = vector.shape_cast %33 : vector<16x16x32xf32> to vector<256x32xf32>
    %c5 = arith.constant 5 : index
    %c0_34 = arith.constant 0 : index
    %c0_35 = arith.constant 0 : index
    %35 = vector.load %arg10[%c5, %c0_34, %c0_35] : memref<22x16x32xf32, #tpu.memory_space<vmem>>, vector<16x16x32xf32>
    %36 = vector.shape_cast %35 : vector<16x16x32xf32> to vector<256x32xf32>
    %c6 = arith.constant 6 : index
    %c0_36 = arith.constant 0 : index
    %c0_37 = arith.constant 0 : index
    %37 = vector.load %arg10[%c6, %c0_36, %c0_37] : memref<22x16x32xf32, #tpu.memory_space<vmem>>, vector<16x16x32xf32>
    %38 = vector.shape_cast %37 : vector<16x16x32xf32> to vector<256x32xf32>
    %39 = tpu.concatenate %26, %28, %30, %32, %34, %36, %38 in 1 : vector<256x32xf32>, vector<256x32xf32>, vector<256x32xf32>, vector<256x32xf32>, vector<256x32xf32>, vector<256x32xf32>, vector<256x32xf32> -> vector<256x224xf32>
    %c0_38 = arith.constant 0 : index
    %c0_39 = arith.constant 0 : index
    %40 = vector.load %arg3[%c0_38, %c0_39] : memref<224x40xf32, #tpu.memory_space<vmem>>, vector<224x40xf32>
    %cst_40 = arith.constant dense<0.000000e+00> : vector<256x40xf32>
    %41 = tpu.matmul %39, %40, %cst_40 {dimension_numbers = #tpu.dot_dimension_numbers<[1], [0], [0], [1], [0, 0, 1, 1], [], []>} : vector<256x224xf32>, vector<224x40xf32>, vector<256x40xf32> -> vector<256x40xf32>
    %cst_41 = arith.constant 0.000000e+00 : f32
    %42 = vector.broadcast %cst_41 : f32 to vector<256x40xf32>
    %43 = arith.maximumf %41, %42 : vector<256x40xf32>
    %cst_42 = arith.constant 0.000000e+00 : f32
    %44 = vector.broadcast %cst_42 : f32 to vector<3x16x40xf32>
    %c0_43 = arith.constant 0 : index
    %c0_44 = arith.constant 0 : index
    %c0_45 = arith.constant 0 : index
    %45 = vector.load %arg11[%c0_43, %c0_44, %c0_45] : memref<22x16x40xf32, #tpu.memory_space<vmem>>, vector<3x16x40xf32>
    tpu.vector_store %arg11[%c0_43, %c0_44, %c0_45], %44 {strides = array<i32>} : memref<22x16x40xf32, #tpu.memory_space<vmem>>, vector<3x16x40xf32>,
    %c19_46 = arith.constant 19 : index
    %c0_47 = arith.constant 0 : index
    %c0_48 = arith.constant 0 : index
    %46 = vector.load %arg11[%c19_46, %c0_47, %c0_48] : memref<22x16x40xf32, #tpu.memory_space<vmem>>, vector<3x16x40xf32>
    tpu.vector_store %arg11[%c19_46, %c0_47, %c0_48], %44 {strides = array<i32>} : memref<22x16x40xf32, #tpu.memory_space<vmem>>, vector<3x16x40xf32>,
    %47 = vector.shape_cast %43 : vector<256x40xf32> to vector<16x16x40xf32>
    %48 = tpu.transpose %47, [1, 0, 2] : vector<16x16x40xf32> -> vector<16x16x40xf32>
    %c3_49 = arith.constant 3 : index
    %c0_50 = arith.constant 0 : index
    %c0_51 = arith.constant 0 : index
    %49 = vector.load %arg11[%c3_49, %c0_50, %c0_51] : memref<22x16x40xf32, #tpu.memory_space<vmem>>, vector<16x16x40xf32>
    tpu.vector_store %arg11[%c3_49, %c0_50, %c0_51], %48 {strides = array<i32>} : memref<22x16x40xf32, #tpu.memory_space<vmem>>, vector<16x16x40xf32>,
    %c0_52 = arith.constant 0 : index
    %c0_53 = arith.constant 0 : index
    %c0_54 = arith.constant 0 : index
    %50 = vector.load %arg11[%c0_52, %c0_53, %c0_54] : memref<22x16x40xf32, #tpu.memory_space<vmem>>, vector<16x16x40xf32>
    %51 = vector.shape_cast %50 : vector<16x16x40xf32> to vector<256x40xf32>
    %c1_55 = arith.constant 1 : index
    %c0_56 = arith.constant 0 : index
    %c0_57 = arith.constant 0 : index
    %52 = vector.load %arg11[%c1_55, %c0_56, %c0_57] : memref<22x16x40xf32, #tpu.memory_space<vmem>>, vector<16x16x40xf32>
    %53 = vector.shape_cast %52 : vector<16x16x40xf32> to vector<256x40xf32>
    %c2_58 = arith.constant 2 : index
    %c0_59 = arith.constant 0 : index
    %c0_60 = arith.constant 0 : index
    %54 = vector.load %arg11[%c2_58, %c0_59, %c0_60] : memref<22x16x40xf32, #tpu.memory_space<vmem>>, vector<16x16x40xf32>
    %55 = vector.shape_cast %54 : vector<16x16x40xf32> to vector<256x40xf32>
    %c3_61 = arith.constant 3 : index
    %c0_62 = arith.constant 0 : index
    %c0_63 = arith.constant 0 : index
    %56 = vector.load %arg11[%c3_61, %c0_62, %c0_63] : memref<22x16x40xf32, #tpu.memory_space<vmem>>, vector<16x16x40xf32>
    %57 = vector.shape_cast %56 : vector<16x16x40xf32> to vector<256x40xf32>
    %c4_64 = arith.constant 4 : index
    %c0_65 = arith.constant 0 : index
    %c0_66 = arith.constant 0 : index
    %58 = vector.load %arg11[%c4_64, %c0_65, %c0_66] : memref<22x16x40xf32, #tpu.memory_space<vmem>>, vector<16x16x40xf32>
    %59 = vector.shape_cast %58 : vector<16x16x40xf32> to vector<256x40xf32>
    %c5_67 = arith.constant 5 : index
    %c0_68 = arith.constant 0 : index
    %c0_69 = arith.constant 0 : index
    %60 = vector.load %arg11[%c5_67, %c0_68, %c0_69] : memref<22x16x40xf32, #tpu.memory_space<vmem>>, vector<16x16x40xf32>
    %61 = vector.shape_cast %60 : vector<16x16x40xf32> to vector<256x40xf32>
    %c6_70 = arith.constant 6 : index
    %c0_71 = arith.constant 0 : index
    %c0_72 = arith.constant 0 : index
    %62 = vector.load %arg11[%c6_70, %c0_71, %c0_72] : memref<22x16x40xf32, #tpu.memory_space<vmem>>, vector<16x16x40xf32>
    %63 = vector.shape_cast %62 : vector<16x16x40xf32> to vector<256x40xf32>
    %64 = tpu.concatenate %51, %53, %55, %57, %59, %61, %63 in 1 : vector<256x40xf32>, vector<256x40xf32>, vector<256x40xf32>, vector<256x40xf32>, vector<256x40xf32>, vector<256x40xf32>, vector<256x40xf32> -> vector<256x280xf32>
    %c0_73 = arith.constant 0 : index
    %c0_74 = arith.constant 0 : index
    %65 = vector.load %arg4[%c0_73, %c0_74] : memref<280x48xf32, #tpu.memory_space<vmem>>, vector<280x48xf32>
    %cst_75 = arith.constant dense<0.000000e+00> : vector<256x48xf32>
    %66 = tpu.matmul %64, %65, %cst_75 {dimension_numbers = #tpu.dot_dimension_numbers<[1], [0], [0], [1], [0, 0, 1, 1], [], []>} : vector<256x280xf32>, vector<280x48xf32>, vector<256x48xf32> -> vector<256x48xf32>
    %cst_76 = arith.constant 0.000000e+00 : f32
    %67 = vector.broadcast %cst_76 : f32 to vector<256x48xf32>
    %68 = arith.maximumf %66, %67 : vector<256x48xf32>
    %cst_77 = arith.constant dense<0.000000e+00> : vector<48xf32>
    %69 = vector.multi_reduction <add>, %68, %cst_77 [0] : vector<256x48xf32> to vector<48xf32>
    %70 = vector.shape_cast %69 : vector<48xf32> to vector<1x48xf32>
    %c0_78 = arith.constant 0 : index
    %c0_79 = arith.constant 0 : index
    %c0_80 = arith.constant 0 : index
    %71 = vector.load %arg8[%c0_78, %c0_79, %c0_80] : memref<1x1x48xf32, #tpu.memory_space<vmem>>, vector<1x1x48xf32>
    %72 = vector.shape_cast %71 : vector<1x1x48xf32> to vector<1x48xf32>
    %73 = vector.shape_cast %70 : vector<1x48xf32> to vector<1x1x48xf32>
    tpu.vector_store %arg8[%c0_78, %c0_79, %c0_80], %73 {strides = array<i32>} : memref<1x1x48xf32, #tpu.memory_space<vmem>>, vector<1x1x48xf32>,
    %74 = arith.mulf %68, %68 : vector<256x48xf32>
    %cst_81 = arith.constant dense<0.000000e+00> : vector<48xf32>
    %75 = vector.multi_reduction <add>, %74, %cst_81 [0] : vector<256x48xf32> to vector<48xf32>
    %76 = vector.shape_cast %75 : vector<48xf32> to vector<1x48xf32>
    %c0_82 = arith.constant 0 : index
    %c0_83 = arith.constant 0 : index
    %c0_84 = arith.constant 0 : index
    %77 = vector.load %arg9[%c0_82, %c0_83, %c0_84] : memref<1x1x48xf32, #tpu.memory_space<vmem>>, vector<1x1x48xf32>
    %78 = vector.shape_cast %77 : vector<1x1x48xf32> to vector<1x48xf32>
    %79 = vector.shape_cast %76 : vector<1x48xf32> to vector<1x1x48xf32>
    tpu.vector_store %arg9[%c0_82, %c0_83, %c0_84], %79 {strides = array<i32>} : memref<1x1x48xf32, #tpu.memory_space<vmem>>, vector<1x1x48xf32>,
    %80 = vector.shape_cast %68 : vector<256x48xf32> to vector<16x16x48xf32>
    %81 = tpu.transpose %80, [1, 0, 2] : vector<16x16x48xf32> -> vector<16x16x48xf32>
    %c0_85 = arith.constant 0 : index
    %c0_86 = arith.constant 0 : index
    %c0_87 = arith.constant 0 : index
    %c0_88 = arith.constant 0 : index
    %82 = vector.load %arg5[%c0_85, %c0_86, %c0_87, %c0_88] : memref<1x16x16x48xf32, #tpu.memory_space<vmem>>, vector<1x16x16x48xf32>
    %83 = vector.shape_cast %82 : vector<1x16x16x48xf32> to vector<16x16x48xf32>
    %84 = vector.shape_cast %81 : vector<16x16x48xf32> to vector<1x16x16x48xf32>
    tpu.vector_store %arg5[%c0_85, %c0_86, %c0_87, %c0_88], %84 {strides = array<i32>} : memref<1x16x16x48xf32, #tpu.memory_space<vmem>>, vector<1x16x16x48xf32>,
    return
  }
  func.func @transform_0(%arg0: i32) -> (i32, i32, i32, i32) {
    %c0_i32 = arith.constant 0 : i32
    %c0_i32_0 = arith.constant 0 : i32
    %c0_i32_1 = arith.constant 0 : i32
    %c0_i32_2 = arith.constant 0 : i32
    return %arg0, %c0_i32, %c0_i32_0, %c0_i32_1 : i32, i32, i32, i32
  }
  func.func @transform_1(%arg0: i32) -> (i32, i32) {
    %c0_i32 = arith.constant 0 : i32
    %c0_i32_0 = arith.constant 0 : i32
    %c0_i32_1 = arith.constant 0 : i32
    return %c0_i32, %c0_i32_0 : i32, i32
  }
  func.func @transform_2(%arg0: i32) -> (i32, i32) {
    %c0_i32 = arith.constant 0 : i32
    %c0_i32_0 = arith.constant 0 : i32
    %c0_i32_1 = arith.constant 0 : i32
    return %c0_i32, %c0_i32_0 : i32, i32
  }
  func.func @transform_3(%arg0: i32) -> (i32, i32) {
    %c0_i32 = arith.constant 0 : i32
    %c0_i32_0 = arith.constant 0 : i32
    %c0_i32_1 = arith.constant 0 : i32
    return %c0_i32, %c0_i32_0 : i32, i32
  }
  func.func @transform_4(%arg0: i32) -> (i32, i32, i32, i32) {
    %c0_i32 = arith.constant 0 : i32
    %c0_i32_0 = arith.constant 0 : i32
    %c0_i32_1 = arith.constant 0 : i32
    %c0_i32_2 = arith.constant 0 : i32
    return %arg0, %c0_i32, %c0_i32_0, %c0_i32_1 : i32, i32, i32, i32
  }
  func.func @transform_5(%arg0: i32) -> (i32, i32, i32) {
    %c0_i32 = arith.constant 0 : i32
    %c0_i32_0 = arith.constant 0 : i32
    %c0_i32_1 = arith.constant 0 : i32
    return %arg0, %c0_i32, %c0_i32_0 : i32, i32, i32
  }
  func.func @transform_6(%arg0: i32) -> (i32, i32, i32) {
    %c0_i32 = arith.constant 0 : i32
    %c0_i32_0 = arith.constant 0 : i32
    %c0_i32_1 = arith.constant 0 : i32
    return %arg0, %c0_i32, %c0_i32_0 : i32, i32, i32
  }
  func.func @transform_7(%arg0: i32) -> (i32, i32, i32) {
    %c0_i32 = arith.constant 0 : i32
    %c0_i32_0 = arith.constant 0 : i32
    %c0_i32_1 = arith.constant 0 : i32
    return %arg0, %c0_i32, %c0_i32_0 : i32, i32, i32
  }
  func.func @transform_8(%arg0: i32) -> (i32, i32, i32) {
    %c0_i32 = arith.constant 0 : i32
    %c0_i32_0 = arith.constant 0 : i32
    %c0_i32_1 = arith.constant 0 : i32
    return %arg0, %c0_i32, %c0_i32_0 : i32, i32, i32
  }
}

module attributes {stable_mosaic.version = 11 : i64} {
  func.func @_final_kernel(%arg0: i32, %arg1: i32, %arg2: memref<1x16x16x4xf32, #tpu.memory_space<vmem>>, %arg3: memref<1x16x16x48xf32, #tpu.memory_space<vmem>>, %arg4: memref<4x48xf32, #tpu.memory_space<vmem>>, %arg5: memref<48x4xf32, #tpu.memory_space<vmem>>, %arg6: memref<48x4xf32, #tpu.memory_space<vmem>>, %arg7: memref<4x48xf32, #tpu.memory_space<vmem>>, %arg8: memref<1x16x16x4xf32, #tpu.memory_space<vmem>>) attributes {dimension_semantics = [#tpu.dimension_semantics<parallel>, #tpu.dimension_semantics<parallel>], iteration_bounds = array<i64: 2, 1>, scalar_prefetch = 0 : i64, scratch_operands = 0 : i64, tpu.core_type = #tpu.core_type<tc>, window_params = [{transform_indices = @transform_0, window_bounds = array<i64: 1, 16, 16, 4>}, {transform_indices = @transform_1, window_bounds = array<i64: 1, 16, 16, 48>}, {pipeline_mode = #tpu.pipeline_mode<synchronous>, transform_indices = @transform_2, window_bounds = array<i64: 4, 48>}, {pipeline_mode = #tpu.pipeline_mode<synchronous>, transform_indices = @transform_3, window_bounds = array<i64: 48, 4>}, {pipeline_mode = #tpu.pipeline_mode<synchronous>, transform_indices = @transform_4, window_bounds = array<i64: 48, 4>}, {pipeline_mode = #tpu.pipeline_mode<synchronous>, transform_indices = @transform_5, window_bounds = array<i64: 4, 48>}, {transform_indices = @transform_6, window_bounds = array<i64: 1, 16, 16, 4>}]} {
    %c0 = arith.constant 0 : index
    %c0_0 = arith.constant 0 : index
    %c0_1 = arith.constant 0 : index
    %c0_2 = arith.constant 0 : index
    %0 = vector.load %arg2[%c0, %c0_0, %c0_1, %c0_2] : memref<1x16x16x4xf32, #tpu.memory_space<vmem>>, vector<1x16x16x4xf32>
    %1 = vector.shape_cast %0 : vector<1x16x16x4xf32> to vector<16x16x4xf32>
    %2 = vector.shape_cast %1 : vector<16x16x4xf32> to vector<256x4xf32>
    %c0_3 = arith.constant 0 : index
    %c0_4 = arith.constant 0 : index
    %3 = vector.load %arg4[%c0_3, %c0_4] : memref<4x48xf32, #tpu.memory_space<vmem>>, vector<4x48xf32>
    %cst = arith.constant dense<0.000000e+00> : vector<256x48xf32>
    %4 = tpu.matmul %2, %3, %cst {dimension_numbers = #tpu.dot_dimension_numbers<[1], [0], [0], [1], [0, 0, 1, 1], [], []>} : vector<256x4xf32>, vector<4x48xf32>, vector<256x48xf32> -> vector<256x48xf32>
    %cst_5 = arith.constant 0.000000e+00 : f32
    %5 = vector.broadcast %cst_5 : f32 to vector<256x48xf32>
    %6 = arith.maximumf %4, %5 : vector<256x48xf32>
    %c0_6 = arith.constant 0 : index
    %c0_7 = arith.constant 0 : index
    %7 = vector.load %arg7[%c0_6, %c0_7] : memref<4x48xf32, #tpu.memory_space<vmem>>, vector<1x48xf32>
    %8 = vector.broadcast %7 : vector<1x48xf32> to vector<256x48xf32>
    %9 = arith.mulf %6, %8 : vector<256x48xf32>
    %c1 = arith.constant 1 : index
    %c0_8 = arith.constant 0 : index
    %10 = vector.load %arg7[%c1, %c0_8] : memref<4x48xf32, #tpu.memory_space<vmem>>, vector<1x48xf32>
    %11 = vector.broadcast %10 : vector<1x48xf32> to vector<256x48xf32>
    %12 = arith.addf %9, %11 : vector<256x48xf32>
    %c0_9 = arith.constant 0 : index
    %c0_10 = arith.constant 0 : index
    %c0_11 = arith.constant 0 : index
    %c0_12 = arith.constant 0 : index
    %13 = vector.load %arg3[%c0_9, %c0_10, %c0_11, %c0_12] : memref<1x16x16x48xf32, #tpu.memory_space<vmem>>, vector<1x16x16x48xf32>
    %14 = vector.shape_cast %13 : vector<1x16x16x48xf32> to vector<16x16x48xf32>
    %15 = vector.shape_cast %14 : vector<16x16x48xf32> to vector<256x48xf32>
    %c2 = arith.constant 2 : index
    %c0_13 = arith.constant 0 : index
    %16 = vector.load %arg7[%c2, %c0_13] : memref<4x48xf32, #tpu.memory_space<vmem>>, vector<1x48xf32>
    %17 = vector.broadcast %16 : vector<1x48xf32> to vector<256x48xf32>
    %18 = arith.mulf %15, %17 : vector<256x48xf32>
    %c3 = arith.constant 3 : index
    %c0_14 = arith.constant 0 : index
    %19 = vector.load %arg7[%c3, %c0_14] : memref<4x48xf32, #tpu.memory_space<vmem>>, vector<1x48xf32>
    %20 = vector.broadcast %19 : vector<1x48xf32> to vector<256x48xf32>
    %21 = arith.addf %18, %20 : vector<256x48xf32>
    %c0_15 = arith.constant 0 : index
    %c0_16 = arith.constant 0 : index
    %22 = vector.load %arg5[%c0_15, %c0_16] : memref<48x4xf32, #tpu.memory_space<vmem>>, vector<48x4xf32>
    %cst_17 = arith.constant dense<0.000000e+00> : vector<256x4xf32>
    %23 = tpu.matmul %12, %22, %cst_17 {dimension_numbers = #tpu.dot_dimension_numbers<[1], [0], [0], [1], [0, 0, 1, 1], [], []>} : vector<256x48xf32>, vector<48x4xf32>, vector<256x4xf32> -> vector<256x4xf32>
    %c0_18 = arith.constant 0 : index
    %c0_19 = arith.constant 0 : index
    %24 = vector.load %arg6[%c0_18, %c0_19] : memref<48x4xf32, #tpu.memory_space<vmem>>, vector<48x4xf32>
    %cst_20 = arith.constant dense<0.000000e+00> : vector<256x4xf32>
    %25 = tpu.matmul %21, %24, %cst_20 {dimension_numbers = #tpu.dot_dimension_numbers<[1], [0], [0], [1], [0, 0, 1, 1], [], []>} : vector<256x48xf32>, vector<48x4xf32>, vector<256x4xf32> -> vector<256x4xf32>
    %26 = arith.addf %23, %25 : vector<256x4xf32>
    %cst_21 = arith.constant 1.000000e-01 : f32
    %27 = vector.broadcast %cst_21 : f32 to vector<256x4xf32>
    %28 = arith.mulf %27, %26 : vector<256x4xf32>
    %29 = arith.addf %2, %28 : vector<256x4xf32>
    %cst_22 = arith.constant 0.000000e+00 : f32
    %30 = vector.broadcast %cst_22 : f32 to vector<256x4xf32>
    %31 = arith.maximumf %29, %30 : vector<256x4xf32>
    %32 = vector.shape_cast %31 : vector<256x4xf32> to vector<16x16x4xf32>
    %c0_23 = arith.constant 0 : index
    %c0_24 = arith.constant 0 : index
    %c0_25 = arith.constant 0 : index
    %c0_26 = arith.constant 0 : index
    %33 = vector.load %arg8[%c0_23, %c0_24, %c0_25, %c0_26] : memref<1x16x16x4xf32, #tpu.memory_space<vmem>>, vector<1x16x16x4xf32>
    %34 = vector.shape_cast %33 : vector<1x16x16x4xf32> to vector<16x16x4xf32>
    %35 = vector.shape_cast %32 : vector<16x16x4xf32> to vector<1x16x16x4xf32>
    tpu.vector_store %arg8[%c0_23, %c0_24, %c0_25, %c0_26], %35 {strides = array<i32>} : memref<1x16x16x4xf32, #tpu.memory_space<vmem>>, vector<1x16x16x4xf32>,
    return
  }
  func.func @transform_0(%arg0: i32, %arg1: i32) -> (i32, i32, i32, i32) {
    %c0_i32 = arith.constant 0 : i32
    %c0_i32_0 = arith.constant 0 : i32
    %c0_i32_1 = arith.constant 0 : i32
    return %arg0, %arg1, %c0_i32, %c0_i32_0 : i32, i32, i32, i32
  }
  func.func @transform_1(%arg0: i32, %arg1: i32) -> (i32, i32, i32, i32) {
    %c0_i32 = arith.constant 0 : i32
    %c0_i32_0 = arith.constant 0 : i32
    %c0_i32_1 = arith.constant 0 : i32
    return %arg0, %arg1, %c0_i32, %c0_i32_0 : i32, i32, i32, i32
  }
  func.func @transform_2(%arg0: i32, %arg1: i32) -> (i32, i32) {
    %c0_i32 = arith.constant 0 : i32
    %c0_i32_0 = arith.constant 0 : i32
    %c0_i32_1 = arith.constant 0 : i32
    return %c0_i32, %c0_i32_0 : i32, i32
  }
  func.func @transform_3(%arg0: i32, %arg1: i32) -> (i32, i32) {
    %c0_i32 = arith.constant 0 : i32
    %c0_i32_0 = arith.constant 0 : i32
    %c0_i32_1 = arith.constant 0 : i32
    return %c0_i32, %c0_i32_0 : i32, i32
  }
  func.func @transform_4(%arg0: i32, %arg1: i32) -> (i32, i32) {
    %c0_i32 = arith.constant 0 : i32
    %c0_i32_0 = arith.constant 0 : i32
    %c0_i32_1 = arith.constant 0 : i32
    return %c0_i32, %c0_i32_0 : i32, i32
  }
  func.func @transform_5(%arg0: i32, %arg1: i32) -> (i32, i32) {
    %c0_i32 = arith.constant 0 : i32
    %c0_i32_0 = arith.constant 0 : i32
    %c0_i32_1 = arith.constant 0 : i32
    return %c0_i32, %c0_i32_0 : i32, i32
  }
  func.func @transform_6(%arg0: i32, %arg1: i32) -> (i32, i32, i32, i32) {
    %c0_i32 = arith.constant 0 : i32
    %c0_i32_0 = arith.constant 0 : i32
    %c0_i32_1 = arith.constant 0 : i32
    return %arg0, %arg1, %c0_i32, %c0_i32_0 : i32, i32, i32, i32
  }
}

</mosaic_0001>

<llo_original>
// kernel: incept_b_forward.3
$region0: #{incept_b_forward.3}
  #allocation0 [shape = 'u32[]', space=smem, size = 0x4, offset = 0x4, fixed_abs, tag = 'smem constant byte address 0x4 - core index']
  #allocation1 [shape = 'u32[72,128]{1,0:T(1,128)}', space=vmem, size = 0x9000, scoped, tag = 'internal scratch']
  %s0 = inlined_call_operand.vmem [shape: f32[2,16,16,4], index: 0, kind: input, shape index: {}]
  %s1 = inlined_call_operand.vmem [shape: f32[2,16,16,48], index: 1, kind: input, shape index: {}]
  %s2 = inlined_call_operand.vmem [shape: f32[4,48], index: 2, kind: input, shape index: {}]
  %s3 = inlined_call_operand.vmem [shape: f32[48,4], index: 3, kind: input, shape index: {}]
  %s4 = inlined_call_operand.vmem [shape: f32[48,4], index: 4, kind: input, shape index: {}]
  %s5 = inlined_call_operand.vmem [shape: f32[4,48], index: 5, kind: input, shape index: {}]
  %s6 = inlined_call_operand.vmem [shape: f32[2,16,16,4], index: 6, kind: output, shape index: {}]
  %s7 = sld [smem:[#allocation0]]
  $region57: #{incept_b_forward.3} parent=0
    _
  %s9 = ssub.s32 1, %s7
  %s10 = scalar_select 0, %s9, %s7
  loop: start=0, step=1, limit=4
  $region2: #{incept_b_forward.3} parent=0 // loop_pre_header
    _
  $region3: #{incept_b_forward.3} parent=0 // loop_header
    %s12 = sphi 0, %s16
    %p13 = scmp.ge.s32.totalorder %s12, 4
    %s19 = sphi 0, %s31
    %s20 = sphi 0, %s27
    %s21 = sphi 0, %s19
    %s22 = sphi 0, %s20
    %s23 = sphi 0, %s21
    %s24 = sphi 0, %s22
    %s36 = sphi 0, %s38
    %s39 = sphi 0, %s36
    %s40 = sphi 0, %s39
    %s56 = sphi 0, %s40
    %s64 = sphi 0, %s66
    %s67 = sphi 0, %s64
    %s68 = sphi 0, %s67
    %s84 = sphi 0, %s68
    %s88 = sphi 0, %s88
    %s90 = sphi 0, %s88
    %s91 = sphi 0, %s90
    %s105 = sphi 0, %s91
    %s109 = sphi 0, %s109
    %s111 = sphi 0, %s109
    %s112 = sphi 0, %s111
    %s126 = sphi 0, %s112
    %s130 = sphi 0, %s130
    %s132 = sphi 0, %s130
    %s133 = sphi 0, %s132
    %s147 = sphi 0, %s133
    %s151 = sphi 0, %s151
    %s153 = sphi 0, %s151
    %s154 = sphi 0, %s153
    %s168 = sphi 0, %s154
    %s176 = sphi 0, %s178
    %s179 = sphi 0, %s176
    %s180 = sphi 0, %s179
    %s196 = sphi 0, %s180
  $region4: #{incept_b_forward.3} parent=0 // loop_header_branch
    %15 = sbr.rel (%p13) target = $region8
  $region5: #{incept_b_forward.3} parent=0 // loop_body
    %s17 = ssub.s32 %s12, 1
    %s18 = ssub.s32 %s12, 2
    %s25 = sadd.s32 1, %s20
    %p26 = scmp.ge.s32.totalorder %s25, 1
    %s27 = scalar_select %p26, 0, %s25
    %s28 = sadd.s32 1, %s19
    %s29 = scalar_select %p26, %s28, %s19
    %p30 = scmp.ge.s32.totalorder %s29, 2
    %s31 = scalar_select %p30, 0, %s29
    %s32 = ssub.s32 %s19, %s31
    %s33 = ssub.s32 %s20, %s27
    %s34 = sor.u32 %s32, %s33
    %p35 = scmp.eq.s32.totalorder %s34, 0
    %s37 = sadd.s32 %s36, 1
    %s38 = scalar_select %p35, %s36, %s37
    %p41 = pneg %p35
    %p42 = scmp.eq.s32.totalorder %s12, 1
    %p43 = por %p41, %p42
    %p44 = scmp.ne.s32.totalorder %s36, %s39
    %p45 = scmp.eq.s32.totalorder %s12, 0
    %p46 = por %p44, %p45
    %p47 = scmp.ne.s32.totalorder %s36, %s39
    %p48 = scmp.eq.s32.totalorder %s17, 1
    %p49 = por %p47, %p48
    %p50 = scmp.ne.s32.totalorder %s39, %s40
    %p51 = scmp.eq.s32.totalorder %s17, 0
    %p52 = por %p50, %p51
    %p53 = scmp.ne.s32.totalorder %s39, %s40
    %p54 = scmp.eq.s32.totalorder %s18, 1
    %p55 = por %p53, %p54
    %p57 = scmp.ne.s32.totalorder %s40, %s56
    %p58 = scmp.eq.s32.totalorder %s18, 0
    %p59 = por %p57, %p58
    %s60 = ssub.s32 %s19, %s31
    %s61 = ssub.s32 %s20, %s27
    %s62 = sor.u32 %s60, %s61
    %p63 = scmp.eq.s32.totalorder %s62, 0
    %s65 = sadd.s32 %s64, 1
    %s66 = scalar_select %p63, %s64, %s65
    %p69 = pneg %p63
    %p70 = scmp.eq.s32.totalorder %s12, 1
    %p71 = por %p69, %p70
    %p72 = scmp.ne.s32.totalorder %s64, %s67
    %p73 = scmp.eq.s32.totalorder %s12, 0
    %p74 = por %p72, %p73
    %p75 = scmp.ne.s32.totalorder %s64, %s67
    %p76 = scmp.eq.s32.totalorder %s17, 1
    %p77 = por %p75, %p76
    %p78 = scmp.ne.s32.totalorder %s67, %s68
    %p79 = scmp.eq.s32.totalorder %s17, 0
    %p80 = por %p78, %p79
    %p81 = scmp.ne.s32.totalorder %s67, %s68
    %p82 = scmp.eq.s32.totalorder %s18, 1
    %p83 = por %p81, %p82
    %p85 = scmp.ne.s32.totalorder %s68, %s84
    %p86 = scmp.eq.s32.totalorder %s18, 0
    %p87 = por %p85, %p86
    %s89 = sadd.s32 %s88, 1
    %p92 = scmp.eq.s32.totalorder %s12, 1
    %p93 = scmp.ne.s32.totalorder %s88, %s90
    %p94 = scmp.eq.s32.totalorder %s12, 0
    %p95 = por %p93, %p94
    %p96 = scmp.ne.s32.totalorder %s88, %s90
    %p97 = scmp.eq.s32.totalorder %s17, 1
    %p98 = por %p96, %p97
    %p99 = scmp.ne.s32.totalorder %s90, %s91
    %p100 = scmp.eq.s32.totalorder %s17, 0
    %p101 = por %p99, %p100
    %p102 = scmp.ne.s32.totalorder %s90, %s91
    %p103 = scmp.eq.s32.totalorder %s18, 1
    %p104 = por %p102, %p103
    %p106 = scmp.ne.s32.totalorder %s91, %s105
    %p107 = scmp.eq.s32.totalorder %s18, 0
    %p108 = por %p106, %p107
    %s110 = sadd.s32 %s109, 1
    %p113 = scmp.eq.s32.totalorder %s12, 1
    %p114 = scmp.ne.s32.totalorder %s109, %s111
    %p115 = scmp.eq.s32.totalorder %s12, 0
    %p116 = por %p114, %p115
    %p117 = scmp.ne.s32.totalorder %s109, %s111
    %p118 = scmp.eq.s32.totalorder %s17, 1
    %p119 = por %p117, %p118
    %p120 = scmp.ne.s32.totalorder %s111, %s112
    %p121 = scmp.eq.s32.totalorder %s17, 0
    %p122 = por %p120, %p121
    %p123 = scmp.ne.s32.totalorder %s111, %s112
    %p124 = scmp.eq.s32.totalorder %s18, 1
    %p125 = por %p123, %p124
    %p127 = scmp.ne.s32.totalorder %s112, %s126
    %p128 = scmp.eq.s32.totalorder %s18, 0
    %p129 = por %p127, %p128
    %s131 = sadd.s32 %s130, 1
    %p134 = scmp.eq.s32.totalorder %s12, 1
    %p135 = scmp.ne.s32.totalorder %s130, %s132
    %p136 = scmp.eq.s32.totalorder %s12, 0
    %p137 = por %p135, %p136
    %p138 = scmp.ne.s32.totalorder %s130, %s132
    %p139 = scmp.eq.s32.totalorder %s17, 1
    %p140 = por %p138, %p139
    %p141 = scmp.ne.s32.totalorder %s132, %s133
    %p142 = scmp.eq.s32.totalorder %s17, 0
    %p143 = por %p141, %p142
    %p144 = scmp.ne.s32.totalorder %s132, %s133
    %p145 = scmp.eq.s32.totalorder %s18, 1
    %p146 = por %p144, %p145
    %p148 = scmp.ne.s32.totalorder %s133, %s147
    %p149 = scmp.eq.s32.totalorder %s18, 0
    %p150 = por %p148, %p149
    %s152 = sadd.s32 %s151, 1
    %p155 = scmp.eq.s32.totalorder %s12, 1
    %p156 = scmp.ne.s32.totalorder %s151, %s153
    %p157 = scmp.eq.s32.totalorder %s12, 0
    %p158 = por %p156, %p157
    %p159 = scmp.ne.s32.totalorder %s151, %s153
    %p160 = scmp.eq.s32.totalorder %s17, 1
    %p161 = por %p159, %p160
    %p162 = scmp.ne.s32.totalorder %s153, %s154
    %p163 = scmp.eq.s32.totalorder %s17, 0
    %p164 = por %p162, %p163
    %p165 = scmp.ne.s32.totalorder %s153, %s154
    %p166 = scmp.eq.s32.totalorder %s18, 1
    %p167 = por %p165, %p166
    %p169 = scmp.ne.s32.totalorder %s154, %s168
    %p170 = scmp.eq.s32.totalorder %s18, 0
    %p171 = por %p169, %p170
    %s172 = ssub.s32 %s19, %s31
    %s173 = ssub.s32 %s20, %s27
    %s174 = sor.u32 %s172, %s173
    %p175 = scmp.eq.s32.totalorder %s174, 0
    %s177 = sadd.s32 %s176, 1
    %s178 = scalar_select %p175, %s176, %s177
    %p181 = pneg %p175
    %p182 = scmp.eq.s32.totalorder %s12, 1
    %p183 = por %p181, %p182
    %p184 = scmp.ne.s32.totalorder %s176, %s179
    %p185 = scmp.eq.s32.totalorder %s12, 0
    %p186 = por %p184, %p185
    %p187 = scmp.ne.s32.totalorder %s176, %s179
    %p188 = scmp.eq.s32.totalorder %s17, 1
    %p189 = por %p187, %p188
    %p190 = scmp.ne.s32.totalorder %s179, %s180
    %p191 = scmp.eq.s32.totalorder %s17, 0
    %p192 = por %p190, %p191
    %p193 = scmp.ne.s32.totalorder %s179, %s180
    %p194 = scmp.eq.s32.totalorder %s18, 1
    %p195 = por %p193, %p194
    %p197 = scmp.ne.s32.totalorder %s180, %s196
    %p198 = scmp.eq.s32.totalorder %s18, 0
    %p199 = por %p197, %p198
    %p200 = scmp.le.s32.totalorder 1, %s12
    %p201 = scmp.lt.s32.totalorder %s12, 3
    %p202 = pnand %p200, %p201
    %p203 = pneg %p202
    // Predicated region
    $region9: #{incept_b_forward.3} parent=5 // pred_check
      _
    $region10: #{incept_b_forward.3} parent=5 // pred_check_branch
      %205 = sbr.rel (%p202) target = $region12
    $region11: #{incept_b_forward.3} parent=5 // pred_region
      %s206 = ssub.s32 %s12, 1
      // Predicated region
      $region13: #{incept_b_forward.3} parent=11 // pred_check
        %p207 = pneg %p101
      $region14: #{incept_b_forward.3} parent=11 // pred_check_branch
        %209 = sbr.rel (%p207) target = $region16
      $region15: #{incept_b_forward.3} parent=11 // pred_region
        _
      $region16: #{incept_b_forward.3} parent=11 // pred_fallthru
        _
      // Predicated region
      $region17: #{incept_b_forward.3} parent=11 // pred_check
        %p210 = pneg %p122
      $region18: #{incept_b_forward.3} parent=11 // pred_check_branch
        %212 = sbr.rel (%p210) target = $region20
      $region19: #{incept_b_forward.3} parent=11 // pred_region
        _
      $region20: #{incept_b_forward.3} parent=11 // pred_fallthru
        _
      // Predicated region
      $region21: #{incept_b_forward.3} parent=11 // pred_check
        %p213 = pneg %p143
      $region22: #{incept_b_forward.3} parent=11 // pred_check_branch
        %215 = sbr.rel (%p213) target = $region24
      $region23: #{incept_b_forward.3} parent=11 // pred_region
        _
      $region24: #{incept_b_forward.3} parent=11 // pred_fallthru
        _
      // Predicated region
      $region25: #{incept_b_forward.3} parent=11 // pred_check
        %p216 = pneg %p164
      $region26: #{incept_b_forward.3} parent=11 // pred_check_branch
        %218 = sbr.rel (%p216) target = $region28
      $region27: #{incept_b_forward.3} parent=11 // pred_region
        _
      $region28: #{incept_b_forward.3} parent=11 // pred_fallthru
        _
    $region12: #{incept_b_forward.3} parent=5 // pred_fallthru
      _
    %p219 = scmp.lt.s32.totalorder %s12, 2
    // Predicated region
    $region29: #{incept_b_forward.3} parent=5 // pred_check
      %p220 = pneg %p219
    $region30: #{incept_b_forward.3} parent=5 // pred_check_branch
      %222 = sbr.rel (%p220) target = $region32
    $region31: #{incept_b_forward.3} parent=5 // pred_region
      // Predicated region
      $region33: #{incept_b_forward.3} parent=31 // pred_check
        %p223 = pneg %p46
      $region34: #{incept_b_forward.3} parent=31 // pred_check_branch
        %225 = sbr.rel (%p223) target = $region36
      $region35: #{incept_b_forward.3} parent=31 // pred_region
        %s226 = smul.u32 16, %s20
        %p227 = scmp.lt.s32.totalorder %s19, 1
        %s228 = scalar_select %p227, %s19, 1
        %p229 = scmp.lt.s32.totalorder %s226, 15
        %s230 = scalar_select %p229, %s226, 15
        %s231 = smul.addr %s230, 2
        %s232 = smul.addr %s228, 32
        %s233 = sadd.s32 %s231, %s232
        %s234 = smul.addr %s233, 8
        %s235 = scalar_lea.vmem %s0, %s234
        %s236 = smul.u32 16, %s20
      $region36: #{incept_b_forward.3} parent=31 // pred_fallthru
        _
      // Predicated region
      $region37: #{incept_b_forward.3} parent=31 // pred_check
        %p237 = pneg %p74
      $region38: #{incept_b_forward.3} parent=31 // pred_check_branch
        %239 = sbr.rel (%p237) target = $region40
      $region39: #{incept_b_forward.3} parent=31 // pred_region
        %s240 = smul.u32 16, %s20
        %p241 = scmp.lt.s32.totalorder %s19, 1
        %s242 = scalar_select %p241, %s19, 1
        %p243 = scmp.lt.s32.totalorder %s240, 15
        %s244 = scalar_select %p243, %s240, 15
        %s245 = smul.addr %s244, 2
        %s246 = smul.addr %s242, 32
        %s247 = sadd.s32 %s245, %s246
        %s248 = smul.addr %s247, 8
        %s249 = scalar_lea.vmem %s1, %s248
        %s250 = smul.u32 16, %s20
      $region40: #{incept_b_forward.3} parent=31 // pred_fallthru
        _
    $region32: #{incept_b_forward.3} parent=5 // pred_fallthru
      _
    %p251 = scmp.le.s32.totalorder 1, %s12
    %p252 = scmp.lt.s32.totalorder %s12, 3
    %p253 = pnand %p251, %p252
    %p254 = pneg %p253
    // Predicated region
    $region41: #{incept_b_forward.3} parent=5 // pred_check
      _
    $region42: #{incept_b_forward.3} parent=5 // pred_check_branch
      %256 = sbr.rel (%p253) target = $region44
    $region43: #{incept_b_forward.3} parent=5 // pred_region
      %s257 = ssub.s32 %s12, 1
      %s258 = smul.u32 16, %s22
      %p259 = scmp.lt.s32.totalorder %s21, 1
      %s260 = scalar_select %p259, %s21, 1
      %p261 = scmp.lt.s32.totalorder %s258, 15
      %s262 = scalar_select %p261, %s258, 15
      %s263 = smul.addr %s262, 2
      %s264 = smul.addr %s260, 32
      %s265 = sadd.s32 %s263, %s264
      %s266 = smul.addr %s265, 8
      %s267 = scalar_lea.vmem %s0, %s266
      %p268 = pneg %p52
      %p269 = pneg %p49
      %s270 = smul.u32 16, %s22
      %p271 = scmp.lt.s32.totalorder %s21, 1
      %s272 = scalar_select %p271, %s21, 1
      %p273 = scmp.lt.s32.totalorder %s270, 15
      %s274 = scalar_select %p273, %s270, 15
      %s275 = smul.addr %s274, 2
      %s276 = smul.addr %s272, 32
      %s277 = sadd.s32 %s275, %s276
      %s278 = smul.addr %s277, 8
      %s279 = scalar_lea.vmem %s1, %s278
      %p280 = pneg %p80
      %p281 = pneg %p77
      %p282 = pneg %p101
      %p283 = pneg %p98
      %p284 = pneg %p122
      %p285 = pneg %p119
      %p286 = pneg %p143
      %p287 = pneg %p140
      %p288 = pneg %p164
      %p289 = pneg %p161
      %p290 = pneg %p192
      %p291 = pneg %p189
      %s292 = smul.u32 16, %s22
      %p293 = scmp.lt.s32.totalorder %s21, 1
      %s294 = scalar_select %p293, %s21, 1
      %p295 = scmp.lt.s32.totalorder %s292, 15
      %s296 = scalar_select %p295, %s292, 15
      %s297 = smul.addr %s296, 2
      %s298 = smul.addr %s294, 32
      %s299 = sadd.s32 %s297, %s298
      %s300 = smul.addr %s299, 8
      %s301 = scalar_lea.vmem %s6, %s300
      %s302 = smul.u32 16, %s22
      %p303 = scmp.lt.s32.totalorder %s21, 1
      %s304 = scalar_select %p303, %s21, 1
      %p305 = scmp.lt.s32.totalorder %s302, 15
      %s306 = scalar_select %p305, %s302, 15
      %s307 = smul.addr %s306, 2
      %s308 = smul.addr %s304, 32
      %s309 = sadd.s32 %s307, %s308
      %s310 = smul.addr %s309, 8
      %s311 = scalar_lea.vmem %s0, %s310
      %s312 = smul.u32 16, %s22
      %s313 = smul.u32 16, %s22
      %p314 = scmp.lt.s32.totalorder %s21, 1
      %s315 = scalar_select %p314, %s21, 1
      %p316 = scmp.lt.s32.totalorder %s313, 15
      %s317 = scalar_select %p316, %s313, 15
      %s318 = smul.addr %s317, 2
      %s319 = smul.addr %s315, 32
      %s320 = sadd.s32 %s318, %s319
      %s321 = smul.addr %s320, 8
      %s322 = scalar_lea.vmem %s1, %s321
      %s323 = smul.u32 16, %s22
      %s324 = smul.u32 16, %s22
      %p325 = scmp.lt.s32.totalorder %s21, 1
      %s326 = scalar_select %p325, %s21, 1
      %p327 = scmp.lt.s32.totalorder %s324, 15
      %s328 = scalar_select %p327, %s324, 15
      %s329 = smul.addr %s328, 2
      %s330 = smul.addr %s326, 32
      %s331 = sadd.s32 %s329, %s330
      %s332 = smul.addr %s331, 8
      %s333 = scalar_lea.vmem %s6, %s332
      %s334 = smul.u32 16, %s22
      %v335 = vld [vmem:[%s311] sm:$0xff]
      %v336 = vld [vmem:[%s311 + $0x8] sm:$0xff]
      %v337 = vld [vmem:[%s311 + $0x10] sm:$0xff]
      %v338 = vld [vmem:[%s311 + $0x18] sm:$0xff]
      %v339 = vld [vmem:[%s311 + $0x20] sm:$0xff]
      %v340 = vld [vmem:[%s311 + $0x28] sm:$0xff]
      %v341 = vld [vmem:[%s311 + $0x30] sm:$0xff]
      %v342 = vld [vmem:[%s311 + $0x38] sm:$0xff]
      %v343 = vld [vmem:[%s311 + $0x40] sm:$0xff]
      %v344 = vld [vmem:[%s311 + $0x48] sm:$0xff]
      %v345 = vld [vmem:[%s311 + $0x50] sm:$0xff]
      %v346 = vld [vmem:[%s311 + $0x58] sm:$0xff]
      %v347 = vld [vmem:[%s311 + $0x60] sm:$0xff]
      %v348 = vld [vmem:[%s311 + $0x68] sm:$0xff]
      %v349 = vld [vmem:[%s311 + $0x70] sm:$0xff]
      %v350 = vld [vmem:[%s311 + $0x78] sm:$0xff]
      %v351 = vld [vmem:[%s311 + $0x80] sm:$0xff]
      %v352 = vld [vmem:[%s311 + $0x88] sm:$0xff]
      %v353 = vld [vmem:[%s311 + $0x90] sm:$0xff]
      %v354 = vld [vmem:[%s311 + $0x98] sm:$0xff]
      %v355 = vld [vmem:[%s311 + $0xa0] sm:$0xff]
      %v356 = vld [vmem:[%s311 + $0xa8] sm:$0xff]
      %v357 = vld [vmem:[%s311 + $0xb0] sm:$0xff]
      %v358 = vld [vmem:[%s311 + $0xb8] sm:$0xff]
      %v359 = vld [vmem:[%s311 + $0xc0] sm:$0xff]
      %v360 = vld [vmem:[%s311 + $0xc8] sm:$0xff]
      %v361 = vld [vmem:[%s311 + $0xd0] sm:$0xff]
      %v362 = vld [vmem:[%s311 + $0xd8] sm:$0xff]
      %v363 = vld [vmem:[%s311 + $0xe0] sm:$0xff]
      %v364 = vld [vmem:[%s311 + $0xe8] sm:$0xff]
      %v365 = vld [vmem:[%s311 + $0xf0] sm:$0xff]
      %v366 = vld [vmem:[%s311 + $0xf8] sm:$0xff]
      %v367 = vld [vmem:[%s2] sm:$0xf]
      %vm368 = vcmask 31744
      %v370 = vsel %vm368, %v335, 0
      %v373 = vsel %vm368, %v336, 0
      %v376 = vsel %vm368, %v337, 0
      %v379 = vsel %vm368, %v338, 0
      %v382 = vsel %vm368, %v339, 0
      %v385 = vsel %vm368, %v340, 0
      %v388 = vsel %vm368, %v341, 0
      %v391 = vsel %vm368, %v342, 0
      %v394 = vsel %vm368, %v343, 0
      %v397 = vsel %vm368, %v344, 0
      %v400 = vsel %vm368, %v345, 0
      %v403 = vsel %vm368, %v346, 0
      %v406 = vsel %vm368, %v347, 0
      %v409 = vsel %vm368, %v348, 0
      %v412 = vsel %vm368, %v349, 0
      %v415 = vsel %vm368, %v350, 0
      %v418 = vsel %vm368, %v351, 0
      %v421 = vsel %vm368, %v352, 0
      %v424 = vsel %vm368, %v353, 0
      %v427 = vsel %vm368, %v354, 0
      %v430 = vsel %vm368, %v355, 0
      %v433 = vsel %vm368, %v356, 0
      %v436 = vsel %vm368, %v357, 0
      %v439 = vsel %vm368, %v358, 0
      %v442 = vsel %vm368, %v359, 0
      %v445 = vsel %vm368, %v360, 0
      %v448 = vsel %vm368, %v361, 0
      %v451 = vsel %vm368, %v362, 0
      %v454 = vsel %vm368, %v363, 0
      %v457 = vsel %vm368, %v364, 0
      %v460 = vsel %vm368, %v365, 0
      %v463 = vsel %vm368, %v366, 0
      %vm465 = vcmask 1043456
      %v467 = vsel %vm465, %v367, 0
      %469 = vmatpush.msra.mxu0 0.0
      %470 = vmatpush.msra.mxu0 0.0
      %471 = vmatpush.msra.mxu0 0.0
      %472 = vmatpush.msra.mxu0 0.0
      %473 = vmatpush.msra.mxu0 0.0
      %474 = vmatpush.msra.mxu0 0.0
      %475 = vmatpush.msra.mxu0 0.0
      %476 = vmatpush.msra.mxu0 0.0
      %477 = vmatpush.msra.mxu0 0.0
      %478 = vmatpush.msra.mxu0 0.0
      %479 = vmatpush.msra.mxu0 0.0
      %480 = vmatpush.msra.mxu0 0.0
      %481 = vmatpush.msra.mxu0 0.0
      %482 = vmatpush.msra.mxu0 0.0
      %483 = vmatpush.msra.mxu0 0.0
      %484 = vmatpush.msra.mxu0 %v467
      %485 = vmatmul.f32.gmra.mxu0 %v370
      %v486 = vpop.f32.mrf.mxu0
      %v487 = vadd.f32 0.0, %v486
      %488 = vmatmul.f32.gmra.mxu0 %v373
      %v489 = vpop.f32.mrf.mxu0
      %v490 = vadd.f32 0.0, %v489
      %491 = vmatmul.f32.gmra.mxu0 %v376
      %v492 = vpop.f32.mrf.mxu0
      %v493 = vadd.f32 0.0, %v492
      %494 = vmatmul.f32.gmra.mxu0 %v379
      %v495 = vpop.f32.mrf.mxu0
      %v496 = vadd.f32 0.0, %v495
      %497 = vmatmul.f32.gmra.mxu0 %v382
      %v498 = vpop.f32.mrf.mxu0
      %v499 = vadd.f32 0.0, %v498
      %500 = vmatmul.f32.gmra.mxu0 %v385
      %v501 = vpop.f32.mrf.mxu0
      %v502 = vadd.f32 0.0, %v501
      %503 = vmatmul.f32.gmra.mxu0 %v388
      %v504 = vpop.f32.mrf.mxu0
      %v505 = vadd.f32 0.0, %v504
      %506 = vmatmul.f32.gmra.mxu0 %v391
      %v507 = vpop.f32.mrf.mxu0
      %v508 = vadd.f32 0.0, %v507
      %509 = vmatmul.f32.gmra.mxu0 %v394
      %v510 = vpop.f32.mrf.mxu0
      %v511 = vadd.f32 0.0, %v510
      %512 = vmatmul.f32.gmra.mxu0 %v397
      %v513 = vpop.f32.mrf.mxu0
      %v514 = vadd.f32 0.0, %v513
      %515 = vmatmul.f32.gmra.mxu0 %v400
      %v516 = vpop.f32.mrf.mxu0
      %v517 = vadd.f32 0.0, %v516
      %518 = vmatmul.f32.gmra.mxu0 %v403
      %v519 = vpop.f32.mrf.mxu0
      %v520 = vadd.f32 0.0, %v519
      %521 = vmatmul.f32.gmra.mxu0 %v406
      %v522 = vpop.f32.mrf.mxu0
      %v523 = vadd.f32 0.0, %v522
      %524 = vmatmul.f32.gmra.mxu0 %v409
      %v525 = vpop.f32.mrf.mxu0
      %v526 = vadd.f32 0.0, %v525
      %527 = vmatmul.f32.gmra.mxu0 %v412
      %v528 = vpop.f32.mrf.mxu0
      %v529 = vadd.f32 0.0, %v528
      %530 = vmatmul.f32.gmra.mxu0 %v415
      %v531 = vpop.f32.mrf.mxu0
      %v532 = vadd.f32 0.0, %v531
      %533 = vmatmul.f32.gmra.mxu0 %v418
      %v534 = vpop.f32.mrf.mxu0
      %v535 = vadd.f32 0.0, %v534
      %536 = vmatmul.f32.gmra.mxu0 %v421
      %v537 = vpop.f32.mrf.mxu0
      %v538 = vadd.f32 0.0, %v537
      %539 = vmatmul.f32.gmra.mxu0 %v424
      %v540 = vpop.f32.mrf.mxu0
      %v541 = vadd.f32 0.0, %v540
      %542 = vmatmul.f32.gmra.mxu0 %v427
      %v543 = vpop.f32.mrf.mxu0
      %v544 = vadd.f32 0.0, %v543
      %545 = vmatmul.f32.gmra.mxu0 %v430
      %v546 = vpop.f32.mrf.mxu0
      %v547 = vadd.f32 0.0, %v546
      %548 = vmatmul.f32.gmra.mxu0 %v433
      %v549 = vpop.f32.mrf.mxu0
      %v550 = vadd.f32 0.0, %v549
      %551 = vmatmul.f32.gmra.mxu0 %v436
      %v552 = vpop.f32.mrf.mxu0
      %v553 = vadd.f32 0.0, %v552
      %554 = vmatmul.f32.gmra.mxu0 %v439
      %v555 = vpop.f32.mrf.mxu0
      %v556 = vadd.f32 0.0, %v555
      %557 = vmatmul.f32.gmra.mxu0 %v442
      %v558 = vpop.f32.mrf.mxu0
      %v559 = vadd.f32 0.0, %v558
      %560 = vmatmul.f32.gmra.mxu0 %v445
      %v561 = vpop.f32.mrf.mxu0
      %v562 = vadd.f32 0.0, %v561
      %563 = vmatmul.f32.gmra.mxu0 %v448
      %v564 = vpop.f32.mrf.mxu0
      %v565 = vadd.f32 0.0, %v564
      %566 = vmatmul.f32.gmra.mxu0 %v451
      %v567 = vpop.f32.mrf.mxu0
      %v568 = vadd.f32 0.0, %v567
      %569 = vmatmul.f32.gmra.mxu0 %v454
      %v570 = vpop.f32.mrf.mxu0
      %v571 = vadd.f32 0.0, %v570
      %572 = vmatmul.f32.gmra.mxu0 %v457
      %v573 = vpop.f32.mrf.mxu0
      %v574 = vadd.f32 0.0, %v573
      %575 = vmatmul.f32.gmra.mxu0 %v460
      %v576 = vpop.f32.mrf.mxu0
      %v577 = vadd.f32 0.0, %v576
      %578 = vmatmul.f32.gmra.mxu0 %v463
      %v579 = vpop.f32.mrf.mxu0
      %v580 = vadd.f32 0.0, %v579
      %581 = vdwg.mxu0
      %v582 = vmax.f32 %v487, 0.0
      %v583 = vmax.f32 %v490, 0.0
      %v584 = vmax.f32 %v493, 0.0
      %v585 = vmax.f32 %v496, 0.0
      %v586 = vmax.f32 %v499, 0.0
      %v587 = vmax.f32 %v502, 0.0
      %v588 = vmax.f32 %v505, 0.0
      %v589 = vmax.f32 %v508, 0.0
      %v590 = vmax.f32 %v511, 0.0
      %v591 = vmax.f32 %v514, 0.0
      %v592 = vmax.f32 %v517, 0.0
      %v593 = vmax.f32 %v520, 0.0
      %v594 = vmax.f32 %v523, 0.0
      %v595 = vmax.f32 %v526, 0.0
      %v596 = vmax.f32 %v529, 0.0
      %v597 = vmax.f32 %v532, 0.0
      %v598 = vmax.f32 %v535, 0.0
      %v599 = vmax.f32 %v538, 0.0
      %v600 = vmax.f32 %v541, 0.0
      %v601 = vmax.f32 %v544, 0.0
      %v602 = vmax.f32 %v547, 0.0
      %v603 = vmax.f32 %v550, 0.0
      %v604 = vmax.f32 %v553, 0.0
      %v605 = vmax.f32 %v556, 0.0
      %v606 = vmax.f32 %v559, 0.0
      %v607 = vmax.f32 %v562, 0.0
      %v608 = vmax.f32 %v565, 0.0
      %v609 = vmax.f32 %v568, 0.0
      %v610 = vmax.f32 %v571, 0.0
      %v611 = vmax.f32 %v574, 0.0
      %v612 = vmax.f32 %v577, 0.0
      %v613 = vmax.f32 %v580, 0.0
      %v614 = vld [vmem:[%s5] sm:$0x1]
      %v615 = vperm.slane %v614, 0
      %v616 = vmul.f32 %v582, %v615
      %v617 = vmul.f32 %v583, %v615
      %v618 = vmul.f32 %v584, %v615
      %v619 = vmul.f32 %v585, %v615
      %v620 = vmul.f32 %v586, %v615
      %v621 = vmul.f32 %v587, %v615
      %v622 = vmul.f32 %v588, %v615
      %v623 = vmul.f32 %v589, %v615
      %v624 = vmul.f32 %v590, %v615
      %v625 = vmul.f32 %v591, %v615
      %v626 = vmul.f32 %v592, %v615
      %v627 = vmul.f32 %v593, %v615
      %v628 = vmul.f32 %v594, %v615
      %v629 = vmul.f32 %v595, %v615
      %v630 = vmul.f32 %v596, %v615
      %v631 = vmul.f32 %v597, %v615
      %v632 = vmul.f32 %v598, %v615
      %v633 = vmul.f32 %v599, %v615
      %v634 = vmul.f32 %v600, %v615
      %v635 = vmul.f32 %v601, %v615
      %v636 = vmul.f32 %v602, %v615
      %v637 = vmul.f32 %v603, %v615
      %v638 = vmul.f32 %v604, %v615
      %v639 = vmul.f32 %v605, %v615
      %v640 = vmul.f32 %v606, %v615
      %v641 = vmul.f32 %v607, %v615
      %v642 = vmul.f32 %v608, %v615
      %v643 = vmul.f32 %v609, %v615
      %v644 = vmul.f32 %v610, %v615
      %v645 = vmul.f32 %v611, %v615
      %v646 = vmul.f32 %v612, %v615
      %v647 = vmul.f32 %v613, %v615
      %v648 = vld [vmem:[%s5 + $0x1] sm:$0x1]
      %v649 = vperm.slane %v648, 0
      %v650 = vadd.f32 %v616, %v649
      %v651 = vadd.f32 %v617, %v649
      %v652 = vadd.f32 %v618, %v649
      %v653 = vadd.f32 %v619, %v649
      %v654 = vadd.f32 %v620, %v649
      %v655 = vadd.f32 %v621, %v649
      %v656 = vadd.f32 %v622, %v649
      %v657 = vadd.f32 %v623, %v649
      %v658 = vadd.f32 %v624, %v649
      %v659 = vadd.f32 %v625, %v649
      %v660 = vadd.f32 %v626, %v649
      %v661 = vadd.f32 %v627, %v649
      %v662 = vadd.f32 %v628, %v649
      %v663 = vadd.f32 %v629, %v649
      %v664 = vadd.f32 %v630, %v649
      %v665 = vadd.f32 %v631, %v649
      %v666 = vadd.f32 %v632, %v649
      %v667 = vadd.f32 %v633, %v649
      %v668 = vadd.f32 %v634, %v649
      %v669 = vadd.f32 %v635, %v649
      %v670 = vadd.f32 %v636, %v649
      %v671 = vadd.f32 %v637, %v649
      %v672 = vadd.f32 %v638, %v649
      %v673 = vadd.f32 %v639, %v649
      %v674 = vadd.f32 %v640, %v649
      %v675 = vadd.f32 %v641, %v649
      %v676 = vadd.f32 %v642, %v649
      %v677 = vadd.f32 %v643, %v649
      %v678 = vadd.f32 %v644, %v649
      %v679 = vadd.f32 %v645, %v649
      %v680 = vadd.f32 %v646, %v649
      %v681 = vadd.f32 %v647, %v649
      %v682 = vld [vmem:[%s322] sm:$0xff]
      %v683 = vld [vmem:[%s322 + $0x8] sm:$0xff]
      %v684 = vld [vmem:[%s322 + $0x10] sm:$0xff]
      %v685 = vld [vmem:[%s322 + $0x18] sm:$0xff]
      %v686 = vld [vmem:[%s322 + $0x20] sm:$0xff]
      %v687 = vld [vmem:[%s322 + $0x28] sm:$0xff]
      %v688 = vld [vmem:[%s322 + $0x30] sm:$0xff]
      %v689 = vld [vmem:[%s322 + $0x38] sm:$0xff]
      %v690 = vld [vmem:[%s322 + $0x40] sm:$0xff]
      %v691 = vld [vmem:[%s322 + $0x48] sm:$0xff]
      %v692 = vld [vmem:[%s322 + $0x50] sm:$0xff]
      %v693 = vld [vmem:[%s322 + $0x58] sm:$0xff]
      %v694 = vld [vmem:[%s322 + $0x60] sm:$0xff]
      %v695 = vld [vmem:[%s322 + $0x68] sm:$0xff]
      %v696 = vld [vmem:[%s322 + $0x70] sm:$0xff]
      %v697 = vld [vmem:[%s322 + $0x78] sm:$0xff]
      %v698 = vld [vmem:[%s322 + $0x80] sm:$0xff]
      %v699 = vld [vmem:[%s322 + $0x88] sm:$0xff]
      %v700 = vld [vmem:[%s322 + $0x90] sm:$0xff]
      %v701 = vld [vmem:[%s322 + $0x98] sm:$0xff]
      %v702 = vld [vmem:[%s322 + $0xa0] sm:$0xff]
      %v703 = vld [vmem:[%s322 + $0xa8] sm:$0xff]
      %v704 = vld [vmem:[%s322 + $0xb0] sm:$0xff]
      %v705 = vld [vmem:[%s322 + $0xb8] sm:$0xff]
      %v706 = vld [vmem:[%s322 + $0xc0] sm:$0xff]
      %v707 = vld [vmem:[%s322 + $0xc8] sm:$0xff]
      %v708 = vld [vmem:[%s322 + $0xd0] sm:$0xff]
      %v709 = vld [vmem:[%s322 + $0xd8] sm:$0xff]
      %v710 = vld [vmem:[%s322 + $0xe0] sm:$0xff]
      %v711 = vld [vmem:[%s322 + $0xe8] sm:$0xff]
      %v712 = vld [vmem:[%s322 + $0xf0] sm:$0xff]
      %v713 = vld [vmem:[%s322 + $0xf8] sm:$0xff]
      %v714 = vld [vmem:[%s5 + $0x2] sm:$0x1]
      %v715 = vperm.slane %v714, 0
      %v716 = vmul.f32 %v682, %v715
      %v717 = vmul.f32 %v683, %v715
      %v718 = vmul.f32 %v684, %v715
      %v719 = vmul.f32 %v685, %v715
      %v720 = vmul.f32 %v686, %v715
      %v721 = vmul.f32 %v687, %v715
      %v722 = vmul.f32 %v688, %v715
      %v723 = vmul.f32 %v689, %v715
      %v724 = vmul.f32 %v690, %v715
      %v725 = vmul.f32 %v691, %v715
      %v726 = vmul.f32 %v692, %v715
      %v727 = vmul.f32 %v693, %v715
      %v728 = vmul.f32 %v694, %v715
      %v729 = vmul.f32 %v695, %v715
      %v730 = vmul.f32 %v696, %v715
      %v731 = vmul.f32 %v697, %v715
      %v732 = vmul.f32 %v698, %v715
      %v733 = vmul.f32 %v699, %v715
      %v734 = vmul.f32 %v700, %v715
      %v735 = vmul.f32 %v701, %v715
      %v736 = vmul.f32 %v702, %v715
      %v737 = vmul.f32 %v703, %v715
      %v738 = vmul.f32 %v704, %v715
      %v739 = vmul.f32 %v705, %v715
      %v740 = vmul.f32 %v706, %v715
      %v741 = vmul.f32 %v707, %v715
      %v742 = vmul.f32 %v708, %v715
      %v743 = vmul.f32 %v709, %v715
      %v744 = vmul.f32 %v710, %v715
      %v745 = vmul.f32 %v711, %v715
      %v746 = vmul.f32 %v712, %v715
      %v747 = vmul.f32 %v713, %v715
      %v748 = vld [vmem:[%s5 + $0x3] sm:$0x1]
      %v749 = vperm.slane %v748, 0
      %v750 = vadd.f32 %v716, %v749
      %v751 = vadd.f32 %v717, %v749
      %v752 = vadd.f32 %v718, %v749
      %v753 = vadd.f32 %v719, %v749
      %v754 = vadd.f32 %v720, %v749
      %v755 = vadd.f32 %v721, %v749
      %v756 = vadd.f32 %v722, %v749
      %v757 = vadd.f32 %v723, %v749
      %v758 = vadd.f32 %v724, %v749
      %v759 = vadd.f32 %v725, %v749
      %v760 = vadd.f32 %v726, %v749
      %v761 = vadd.f32 %v727, %v749
      %v762 = vadd.f32 %v728, %v749
      %v763 = vadd.f32 %v729, %v749
      %v764 = vadd.f32 %v730, %v749
      %v765 = vadd.f32 %v731, %v749
      %v766 = vadd.f32 %v732, %v749
      %v767 = vadd.f32 %v733, %v749
      %v768 = vadd.f32 %v734, %v749
      %v769 = vadd.f32 %v735, %v749
      %v770 = vadd.f32 %v736, %v749
      %v771 = vadd.f32 %v737, %v749
      %v772 = vadd.f32 %v738, %v749
      %v773 = vadd.f32 %v739, %v749
      %v774 = vadd.f32 %v740, %v749
      %v775 = vadd.f32 %v741, %v749
      %v776 = vadd.f32 %v742, %v749
      %v777 = vadd.f32 %v743, %v749
      %v778 = vadd.f32 %v744, %v749
      %v779 = vadd.f32 %v745, %v749
      %v780 = vadd.f32 %v746, %v749
      %v781 = vadd.f32 %v747, %v749
      %v782 = vld [vmem:[%s3] sm:$0xff]
      %v783 = vld [vmem:[%s3 + $0x8] sm:$0xff]
      %v784 = vld [vmem:[%s3 + $0x10] sm:$0xff]
      %v785 = vld [vmem:[%s3 + $0x18] sm:$0xff]
      %v786 = vld [vmem:[%s3 + $0x20] sm:$0xff]
      %v787 = vld [vmem:[%s3 + $0x28] sm:$0xff]
      %v788 = vld [vmem:[%s4] sm:$0xff]
      %v789 = vld [vmem:[%s4 + $0x8] sm:$0xff]
      %v790 = vld [vmem:[%s4 + $0x10] sm:$0xff]
      %v791 = vld [vmem:[%s4 + $0x18] sm:$0xff]
      %v792 = vld [vmem:[%s4 + $0x20] sm:$0xff]
      %v793 = vld [vmem:[%s4 + $0x28] sm:$0xff]
      %vm794 = vcmask 392192
      %v796 = vsel %vm794, %v750, 0
      %v799 = vsel %vm794, %v751, 0
      %v802 = vsel %vm794, %v752, 0
      %v805 = vsel %vm794, %v753, 0
      %v808 = vsel %vm794, %v754, 0
      %v811 = vsel %vm794, %v755, 0
      %v814 = vsel %vm794, %v756, 0
      %v817 = vsel %vm794, %v757, 0
      %v820 = vsel %vm794, %v758, 0
      %v823 = vsel %vm794, %v759, 0
      %v826 = vsel %vm794, %v760, 0
      %v829 = vsel %vm794, %v761, 0
      %v832 = vsel %vm794, %v762, 0
      %v835 = vsel %vm794, %v763, 0
      %v838 = vsel %vm794, %v764, 0
      %v841 = vsel %vm794, %v765, 0
      %v844 = vsel %vm794, %v766, 0
      %v847 = vsel %vm794, %v767, 0
      %v850 = vsel %vm794, %v768, 0
      %v853 = vsel %vm794, %v769, 0
      %v856 = vsel %vm794, %v770, 0
      %v859 = vsel %vm794, %v771, 0
      %v862 = vsel %vm794, %v772, 0
      %v865 = vsel %vm794, %v773, 0
      %v868 = vsel %vm794, %v774, 0
      %v871 = vsel %vm794, %v775, 0
      %v874 = vsel %vm794, %v776, 0
      %v877 = vsel %vm794, %v777, 0
      %v880 = vsel %vm794, %v778, 0
      %v883 = vsel %vm794, %v779, 0
      %v886 = vsel %vm794, %v780, 0
      %v889 = vsel %vm794, %v781, 0
      %891 = vmatpush.msra.mxu0 0.0
      %892 = vmatpush.msra.mxu0 0.0
      %893 = vmatpush.msra.mxu0 0.0
      %894 = vmatpush.msra.mxu0 0.0
      %895 = vmatpush.msra.mxu0 0.0
      %896 = vmatpush.msra.mxu0 0.0
      %897 = vmatpush.msra.mxu0 0.0
      %898 = vmatpush.msra.mxu0 0.0
      %899 = vmatpush.msra.mxu0 0.0
      %900 = vmatpush.msra.mxu0 0.0
      %901 = vmatpush.msra.mxu0 %v793
      %902 = vmatpush.msra.mxu0 %v792
      %903 = vmatpush.msra.mxu0 %v791
      %904 = vmatpush.msra.mxu0 %v790
      %905 = vmatpush.msra.mxu0 %v789
      %906 = vmatpush.msra.mxu0 %v788
      %907 = vmatmul.f32.gmra.mxu0 %v796
      %v908 = vpop.f32.mrf.mxu0
      %v909 = vadd.f32 0.0, %v908
      %910 = vmatmul.f32.gmra.mxu0 %v799
      %v911 = vpop.f32.mrf.mxu0
      %v912 = vadd.f32 0.0, %v911
      %913 = vmatmul.f32.gmra.mxu0 %v802
      %v914 = vpop.f32.mrf.mxu0
      %v915 = vadd.f32 0.0, %v914
      %916 = vmatmul.f32.gmra.mxu0 %v805
      %v917 = vpop.f32.mrf.mxu0
      %v918 = vadd.f32 0.0, %v917
      %919 = vmatmul.f32.gmra.mxu0 %v808
      %v920 = vpop.f32.mrf.mxu0
      %v921 = vadd.f32 0.0, %v920
      %922 = vmatmul.f32.gmra.mxu0 %v811
      %v923 = vpop.f32.mrf.mxu0
      %v924 = vadd.f32 0.0, %v923
      %925 = vmatmul.f32.gmra.mxu0 %v814
      %v926 = vpop.f32.mrf.mxu0
      %v927 = vadd.f32 0.0, %v926
      %928 = vmatmul.f32.gmra.mxu0 %v817
      %v929 = vpop.f32.mrf.mxu0
      %v930 = vadd.f32 0.0, %v929
      %931 = vmatmul.f32.gmra.mxu0 %v820
      %v932 = vpop.f32.mrf.mxu0
      %v933 = vadd.f32 0.0, %v932
      %934 = vmatmul.f32.gmra.mxu0 %v823
      %v935 = vpop.f32.mrf.mxu0
      %v936 = vadd.f32 0.0, %v935
      %937 = vmatmul.f32.gmra.mxu0 %v826
      %v938 = vpop.f32.mrf.mxu0
      %v939 = vadd.f32 0.0, %v938
      %940 = vmatmul.f32.gmra.mxu0 %v829
      %v941 = vpop.f32.mrf.mxu0
      %v942 = vadd.f32 0.0, %v941
      %943 = vmatmul.f32.gmra.mxu0 %v832
      %v944 = vpop.f32.mrf.mxu0
      %v945 = vadd.f32 0.0, %v944
      %946 = vmatmul.f32.gmra.mxu0 %v835
      %v947 = vpop.f32.mrf.mxu0
      %v948 = vadd.f32 0.0, %v947
      %949 = vmatmul.f32.gmra.mxu0 %v838
      %v950 = vpop.f32.mrf.mxu0
      %v951 = vadd.f32 0.0, %v950
      %952 = vmatmul.f32.gmra.mxu0 %v841
      %v953 = vpop.f32.mrf.mxu0
      %v954 = vadd.f32 0.0, %v953
      %955 = vmatmul.f32.gmra.mxu0 %v844
      %v956 = vpop.f32.mrf.mxu0
      %v957 = vadd.f32 0.0, %v956
      %958 = vmatmul.f32.gmra.mxu0 %v847
      %v959 = vpop.f32.mrf.mxu0
      %v960 = vadd.f32 0.0, %v959
      %961 = vmatmul.f32.gmra.mxu0 %v850
      %v962 = vpop.f32.mrf.mxu0
      %v963 = vadd.f32 0.0, %v962
      %964 = vmatmul.f32.gmra.mxu0 %v853
      %v965 = vpop.f32.mrf.mxu0
      %v966 = vadd.f32 0.0, %v965
      %967 = vmatmul.f32.gmra.mxu0 %v856
      %v968 = vpop.f32.mrf.mxu0
      %v969 = vadd.f32 0.0, %v968
      %970 = vmatmul.f32.gmra.mxu0 %v859
      %v971 = vpop.f32.mrf.mxu0
      %v972 = vadd.f32 0.0, %v971
      %973 = vmatmul.f32.gmra.mxu0 %v862
      %v974 = vpop.f32.mrf.mxu0
      %v975 = vadd.f32 0.0, %v974
      %976 = vmatmul.f32.gmra.mxu0 %v865
      %v977 = vpop.f32.mrf.mxu0
      %v978 = vadd.f32 0.0, %v977
      %979 = vmatmul.f32.gmra.mxu0 %v868
      %v980 = vpop.f32.mrf.mxu0
      %v981 = vadd.f32 0.0, %v980
      %982 = vmatmul.f32.gmra.mxu0 %v871
      %v983 = vpop.f32.mrf.mxu0
      %v984 = vadd.f32 0.0, %v983
      %985 = vmatmul.f32.gmra.mxu0 %v874
      %v986 = vpop.f32.mrf.mxu0
      %v987 = vadd.f32 0.0, %v986
      %988 = vmatmul.f32.gmra.mxu0 %v877
      %v989 = vpop.f32.mrf.mxu0
      %v990 = vadd.f32 0.0, %v989
      %991 = vmatmul.f32.gmra.mxu0 %v880
      %v992 = vpop.f32.mrf.mxu0
      %v993 = vadd.f32 0.0, %v992
      %994 = vmatmul.f32.gmra.mxu0 %v883
      %v995 = vpop.f32.mrf.mxu0
      %v996 = vadd.f32 0.0, %v995
      %997 = vmatmul.f32.gmra.mxu0 %v886
      %v998 = vpop.f32.mrf.mxu0
      %v999 = vadd.f32 0.0, %v998
      %1000 = vmatmul.f32.gmra.mxu0 %v889
      %v1001 = vpop.f32.mrf.mxu0
      %v1002 = vadd.f32 0.0, %v1001
      %1003 = vdwg.mxu0
      %v1005 = vsel %vm794, %v650, 0
      %v1008 = vsel %vm794, %v651, 0
      %v1011 = vsel %vm794, %v652, 0
      %v1014 = vsel %vm794, %v653, 0
      %v1017 = vsel %vm794, %v654, 0
      %v1020 = vsel %vm794, %v655, 0
      %v1023 = vsel %vm794, %v656, 0
      %v1026 = vsel %vm794, %v657, 0
      %v1029 = vsel %vm794, %v658, 0
      %v1032 = vsel %vm794, %v659, 0
      %v1035 = vsel %vm794, %v660, 0
      %v1038 = vsel %vm794, %v661, 0
      %v1041 = vsel %vm794, %v662, 0
      %v1044 = vsel %vm794, %v663, 0
      %v1047 = vsel %vm794, %v664, 0
      %v1050 = vsel %vm794, %v665, 0
      %v1053 = vsel %vm794, %v666, 0
      %v1056 = vsel %vm794, %v667, 0
      %v1059 = vsel %vm794, %v668, 0
      %v1062 = vsel %vm794, %v669, 0
      %v1065 = vsel %vm794, %v670, 0
      %v1068 = vsel %vm794, %v671, 0
      %v1071 = vsel %vm794, %v672, 0
      %v1074 = vsel %vm794, %v673, 0
      %v1077 = vsel %vm794, %v674, 0
      %v1080 = vsel %vm794, %v675, 0
      %v1083 = vsel %vm794, %v676, 0
      %v1086 = vsel %vm794, %v677, 0
      %v1089 = vsel %vm794, %v678, 0
      %v1092 = vsel %vm794, %v679, 0
      %v1095 = vsel %vm794, %v680, 0
      %v1098 = vsel %vm794, %v681, 0
      %1100 = vmatpush.msra.mxu0 0.0
      %1101 = vmatpush.msra.mxu0 0.0
      %1102 = vmatpush.msra.mxu0 0.0
      %1103 = vmatpush.msra.mxu0 0.0
      %1104 = vmatpush.msra.mxu0 0.0
      %1105 = vmatpush.msra.mxu0 0.0
      %1106 = vmatpush.msra.mxu0 0.0
      %1107 = vmatpush.msra.mxu0 0.0
      %1108 = vmatpush.msra.mxu0 0.0
      %1109 = vmatpush.msra.mxu0 0.0
      %1110 = vmatpush.msra.mxu0 %v787
      %1111 = vmatpush.msra.mxu0 %v786
      %1112 = vmatpush.msra.mxu0 %v785
      %1113 = vmatpush.msra.mxu0 %v784
      %1114 = vmatpush.msra.mxu0 %v783
      %1115 = vmatpush.msra.mxu0 %v782
      %1116 = vmatmul.f32.gmra.mxu0 %v1005
      %v1117 = vpop.f32.mrf.mxu0
      %v1118 = vadd.f32 %v909, %v1117
      %1119 = vmatmul.f32.gmra.mxu0 %v1008
      %v1120 = vpop.f32.mrf.mxu0
      %v1121 = vadd.f32 %v912, %v1120
      %1122 = vmatmul.f32.gmra.mxu0 %v1011
      %v1123 = vpop.f32.mrf.mxu0
      %v1124 = vadd.f32 %v915, %v1123
      %1125 = vmatmul.f32.gmra.mxu0 %v1014
      %v1126 = vpop.f32.mrf.mxu0
      %v1127 = vadd.f32 %v918, %v1126
      %1128 = vmatmul.f32.gmra.mxu0 %v1017
      %v1129 = vpop.f32.mrf.mxu0
      %v1130 = vadd.f32 %v921, %v1129
      %1131 = vmatmul.f32.gmra.mxu0 %v1020
      %v1132 = vpop.f32.mrf.mxu0
      %v1133 = vadd.f32 %v924, %v1132
      %1134 = vmatmul.f32.gmra.mxu0 %v1023
      %v1135 = vpop.f32.mrf.mxu0
      %v1136 = vadd.f32 %v927, %v1135
      %1137 = vmatmul.f32.gmra.mxu0 %v1026
      %v1138 = vpop.f32.mrf.mxu0
      %v1139 = vadd.f32 %v930, %v1138
      %1140 = vmatmul.f32.gmra.mxu0 %v1029
      %v1141 = vpop.f32.mrf.mxu0
      %v1142 = vadd.f32 %v933, %v1141
      %1143 = vmatmul.f32.gmra.mxu0 %v1032
      %v1144 = vpop.f32.mrf.mxu0
      %v1145 = vadd.f32 %v936, %v1144
      %1146 = vmatmul.f32.gmra.mxu0 %v1035
      %v1147 = vpop.f32.mrf.mxu0
      %v1148 = vadd.f32 %v939, %v1147
      %1149 = vmatmul.f32.gmra.mxu0 %v1038
      %v1150 = vpop.f32.mrf.mxu0
      %v1151 = vadd.f32 %v942, %v1150
      %1152 = vmatmul.f32.gmra.mxu0 %v1041
      %v1153 = vpop.f32.mrf.mxu0
      %v1154 = vadd.f32 %v945, %v1153
      %1155 = vmatmul.f32.gmra.mxu0 %v1044
      %v1156 = vpop.f32.mrf.mxu0
      %v1157 = vadd.f32 %v948, %v1156
      %1158 = vmatmul.f32.gmra.mxu0 %v1047
      %v1159 = vpop.f32.mrf.mxu0
      %v1160 = vadd.f32 %v951, %v1159
      %1161 = vmatmul.f32.gmra.mxu0 %v1050
      %v1162 = vpop.f32.mrf.mxu0
      %v1163 = vadd.f32 %v954, %v1162
      %1164 = vmatmul.f32.gmra.mxu0 %v1053
      %v1165 = vpop.f32.mrf.mxu0
      %v1166 = vadd.f32 %v957, %v1165
      %1167 = vmatmul.f32.gmra.mxu0 %v1056
      %v1168 = vpop.f32.mrf.mxu0
      %v1169 = vadd.f32 %v960, %v1168
      %1170 = vmatmul.f32.gmra.mxu0 %v1059
      %v1171 = vpop.f32.mrf.mxu0
      %v1172 = vadd.f32 %v963, %v1171
      %1173 = vmatmul.f32.gmra.mxu0 %v1062
      %v1174 = vpop.f32.mrf.mxu0
      %v1175 = vadd.f32 %v966, %v1174
      %1176 = vmatmul.f32.gmra.mxu0 %v1065
      %v1177 = vpop.f32.mrf.mxu0
      %v1178 = vadd.f32 %v969, %v1177
      %1179 = vmatmul.f32.gmra.mxu0 %v1068
      %v1180 = vpop.f32.mrf.mxu0
      %v1181 = vadd.f32 %v972, %v1180
      %1182 = vmatmul.f32.gmra.mxu0 %v1071
      %v1183 = vpop.f32.mrf.mxu0
      %v1184 = vadd.f32 %v975, %v1183
      %1185 = vmatmul.f32.gmra.mxu0 %v1074
      %v1186 = vpop.f32.mrf.mxu0
      %v1187 = vadd.f32 %v978, %v1186
      %1188 = vmatmul.f32.gmra.mxu0 %v1077
      %v1189 = vpop.f32.mrf.mxu0
      %v1190 = vadd.f32 %v981, %v1189
      %1191 = vmatmul.f32.gmra.mxu0 %v1080
      %v1192 = vpop.f32.mrf.mxu0
      %v1193 = vadd.f32 %v984, %v1192
      %1194 = vmatmul.f32.gmra.mxu0 %v1083
      %v1195 = vpop.f32.mrf.mxu0
      %v1196 = vadd.f32 %v987, %v1195
      %1197 = vmatmul.f32.gmra.mxu0 %v1086
      %v1198 = vpop.f32.mrf.mxu0
      %v1199 = vadd.f32 %v990, %v1198
      %1200 = vmatmul.f32.gmra.mxu0 %v1089
      %v1201 = vpop.f32.mrf.mxu0
      %v1202 = vadd.f32 %v993, %v1201
      %1203 = vmatmul.f32.gmra.mxu0 %v1092
      %v1204 = vpop.f32.mrf.mxu0
      %v1205 = vadd.f32 %v996, %v1204
      %1206 = vmatmul.f32.gmra.mxu0 %v1095
      %v1207 = vpop.f32.mrf.mxu0
      %v1208 = vadd.f32 %v999, %v1207
      %1209 = vmatmul.f32.gmra.mxu0 %v1098
      %v1210 = vpop.f32.mrf.mxu0
      %v1211 = vadd.f32 %v1002, %v1210
      %1212 = vdwg.mxu0
      %v1213 = vmul.f32 %v1118, 0.1
      %v1214 = vmul.f32 %v1121, 0.1
      %v1215 = vmul.f32 %v1124, 0.1
      %v1216 = vmul.f32 %v1127, 0.1
      %v1217 = vmul.f32 %v1130, 0.1
      %v1218 = vmul.f32 %v1133, 0.1
      %v1219 = vmul.f32 %v1136, 0.1
      %v1220 = vmul.f32 %v1139, 0.1
      %v1221 = vmul.f32 %v1142, 0.1
      %v1222 = vmul.f32 %v1145, 0.1
      %v1223 = vmul.f32 %v1148, 0.1
      %v1224 = vmul.f32 %v1151, 0.1
      %v1225 = vmul.f32 %v1154, 0.1
      %v1226 = vmul.f32 %v1157, 0.1
      %v1227 = vmul.f32 %v1160, 0.1
      %v1228 = vmul.f32 %v1163, 0.1
      %v1229 = vmul.f32 %v1166, 0.1
      %v1230 = vmul.f32 %v1169, 0.1
      %v1231 = vmul.f32 %v1172, 0.1
      %v1232 = vmul.f32 %v1175, 0.1
      %v1233 = vmul.f32 %v1178, 0.1
      %v1234 = vmul.f32 %v1181, 0.1
      %v1235 = vmul.f32 %v1184, 0.1
      %v1236 = vmul.f32 %v1187, 0.1
      %v1237 = vmul.f32 %v1190, 0.1
      %v1238 = vmul.f32 %v1193, 0.1
      %v1239 = vmul.f32 %v1196, 0.1
      %v1240 = vmul.f32 %v1199, 0.1
      %v1241 = vmul.f32 %v1202, 0.1
      %v1242 = vmul.f32 %v1205, 0.1
      %v1243 = vmul.f32 %v1208, 0.1
      %v1244 = vmul.f32 %v1211, 0.1
      %v1245 = vadd.f32 %v335, %v1213
      %v1246 = vadd.f32 %v336, %v1214
      %v1247 = vadd.f32 %v337, %v1215
      %v1248 = vadd.f32 %v338, %v1216
      %v1249 = vadd.f32 %v339, %v1217
      %v1250 = vadd.f32 %v340, %v1218
      %v1251 = vadd.f32 %v341, %v1219
      %v1252 = vadd.f32 %v342, %v1220
      %v1253 = vadd.f32 %v343, %v1221
      %v1254 = vadd.f32 %v344, %v1222
      %v1255 = vadd.f32 %v345, %v1223
      %v1256 = vadd.f32 %v346, %v1224
      %v1257 = vadd.f32 %v347, %v1225
      %v1258 = vadd.f32 %v348, %v1226
      %v1259 = vadd.f32 %v349, %v1227
      %v1260 = vadd.f32 %v350, %v1228
      %v1261 = vadd.f32 %v351, %v1229
      %v1262 = vadd.f32 %v352, %v1230
      %v1263 = vadd.f32 %v353, %v1231
      %v1264 = vadd.f32 %v354, %v1232
      %v1265 = vadd.f32 %v355, %v1233
      %v1266 = vadd.f32 %v356, %v1234
      %v1267 = vadd.f32 %v357, %v1235
      %v1268 = vadd.f32 %v358, %v1236
      %v1269 = vadd.f32 %v359, %v1237
      %v1270 = vadd.f32 %v360, %v1238
      %v1271 = vadd.f32 %v361, %v1239
      %v1272 = vadd.f32 %v362, %v1240
      %v1273 = vadd.f32 %v363, %v1241
      %v1274 = vadd.f32 %v364, %v1242
      %v1275 = vadd.f32 %v365, %v1243
      %v1276 = vadd.f32 %v366, %v1244
      %v1277 = vmax.f32 %v1245, 0.0
      %v1278 = vmax.f32 %v1246, 0.0
      %v1279 = vmax.f32 %v1247, 0.0
      %v1280 = vmax.f32 %v1248, 0.0
      %v1281 = vmax.f32 %v1249, 0.0
      %v1282 = vmax.f32 %v1250, 0.0
      %v1283 = vmax.f32 %v1251, 0.0
      %v1284 = vmax.f32 %v1252, 0.0
      %v1285 = vmax.f32 %v1253, 0.0
      %v1286 = vmax.f32 %v1254, 0.0
      %v1287 = vmax.f32 %v1255, 0.0
      %v1288 = vmax.f32 %v1256, 0.0
      %v1289 = vmax.f32 %v1257, 0.0
      %v1290 = vmax.f32 %v1258, 0.0
      %v1291 = vmax.f32 %v1259, 0.0
      %v1292 = vmax.f32 %v1260, 0.0
      %v1293 = vmax.f32 %v1261, 0.0
      %v1294 = vmax.f32 %v1262, 0.0
      %v1295 = vmax.f32 %v1263, 0.0
      %v1296 = vmax.f32 %v1264, 0.0
      %v1297 = vmax.f32 %v1265, 0.0
      %v1298 = vmax.f32 %v1266, 0.0
      %v1299 = vmax.f32 %v1267, 0.0
      %v1300 = vmax.f32 %v1268, 0.0
      %v1301 = vmax.f32 %v1269, 0.0
      %v1302 = vmax.f32 %v1270, 0.0
      %v1303 = vmax.f32 %v1271, 0.0
      %v1304 = vmax.f32 %v1272, 0.0
      %v1305 = vmax.f32 %v1273, 0.0
      %v1306 = vmax.f32 %v1274, 0.0
      %v1307 = vmax.f32 %v1275, 0.0
      %v1308 = vmax.f32 %v1276, 0.0
      %1309 = vst.msk [vmem:[%s333] sm:$0xff] %vm368, %v1277
      %1310 = vst.msk [vmem:[%s333 + $0x8] sm:$0xff] %vm368, %v1278
      %1311 = vst.msk [vmem:[%s333 + $0x10] sm:$0xff] %vm368, %v1279
      %1312 = vst.msk [vmem:[%s333 + $0x18] sm:$0xff] %vm368, %v1280
      %1313 = vst.msk [vmem:[%s333 + $0x20] sm:$0xff] %vm368, %v1281
      %1314 = vst.msk [vmem:[%s333 + $0x28] sm:$0xff] %vm368, %v1282
      %1315 = vst.msk [vmem:[%s333 + $0x30] sm:$0xff] %vm368, %v1283
      %1316 = vst.msk [vmem:[%s333 + $0x38] sm:$0xff] %vm368, %v1284
      %1317 = vst.msk [vmem:[%s333 + $0x40] sm:$0xff] %vm368, %v1285
      %1318 = vst.msk [vmem:[%s333 + $0x48] sm:$0xff] %vm368, %v1286
      %1319 = vst.msk [vmem:[%s333 + $0x50] sm:$0xff] %vm368, %v1287
      %1320 = vst.msk [vmem:[%s333 + $0x58] sm:$0xff] %vm368, %v1288
      %1321 = vst.msk [vmem:[%s333 + $0x60] sm:$0xff] %vm368, %v1289
      %1322 = vst.msk [vmem:[%s333 + $0x68] sm:$0xff] %vm368, %v1290
      %1323 = vst.msk [vmem:[%s333 + $0x70] sm:$0xff] %vm368, %v1291
      %1324 = vst.msk [vmem:[%s333 + $0x78] sm:$0xff] %vm368, %v1292
      %1325 = vst.msk [vmem:[%s333 + $0x80] sm:$0xff] %vm368, %v1293
      %1326 = vst.msk [vmem:[%s333 + $0x88] sm:$0xff] %vm368, %v1294
      %1327 = vst.msk [vmem:[%s333 + $0x90] sm:$0xff] %vm368, %v1295
      %1328 = vst.msk [vmem:[%s333 + $0x98] sm:$0xff] %vm368, %v1296
      %1329 = vst.msk [vmem:[%s333 + $0xa0] sm:$0xff] %vm368, %v1297
      %1330 = vst.msk [vmem:[%s333 + $0xa8] sm:$0xff] %vm368, %v1298
      %1331 = vst.msk [vmem:[%s333 + $0xb0] sm:$0xff] %vm368, %v1299
      %1332 = vst.msk [vmem:[%s333 + $0xb8] sm:$0xff] %vm368, %v1300
      %1333 = vst.msk [vmem:[%s333 + $0xc0] sm:$0xff] %vm368, %v1301
      %1334 = vst.msk [vmem:[%s333 + $0xc8] sm:$0xff] %vm368, %v1302
      %1335 = vst.msk [vmem:[%s333 + $0xd0] sm:$0xff] %vm368, %v1303
      %1336 = vst.msk [vmem:[%s333 + $0xd8] sm:$0xff] %vm368, %v1304
      %1337 = vst.msk [vmem:[%s333 + $0xe0] sm:$0xff] %vm368, %v1305
      %1338 = vst.msk [vmem:[%s333 + $0xe8] sm:$0xff] %vm368, %v1306
      %1339 = vst.msk [vmem:[%s333 + $0xf0] sm:$0xff] %vm368, %v1307
      %1340 = vst.msk [vmem:[%s333 + $0xf8] sm:$0xff] %vm368, %v1308
      %s1341 = smul.u32 16, %s22
      %p1342 = scmp.lt.s32.totalorder %s21, 1
      %s1343 = scalar_select %p1342, %s21, 1
      %p1344 = scmp.lt.s32.totalorder %s1341, 15
      %s1345 = scalar_select %p1344, %s1341, 15
      %s1346 = smul.addr %s1345, 2
      %s1347 = smul.addr %s1343, 32
      %s1348 = sadd.s32 %s1346, %s1347
      %s1349 = smul.addr %s1348, 8
      %s1350 = scalar_lea.vmem %s6, %s1349
      // Predicated region
      $region45: #{incept_b_forward.3} parent=43 // pred_check
        %p1351 = pneg %p189
      $region46: #{incept_b_forward.3} parent=43 // pred_check_branch
        %1353 = sbr.rel (%p1351) target = $region48
      $region47: #{incept_b_forward.3} parent=43 // pred_region
        %s1354 = smul.u32 16, %s22
      $region48: #{incept_b_forward.3} parent=43 // pred_fallthru
        _
    $region44: #{incept_b_forward.3} parent=5 // pred_fallthru
      _
    %p1355 = scmp.le.s32.totalorder 2, %s12
    // Predicated region
    $region49: #{incept_b_forward.3} parent=5 // pred_check
      %p1356 = pneg %p1355
    $region50: #{incept_b_forward.3} parent=5 // pred_check_branch
      %1358 = sbr.rel (%p1356) target = $region52
    $region51: #{incept_b_forward.3} parent=5 // pred_region
      %s1359 = ssub.s32 %s12, 2
      // Predicated region
      $region53: #{incept_b_forward.3} parent=51 // pred_check
        %p1360 = pneg %p195
      $region54: #{incept_b_forward.3} parent=51 // pred_check_branch
        %1362 = sbr.rel (%p1360) target = $region56
      $region55: #{incept_b_forward.3} parent=51 // pred_region
        %s1363 = smul.u32 16, %s24
        %p1364 = scmp.lt.s32.totalorder %s23, 1
        %s1365 = scalar_select %p1364, %s23, 1
        %p1366 = scmp.lt.s32.totalorder %s1363, 15
        %s1367 = scalar_select %p1366, %s1363, 15
        %s1368 = smul.addr %s1367, 2
        %s1369 = smul.addr %s1365, 32
        %s1370 = sadd.s32 %s1368, %s1369
        %s1371 = smul.addr %s1370, 8
        %s1372 = scalar_lea.vmem %s6, %s1371
      $region56: #{incept_b_forward.3} parent=51 // pred_fallthru
        _
    $region52: #{incept_b_forward.3} parent=5 // pred_fallthru
      _
  $region6: #{incept_b_forward.3} parent=0 // loop_footer
    %s16 = sadd.s32 1, %s12
  $region7: #{incept_b_forward.3} parent=0 // loop_footer_branch
    %11 = sbr.rel target = $region3
  $region8: #{incept_b_forward.3} parent=0 // loop_exit
    _

// kernel: incept_b_forward.2
$region0: #{incept_b_forward.2}
  #allocation0 [shape = 'u32[]', space=smem, size = 0x4, offset = 0x4, fixed_abs, tag = 'smem constant byte address 0x4 - core index']
  #allocation1 [shape = 'u32[72,128]{1,0:T(1,128)}', space=vmem, size = 0x9000, scoped, tag = 'internal scratch']
  #allocation2 [shape = 'f32[22,16,32]{2,1,0:T(8,128)}', space=vmem, size = 0x2c000, scoped, tag = 'scratch operand']
  #allocation3 [shape = 'f32[22,16,40]{2,1,0:T(8,128)}', space=vmem, size = 0x2c000, scoped, tag = 'scratch operand']
  %s0 = inlined_call_operand.vmem [shape: f32[2,16,16,4], index: 0, kind: input, shape index: {}]
  %s1 = inlined_call_operand.vmem [shape: f32[4,80], index: 1, kind: input, shape index: {}]
  %s2 = inlined_call_operand.vmem [shape: f32[224,40], index: 2, kind: input, shape index: {}]
  %s3 = inlined_call_operand.vmem [shape: f32[280,48], index: 3, kind: input, shape index: {}]
  %s4 = inlined_call_operand.vmem [shape: f32[2,16,16,48], index: 4, kind: output, shape index: {0}]
  %s5 = inlined_call_operand.vmem [shape: f32[2,1,48], index: 5, kind: output, shape index: {1}]
  %s6 = inlined_call_operand.vmem [shape: f32[2,1,48], index: 6, kind: output, shape index: {2}]
  %s7 = inlined_call_operand.vmem [shape: f32[2,1,48], index: 7, kind: output, shape index: {3}]
  %s8 = inlined_call_operand.vmem [shape: f32[2,1,48], index: 8, kind: output, shape index: {4}]
  %9 = xla_tuple %s4, %s5, %s6, %s7, %s8
  %s10 = sld [smem:[#allocation0]]
  $region81: #{incept_b_forward.2} parent=0
    _
  %s12 = ssub.s32 1, %s10
  %s13 = scalar_select 0, %s12, %s10
  loop: start=0, step=1, limit=4
  $region2: #{incept_b_forward.2} parent=0 // loop_pre_header
    _
  $region3: #{incept_b_forward.2} parent=0 // loop_header
    %s15 = sphi 0, %s19
    %p16 = scmp.ge.s32.totalorder %s15, 4
    %s25 = sphi 0, %s27
    %s28 = sphi 0, %s25
    %s29 = sphi 0, %s28
    %s45 = sphi 0, %s29
    %s49 = sphi 0, %s49
    %s51 = sphi 0, %s49
    %s52 = sphi 0, %s51
    %s66 = sphi 0, %s52
    %s70 = sphi 0, %s70
    %s72 = sphi 0, %s70
    %s73 = sphi 0, %s72
    %s87 = sphi 0, %s73
    %s91 = sphi 0, %s91
    %s93 = sphi 0, %s91
    %s94 = sphi 0, %s93
    %s108 = sphi 0, %s94
    %s114 = sphi 0, %s116
    %s117 = sphi 0, %s114
    %s118 = sphi 0, %s117
    %s134 = sphi 0, %s118
    %s140 = sphi 0, %s142
    %s143 = sphi 0, %s140
    %s144 = sphi 0, %s143
    %s160 = sphi 0, %s144
    %s166 = sphi 0, %s168
    %s169 = sphi 0, %s166
    %s170 = sphi 0, %s169
    %s186 = sphi 0, %s170
    %s192 = sphi 0, %s194
    %s195 = sphi 0, %s192
    %s196 = sphi 0, %s195
    %s212 = sphi 0, %s196
    %s218 = sphi 0, %s220
    %s221 = sphi 0, %s218
    %s222 = sphi 0, %s221
    %s238 = sphi 0, %s222
  $region4: #{incept_b_forward.2} parent=0 // loop_header_branch
    %18 = sbr.rel (%p16) target = $region8
  $region5: #{incept_b_forward.2} parent=0 // loop_body
    %s20 = ssub.s32 %s15, 1
    %s21 = ssub.s32 %s15, 2
    %s22 = sadd.s32 %s15, 1
    %s23 = ssub.s32 %s15, %s22
    %p24 = scmp.eq.s32.totalorder %s23, 0
    %s26 = sadd.s32 %s25, 1
    %s27 = scalar_select %p24, %s25, %s26
    %p30 = pneg %p24
    %p31 = scmp.eq.s32.totalorder %s15, 1
    %p32 = por %p30, %p31
    %p33 = scmp.ne.s32.totalorder %s25, %s28
    %p34 = scmp.eq.s32.totalorder %s15, 0
    %p35 = por %p33, %p34
    %p36 = scmp.ne.s32.totalorder %s25, %s28
    %p37 = scmp.eq.s32.totalorder %s20, 1
    %p38 = por %p36, %p37
    %p39 = scmp.ne.s32.totalorder %s28, %s29
    %p40 = scmp.eq.s32.totalorder %s20, 0
    %p41 = por %p39, %p40
    %p42 = scmp.ne.s32.totalorder %s28, %s29
    %p43 = scmp.eq.s32.totalorder %s21, 1
    %p44 = por %p42, %p43
    %p46 = scmp.ne.s32.totalorder %s29, %s45
    %p47 = scmp.eq.s32.totalorder %s21, 0
    %p48 = por %p46, %p47
    %s50 = sadd.s32 %s49, 1
    %p53 = scmp.eq.s32.totalorder %s15, 1
    %p54 = scmp.ne.s32.totalorder %s49, %s51
    %p55 = scmp.eq.s32.totalorder %s15, 0
    %p56 = por %p54, %p55
    %p57 = scmp.ne.s32.totalorder %s49, %s51
    %p58 = scmp.eq.s32.totalorder %s20, 1
    %p59 = por %p57, %p58
    %p60 = scmp.ne.s32.totalorder %s51, %s52
    %p61 = scmp.eq.s32.totalorder %s20, 0
    %p62 = por %p60, %p61
    %p63 = scmp.ne.s32.totalorder %s51, %s52
    %p64 = scmp.eq.s32.totalorder %s21, 1
    %p65 = por %p63, %p64
    %p67 = scmp.ne.s32.totalorder %s52, %s66
    %p68 = scmp.eq.s32.totalorder %s21, 0
    %p69 = por %p67, %p68
    %s71 = sadd.s32 %s70, 1
    %p74 = scmp.eq.s32.totalorder %s15, 1
    %p75 = scmp.ne.s32.totalorder %s70, %s72
    %p76 = scmp.eq.s32.totalorder %s15, 0
    %p77 = por %p75, %p76
    %p78 = scmp.ne.s32.totalorder %s70, %s72
    %p79 = scmp.eq.s32.totalorder %s20, 1
    %p80 = por %p78, %p79
    %p81 = scmp.ne.s32.totalorder %s72, %s73
    %p82 = scmp.eq.s32.totalorder %s20, 0
    %p83 = por %p81, %p82
    %p84 = scmp.ne.s32.totalorder %s72, %s73
    %p85 = scmp.eq.s32.totalorder %s21, 1
    %p86 = por %p84, %p85
    %p88 = scmp.ne.s32.totalorder %s73, %s87
    %p89 = scmp.eq.s32.totalorder %s21, 0
    %p90 = por %p88, %p89
    %s92 = sadd.s32 %s91, 1
    %p95 = scmp.eq.s32.totalorder %s15, 1
    %p96 = scmp.ne.s32.totalorder %s91, %s93
    %p97 = scmp.eq.s32.totalorder %s15, 0
    %p98 = por %p96, %p97
    %p99 = scmp.ne.s32.totalorder %s91, %s93
    %p100 = scmp.eq.s32.totalorder %s20, 1
    %p101 = por %p99, %p100
    %p102 = scmp.ne.s32.totalorder %s93, %s94
    %p103 = scmp.eq.s32.totalorder %s20, 0
    %p104 = por %p102, %p103
    %p105 = scmp.ne.s32.totalorder %s93, %s94
    %p106 = scmp.eq.s32.totalorder %s21, 1
    %p107 = por %p105, %p106
    %p109 = scmp.ne.s32.totalorder %s94, %s108
    %p110 = scmp.eq.s32.totalorder %s21, 0
    %p111 = por %p109, %p110
    %s112 = ssub.s32 %s15, %s22
    %p113 = scmp.eq.s32.totalorder %s112, 0
    %s115 = sadd.s32 %s114, 1
    %s116 = scalar_select %p113, %s114, %s115
    %p119 = pneg %p113
    %p120 = scmp.eq.s32.totalorder %s15, 1
    %p121 = por %p119, %p120
    %p122 = scmp.ne.s32.totalorder %s114, %s117
    %p123 = scmp.eq.s32.totalorder %s15, 0
    %p124 = por %p122, %p123
    %p125 = scmp.ne.s32.totalorder %s114, %s117
    %p126 = scmp.eq.s32.totalorder %s20, 1
    %p127 = por %p125, %p126
    %p128 = scmp.ne.s32.totalorder %s117, %s118
    %p129 = scmp.eq.s32.totalorder %s20, 0
    %p130 = por %p128, %p129
    %p131 = scmp.ne.s32.totalorder %s117, %s118
    %p132 = scmp.eq.s32.totalorder %s21, 1
    %p133 = por %p131, %p132
    %p135 = scmp.ne.s32.totalorder %s118, %s134
    %p136 = scmp.eq.s32.totalorder %s21, 0
    %p137 = por %p135, %p136
    %s138 = ssub.s32 %s15, %s22
    %p139 = scmp.eq.s32.totalorder %s138, 0
    %s141 = sadd.s32 %s140, 1
    %s142 = scalar_select %p139, %s140, %s141
    %p145 = pneg %p139
    %p146 = scmp.eq.s32.totalorder %s15, 1
    %p147 = por %p145, %p146
    %p148 = scmp.ne.s32.totalorder %s140, %s143
    %p149 = scmp.eq.s32.totalorder %s15, 0
    %p150 = por %p148, %p149
    %p151 = scmp.ne.s32.totalorder %s140, %s143
    %p152 = scmp.eq.s32.totalorder %s20, 1
    %p153 = por %p151, %p152
    %p154 = scmp.ne.s32.totalorder %s143, %s144
    %p155 = scmp.eq.s32.totalorder %s20, 0
    %p156 = por %p154, %p155
    %p157 = scmp.ne.s32.totalorder %s143, %s144
    %p158 = scmp.eq.s32.totalorder %s21, 1
    %p159 = por %p157, %p158
    %p161 = scmp.ne.s32.totalorder %s144, %s160
    %p162 = scmp.eq.s32.totalorder %s21, 0
    %p163 = por %p161, %p162
    %s164 = ssub.s32 %s15, %s22
    %p165 = scmp.eq.s32.totalorder %s164, 0
    %s167 = sadd.s32 %s166, 1
    %s168 = scalar_select %p165, %s166, %s167
    %p171 = pneg %p165
    %p172 = scmp.eq.s32.totalorder %s15, 1
    %p173 = por %p171, %p172
    %p174 = scmp.ne.s32.totalorder %s166, %s169
    %p175 = scmp.eq.s32.totalorder %s15, 0
    %p176 = por %p174, %p175
    %p177 = scmp.ne.s32.totalorder %s166, %s169
    %p178 = scmp.eq.s32.totalorder %s20, 1
    %p179 = por %p177, %p178
    %p180 = scmp.ne.s32.totalorder %s169, %s170
    %p181 = scmp.eq.s32.totalorder %s20, 0
    %p182 = por %p180, %p181
    %p183 = scmp.ne.s32.totalorder %s169, %s170
    %p184 = scmp.eq.s32.totalorder %s21, 1
    %p185 = por %p183, %p184
    %p187 = scmp.ne.s32.totalorder %s170, %s186
    %p188 = scmp.eq.s32.totalorder %s21, 0
    %p189 = por %p187, %p188
    %s190 = ssub.s32 %s15, %s22
    %p191 = scmp.eq.s32.totalorder %s190, 0
    %s193 = sadd.s32 %s192, 1
    %s194 = scalar_select %p191, %s192, %s193
    %p197 = pneg %p191
    %p198 = scmp.eq.s32.totalorder %s15, 1
    %p199 = por %p197, %p198
    %p200 = scmp.ne.s32.totalorder %s192, %s195
    %p201 = scmp.eq.s32.totalorder %s15, 0
    %p202 = por %p200, %p201
    %p203 = scmp.ne.s32.totalorder %s192, %s195
    %p204 = scmp.eq.s32.totalorder %s20, 1
    %p205 = por %p203, %p204
    %p206 = scmp.ne.s32.totalorder %s195, %s196
    %p207 = scmp.eq.s32.totalorder %s20, 0
    %p208 = por %p206, %p207
    %p209 = scmp.ne.s32.totalorder %s195, %s196
    %p210 = scmp.eq.s32.totalorder %s21, 1
    %p211 = por %p209, %p210
    %p213 = scmp.ne.s32.totalorder %s196, %s212
    %p214 = scmp.eq.s32.totalorder %s21, 0
    %p215 = por %p213, %p214
    %s216 = ssub.s32 %s15, %s22
    %p217 = scmp.eq.s32.totalorder %s216, 0
    %s219 = sadd.s32 %s218, 1
    %s220 = scalar_select %p217, %s218, %s219
    %p223 = pneg %p217
    %p224 = scmp.eq.s32.totalorder %s15, 1
    %p225 = por %p223, %p224
    %p226 = scmp.ne.s32.totalorder %s218, %s221
    %p227 = scmp.eq.s32.totalorder %s15, 0
    %p228 = por %p226, %p227
    %p229 = scmp.ne.s32.totalorder %s218, %s221
    %p230 = scmp.eq.s32.totalorder %s20, 1
    %p231 = por %p229, %p230
    %p232 = scmp.ne.s32.totalorder %s221, %s222
    %p233 = scmp.eq.s32.totalorder %s20, 0
    %p234 = por %p232, %p233
    %p235 = scmp.ne.s32.totalorder %s221, %s222
    %p236 = scmp.eq.s32.totalorder %s21, 1
    %p237 = por %p235, %p236
    %p239 = scmp.ne.s32.totalorder %s222, %s238
    %p240 = scmp.eq.s32.totalorder %s21, 0
    %p241 = por %p239, %p240
    %p242 = scmp.le.s32.totalorder 1, %s15
    %p243 = scmp.lt.s32.totalorder %s15, 3
    %p244 = pnand %p242, %p243
    %p245 = pneg %p244
    // Predicated region
    $region9: #{incept_b_forward.2} parent=5 // pred_check
      _
    $region10: #{incept_b_forward.2} parent=5 // pred_check_branch
      %247 = sbr.rel (%p244) target = $region12
    $region11: #{incept_b_forward.2} parent=5 // pred_region
      %s248 = ssub.s32 %s15, 1
      // Predicated region
      $region13: #{incept_b_forward.2} parent=11 // pred_check
        %p249 = pneg %p62
      $region14: #{incept_b_forward.2} parent=11 // pred_check_branch
        %251 = sbr.rel (%p249) target = $region16
      $region15: #{incept_b_forward.2} parent=11 // pred_region
        _
      $region16: #{incept_b_forward.2} parent=11 // pred_fallthru
        _
      // Predicated region
      $region17: #{incept_b_forward.2} parent=11 // pred_check
        %p252 = pneg %p83
      $region18: #{incept_b_forward.2} parent=11 // pred_check_branch
        %254 = sbr.rel (%p252) target = $region20
      $region19: #{incept_b_forward.2} parent=11 // pred_region
        _
      $region20: #{incept_b_forward.2} parent=11 // pred_fallthru
        _
      // Predicated region
      $region21: #{incept_b_forward.2} parent=11 // pred_check
        %p255 = pneg %p104
      $region22: #{incept_b_forward.2} parent=11 // pred_check_branch
        %257 = sbr.rel (%p255) target = $region24
      $region23: #{incept_b_forward.2} parent=11 // pred_region
        _
      $region24: #{incept_b_forward.2} parent=11 // pred_fallthru
        _
    $region12: #{incept_b_forward.2} parent=5 // pred_fallthru
      _
    %p258 = scmp.lt.s32.totalorder %s15, 2
    // Predicated region
    $region25: #{incept_b_forward.2} parent=5 // pred_check
      %p259 = pneg %p258
    $region26: #{incept_b_forward.2} parent=5 // pred_check_branch
      %261 = sbr.rel (%p259) target = $region28
    $region27: #{incept_b_forward.2} parent=5 // pred_region
      // Predicated region
      $region29: #{incept_b_forward.2} parent=27 // pred_check
        %p262 = pneg %p35
      $region30: #{incept_b_forward.2} parent=27 // pred_check_branch
        %264 = sbr.rel (%p262) target = $region32
      $region31: #{incept_b_forward.2} parent=27 // pred_region
        %p265 = scmp.lt.s32.totalorder %s15, 1
        %s266 = scalar_select %p265, %s15, 1
        %s267 = smul.addr %s266, 32
        %s268 = smul.addr %s267, 8
        %s269 = scalar_lea.vmem %s0, %s268
      $region32: #{incept_b_forward.2} parent=27 // pred_fallthru
        _
    $region28: #{incept_b_forward.2} parent=5 // pred_fallthru
      _
    %p270 = scmp.le.s32.totalorder 1, %s15
    %p271 = scmp.lt.s32.totalorder %s15, 3
    %p272 = pnand %p270, %p271
    %p273 = pneg %p272
    // Predicated region
    $region33: #{incept_b_forward.2} parent=5 // pred_check
      _
    $region34: #{incept_b_forward.2} parent=5 // pred_check_branch
      %275 = sbr.rel (%p272) target = $region36
    $region35: #{incept_b_forward.2} parent=5 // pred_region
      %s276 = ssub.s32 %s15, 1
      %p277 = scmp.lt.s32.totalorder %s20, 1
      %s278 = scalar_select %p277, %s20, 1
      %s279 = smul.addr %s278, 32
      %s280 = smul.addr %s279, 8
      %s281 = scalar_lea.vmem %s0, %s280
      %p282 = pneg %p41
      %p283 = pneg %p38
      %p284 = pneg %p62
      %p285 = pneg %p59
      %p286 = pneg %p83
      %p287 = pneg %p80
      %p288 = pneg %p104
      %p289 = pneg %p101
      %p290 = pneg %p130
      %p291 = pneg %p127
      %p292 = scmp.lt.s32.totalorder %s20, 1
      %s293 = scalar_select %p292, %s20, 1
      %s294 = smul.addr %s293, 32
      %s295 = smul.addr %s294, 8
      %s296 = scalar_lea.vmem %s4, %s295
      %p297 = pneg %p156
      %p298 = pneg %p153
      %p299 = scmp.lt.s32.totalorder %s20, 1
      %s300 = scalar_select %p299, %s20, 1
      %s301 = scalar_lea.vmem %s5, %s300
      %p302 = pneg %p182
      %p303 = pneg %p179
      %p304 = scmp.lt.s32.totalorder %s20, 1
      %s305 = scalar_select %p304, %s20, 1
      %s306 = scalar_lea.vmem %s6, %s305
      %p307 = pneg %p208
      %p308 = pneg %p205
      %p309 = scmp.lt.s32.totalorder %s20, 1
      %s310 = scalar_select %p309, %s20, 1
      %s311 = scalar_lea.vmem %s7, %s310
      %p312 = pneg %p234
      %p313 = pneg %p231
      %p314 = scmp.lt.s32.totalorder %s20, 1
      %s315 = scalar_select %p314, %s20, 1
      %s316 = scalar_lea.vmem %s8, %s315
      %p317 = scmp.lt.s32.totalorder %s20, 1
      %s318 = scalar_select %p317, %s20, 1
      %s319 = smul.addr %s318, 32
      %s320 = smul.addr %s319, 8
      %s321 = scalar_lea.vmem %s0, %s320
      %p322 = scmp.lt.s32.totalorder %s20, 1
      %s323 = scalar_select %p322, %s20, 1
      %s324 = smul.addr %s323, 32
      %s325 = smul.addr %s324, 8
      %s326 = scalar_lea.vmem %s4, %s325
      %p327 = scmp.lt.s32.totalorder %s20, 1
      %s328 = scalar_select %p327, %s20, 1
      %s329 = scalar_lea.vmem %s5, %s328
      %p330 = scmp.lt.s32.totalorder %s20, 1
      %s331 = scalar_select %p330, %s20, 1
      %s332 = scalar_lea.vmem %s6, %s331
      %p333 = scmp.lt.s32.totalorder %s20, 1
      %s334 = scalar_select %p333, %s20, 1
      %s335 = scalar_lea.vmem %s7, %s334
      %p336 = scmp.lt.s32.totalorder %s20, 1
      %s337 = scalar_select %p336, %s20, 1
      %s338 = scalar_lea.vmem %s8, %s337
      %v339 = vld [vmem:[%s321] sm:$0xff]
      %v340 = vld [vmem:[%s321 + $0x8] sm:$0xff]
      %v341 = vld [vmem:[%s321 + $0x10] sm:$0xff]
      %v342 = vld [vmem:[%s321 + $0x18] sm:$0xff]
      %v343 = vld [vmem:[%s321 + $0x20] sm:$0xff]
      %v344 = vld [vmem:[%s321 + $0x28] sm:$0xff]
      %v345 = vld [vmem:[%s321 + $0x30] sm:$0xff]
      %v346 = vld [vmem:[%s321 + $0x38] sm:$0xff]
      %v347 = vld [vmem:[%s321 + $0x40] sm:$0xff]
      %v348 = vld [vmem:[%s321 + $0x48] sm:$0xff]
      %v349 = vld [vmem:[%s321 + $0x50] sm:$0xff]
      %v350 = vld [vmem:[%s321 + $0x58] sm:$0xff]
      %v351 = vld [vmem:[%s321 + $0x60] sm:$0xff]
      %v352 = vld [vmem:[%s321 + $0x68] sm:$0xff]
      %v353 = vld [vmem:[%s321 + $0x70] sm:$0xff]
      %v354 = vld [vmem:[%s321 + $0x78] sm:$0xff]
      %v355 = vld [vmem:[%s321 + $0x80] sm:$0xff]
      %v356 = vld [vmem:[%s321 + $0x88] sm:$0xff]
      %v357 = vld [vmem:[%s321 + $0x90] sm:$0xff]
      %v358 = vld [vmem:[%s321 + $0x98] sm:$0xff]
      %v359 = vld [vmem:[%s321 + $0xa0] sm:$0xff]
      %v360 = vld [vmem:[%s321 + $0xa8] sm:$0xff]
      %v361 = vld [vmem:[%s321 + $0xb0] sm:$0xff]
      %v362 = vld [vmem:[%s321 + $0xb8] sm:$0xff]
      %v363 = vld [vmem:[%s321 + $0xc0] sm:$0xff]
      %v364 = vld [vmem:[%s321 + $0xc8] sm:$0xff]
      %v365 = vld [vmem:[%s321 + $0xd0] sm:$0xff]
      %v366 = vld [vmem:[%s321 + $0xd8] sm:$0xff]
      %v367 = vld [vmem:[%s321 + $0xe0] sm:$0xff]
      %v368 = vld [vmem:[%s321 + $0xe8] sm:$0xff]
      %v369 = vld [vmem:[%s321 + $0xf0] sm:$0xff]
      %v370 = vld [vmem:[%s321 + $0xf8] sm:$0xff]
      %v371 = vld [vmem:[%s1] sm:$0xf]
      %vm372 = vcmask 31744
      %v374 = vsel %vm372, %v339, 0
      %v377 = vsel %vm372, %v340, 0
      %v380 = vsel %vm372, %v341, 0
      %v383 = vsel %vm372, %v342, 0
      %v386 = vsel %vm372, %v343, 0
      %v389 = vsel %vm372, %v344, 0
      %v392 = vsel %vm372, %v345, 0
      %v395 = vsel %vm372, %v346, 0
      %v398 = vsel %vm372, %v347, 0
      %v401 = vsel %vm372, %v348, 0
      %v404 = vsel %vm372, %v349, 0
      %v407 = vsel %vm372, %v350, 0
      %v410 = vsel %vm372, %v351, 0
      %v413 = vsel %vm372, %v352, 0
      %v416 = vsel %vm372, %v353, 0
      %v419 = vsel %vm372, %v354, 0
      %v422 = vsel %vm372, %v355, 0
      %v425 = vsel %vm372, %v356, 0
      %v428 = vsel %vm372, %v357, 0
      %v431 = vsel %vm372, %v358, 0
      %v434 = vsel %vm372, %v359, 0
      %v437 = vsel %vm372, %v360, 0
      %v440 = vsel %vm372, %v361, 0
      %v443 = vsel %vm372, %v362, 0
      %v446 = vsel %vm372, %v363, 0
      %v449 = vsel %vm372, %v364, 0
      %v452 = vsel %vm372, %v365, 0
      %v455 = vsel %vm372, %v366, 0
      %v458 = vsel %vm372, %v367, 0
      %v461 = vsel %vm372, %v368, 0
      %v464 = vsel %vm372, %v369, 0
      %v467 = vsel %vm372, %v370, 0
      %vm469 = vcmask 1043456
      %v471 = vsel %vm469, %v371, 0
      %473 = vmatpush.msra.mxu0 0.0
      %474 = vmatpush.msra.mxu0 0.0
      %475 = vmatpush.msra.mxu0 0.0
      %476 = vmatpush.msra.mxu0 0.0
      %477 = vmatpush.msra.mxu0 0.0
      %478 = vmatpush.msra.mxu0 0.0
      %479 = vmatpush.msra.mxu0 0.0
      %480 = vmatpush.msra.mxu0 0.0
      %481 = vmatpush.msra.mxu0 0.0
      %482 = vmatpush.msra.mxu0 0.0
      %483 = vmatpush.msra.mxu0 0.0
      %484 = vmatpush.msra.mxu0 0.0
      %485 = vmatpush.msra.mxu0 0.0
      %486 = vmatpush.msra.mxu0 0.0
      %487 = vmatpush.msra.mxu0 0.0
      %488 = vmatpush.msra.mxu0 %v471
      %489 = vmatmul.f32.gmra.mxu0 %v374
      %v490 = vpop.f32.mrf.mxu0
      %v491 = vadd.f32 0.0, %v490
      %492 = vmatmul.f32.gmra.mxu0 %v377
      %v493 = vpop.f32.mrf.mxu0
      %v494 = vadd.f32 0.0, %v493
      %495 = vmatmul.f32.gmra.mxu0 %v380
      %v496 = vpop.f32.mrf.mxu0
      %v497 = vadd.f32 0.0, %v496
      %498 = vmatmul.f32.gmra.mxu0 %v383
      %v499 = vpop.f32.mrf.mxu0
      %v500 = vadd.f32 0.0, %v499
      %501 = vmatmul.f32.gmra.mxu0 %v386
      %v502 = vpop.f32.mrf.mxu0
      %v503 = vadd.f32 0.0, %v502
      %504 = vmatmul.f32.gmra.mxu0 %v389
      %v505 = vpop.f32.mrf.mxu0
      %v506 = vadd.f32 0.0, %v505
      %507 = vmatmul.f32.gmra.mxu0 %v392
      %v508 = vpop.f32.mrf.mxu0
      %v509 = vadd.f32 0.0, %v508
      %510 = vmatmul.f32.gmra.mxu0 %v395
      %v511 = vpop.f32.mrf.mxu0
      %v512 = vadd.f32 0.0, %v511
      %513 = vmatmul.f32.gmra.mxu0 %v398
      %v514 = vpop.f32.mrf.mxu0
      %v515 = vadd.f32 0.0, %v514
      %516 = vmatmul.f32.gmra.mxu0 %v401
      %v517 = vpop.f32.mrf.mxu0
      %v518 = vadd.f32 0.0, %v517
      %519 = vmatmul.f32.gmra.mxu0 %v404
      %v520 = vpop.f32.mrf.mxu0
      %v521 = vadd.f32 0.0, %v520
      %522 = vmatmul.f32.gmra.mxu0 %v407
      %v523 = vpop.f32.mrf.mxu0
      %v524 = vadd.f32 0.0, %v523
      %525 = vmatmul.f32.gmra.mxu0 %v410
      %v526 = vpop.f32.mrf.mxu0
      %v527 = vadd.f32 0.0, %v526
      %528 = vmatmul.f32.gmra.mxu0 %v413
      %v529 = vpop.f32.mrf.mxu0
      %v530 = vadd.f32 0.0, %v529
      %531 = vmatmul.f32.gmra.mxu0 %v416
      %v532 = vpop.f32.mrf.mxu0
      %v533 = vadd.f32 0.0, %v532
      %534 = vmatmul.f32.gmra.mxu0 %v419
      %v535 = vpop.f32.mrf.mxu0
      %v536 = vadd.f32 0.0, %v535
      %537 = vmatmul.f32.gmra.mxu0 %v422
      %v538 = vpop.f32.mrf.mxu0
      %v539 = vadd.f32 0.0, %v538
      %540 = vmatmul.f32.gmra.mxu0 %v425
      %v541 = vpop.f32.mrf.mxu0
      %v542 = vadd.f32 0.0, %v541
      %543 = vmatmul.f32.gmra.mxu0 %v428
      %v544 = vpop.f32.mrf.mxu0
      %v545 = vadd.f32 0.0, %v544
      %546 = vmatmul.f32.gmra.mxu0 %v431
      %v547 = vpop.f32.mrf.mxu0
      %v548 = vadd.f32 0.0, %v547
      %549 = vmatmul.f32.gmra.mxu0 %v434
      %v550 = vpop.f32.mrf.mxu0
      %v551 = vadd.f32 0.0, %v550
      %552 = vmatmul.f32.gmra.mxu0 %v437
      %v553 = vpop.f32.mrf.mxu0
      %v554 = vadd.f32 0.0, %v553
      %555 = vmatmul.f32.gmra.mxu0 %v440
      %v556 = vpop.f32.mrf.mxu0
      %v557 = vadd.f32 0.0, %v556
      %558 = vmatmul.f32.gmra.mxu0 %v443
      %v559 = vpop.f32.mrf.mxu0
      %v560 = vadd.f32 0.0, %v559
      %561 = vmatmul.f32.gmra.mxu0 %v446
      %v562 = vpop.f32.mrf.mxu0
      %v563 = vadd.f32 0.0, %v562
      %564 = vmatmul.f32.gmra.mxu0 %v449
      %v565 = vpop.f32.mrf.mxu0
      %v566 = vadd.f32 0.0, %v565
      %567 = vmatmul.f32.gmra.mxu0 %v452
      %v568 = vpop.f32.mrf.mxu0
      %v569 = vadd.f32 0.0, %v568
      %570 = vmatmul.f32.gmra.mxu0 %v455
      %v571 = vpop.f32.mrf.mxu0
      %v572 = vadd.f32 0.0, %v571
      %573 = vmatmul.f32.gmra.mxu0 %v458
      %v574 = vpop.f32.mrf.mxu0
      %v575 = vadd.f32 0.0, %v574
      %576 = vmatmul.f32.gmra.mxu0 %v461
      %v577 = vpop.f32.mrf.mxu0
      %v578 = vadd.f32 0.0, %v577
      %579 = vmatmul.f32.gmra.mxu0 %v464
      %v580 = vpop.f32.mrf.mxu0
      %v581 = vadd.f32 0.0, %v580
      %582 = vmatmul.f32.gmra.mxu0 %v467
      %v583 = vpop.f32.mrf.mxu0
      %v584 = vadd.f32 0.0, %v583
      %585 = vdwg.mxu0
      %v586 = vmax.f32 %v491, 0.0
      %v587 = vmax.f32 %v494, 0.0
      %v588 = vmax.f32 %v497, 0.0
      %v589 = vmax.f32 %v500, 0.0
      %v590 = vmax.f32 %v503, 0.0
      %v591 = vmax.f32 %v506, 0.0
      %v592 = vmax.f32 %v509, 0.0
      %v593 = vmax.f32 %v512, 0.0
      %v594 = vmax.f32 %v515, 0.0
      %v595 = vmax.f32 %v518, 0.0
      %v596 = vmax.f32 %v521, 0.0
      %v597 = vmax.f32 %v524, 0.0
      %v598 = vmax.f32 %v527, 0.0
      %v599 = vmax.f32 %v530, 0.0
      %v600 = vmax.f32 %v533, 0.0
      %v601 = vmax.f32 %v536, 0.0
      %v602 = vmax.f32 %v539, 0.0
      %v603 = vmax.f32 %v542, 0.0
      %v604 = vmax.f32 %v545, 0.0
      %v605 = vmax.f32 %v548, 0.0
      %v606 = vmax.f32 %v551, 0.0
      %v607 = vmax.f32 %v554, 0.0
      %v608 = vmax.f32 %v557, 0.0
      %v609 = vmax.f32 %v560, 0.0
      %v610 = vmax.f32 %v563, 0.0
      %v611 = vmax.f32 %v566, 0.0
      %v612 = vmax.f32 %v569, 0.0
      %v613 = vmax.f32 %v572, 0.0
      %v614 = vmax.f32 %v575, 0.0
      %v615 = vmax.f32 %v578, 0.0
      %v616 = vmax.f32 %v581, 0.0
      %v617 = vmax.f32 %v584, 0.0
      %vm618 = vcmask 392192
      %v619 = vsel %vm618, %v586, 0.0
      %v620 = vsel %vm618, %v587, 0.0
      %v621 = vadd.f32 %v619, %v620
      %v622 = vsel %vm618, %v588, 0.0
      %v623 = vadd.f32 %v621, %v622
      %v624 = vsel %vm618, %v589, 0.0
      %v625 = vadd.f32 %v623, %v624
      %v626 = vsel %vm618, %v590, 0.0
      %v627 = vadd.f32 %v625, %v626
      %v628 = vsel %vm618, %v591, 0.0
      %v629 = vadd.f32 %v627, %v628
      %v630 = vsel %vm618, %v592, 0.0
      %v631 = vadd.f32 %v629, %v630
      %v632 = vsel %vm618, %v593, 0.0
      %v633 = vadd.f32 %v631, %v632
      %v634 = vsel %vm618, %v594, 0.0
      %v635 = vadd.f32 %v633, %v634
      %v636 = vsel %vm618, %v595, 0.0
      %v637 = vadd.f32 %v635, %v636
      %v638 = vsel %vm618, %v596, 0.0
      %v639 = vadd.f32 %v637, %v638
      %v640 = vsel %vm618, %v597, 0.0
      %v641 = vadd.f32 %v639, %v640
      %v642 = vsel %vm618, %v598, 0.0
      %v643 = vadd.f32 %v641, %v642
      %v644 = vsel %vm618, %v599, 0.0
      %v645 = vadd.f32 %v643, %v644
      %v646 = vsel %vm618, %v600, 0.0
      %v647 = vadd.f32 %v645, %v646
      %v648 = vsel %vm618, %v601, 0.0
      %v649 = vadd.f32 %v647, %v648
      %v650 = vsel %vm618, %v602, 0.0
      %v651 = vadd.f32 %v649, %v650
      %v652 = vsel %vm618, %v603, 0.0
      %v653 = vadd.f32 %v651, %v652
      %v654 = vsel %vm618, %v604, 0.0
      %v655 = vadd.f32 %v653, %v654
      %v656 = vsel %vm618, %v605, 0.0
      %v657 = vadd.f32 %v655, %v656
      %v658 = vsel %vm618, %v606, 0.0
      %v659 = vadd.f32 %v657, %v658
      %v660 = vsel %vm618, %v607, 0.0
      %v661 = vadd.f32 %v659, %v660
      %v662 = vsel %vm618, %v608, 0.0
      %v663 = vadd.f32 %v661, %v662
      %v664 = vsel %vm618, %v609, 0.0
      %v665 = vadd.f32 %v663, %v664
      %v666 = vsel %vm618, %v610, 0.0
      %v667 = vadd.f32 %v665, %v666
      %v668 = vsel %vm618, %v611, 0.0
      %v669 = vadd.f32 %v667, %v668
      %v670 = vsel %vm618, %v612, 0.0
      %v671 = vadd.f32 %v669, %v670
      %v672 = vsel %vm618, %v613, 0.0
      %v673 = vadd.f32 %v671, %v672
      %v674 = vsel %vm618, %v614, 0.0
      %v675 = vadd.f32 %v673, %v674
      %v676 = vsel %vm618, %v615, 0.0
      %v677 = vadd.f32 %v675, %v676
      %v678 = vsel %vm618, %v616, 0.0
      %v679 = vadd.f32 %v677, %v678
      %v680 = vsel %vm618, %v617, 0.0
      %v681 = vadd.f32 %v679, %v680
      %v682 = vrot.slane %v681, 4
      %v683 = vadd.f32 %v681, %v682
      %v684 = vrot.slane %v683, 2
      %v685 = vadd.f32 %v683, %v684
      %v686 = vrot.slane %v685, 1
      %v687 = vadd.f32 %v685, %v686
      %vm688 = vcmask 385024
      %689 = vst.msk [vmem:[%s329] sm:$0x1] %vm688, %v687
      %v690 = vmul.f32 %v586, %v586
      %v691 = vmul.f32 %v587, %v587
      %v692 = vmul.f32 %v588, %v588
      %v693 = vmul.f32 %v589, %v589
      %v694 = vmul.f32 %v590, %v590
      %v695 = vmul.f32 %v591, %v591
      %v696 = vmul.f32 %v592, %v592
      %v697 = vmul.f32 %v593, %v593
      %v698 = vmul.f32 %v594, %v594
      %v699 = vmul.f32 %v595, %v595
      %v700 = vmul.f32 %v596, %v596
      %v701 = vmul.f32 %v597, %v597
      %v702 = vmul.f32 %v598, %v598
      %v703 = vmul.f32 %v599, %v599
      %v704 = vmul.f32 %v600, %v600
      %v705 = vmul.f32 %v601, %v601
      %v706 = vmul.f32 %v602, %v602
      %v707 = vmul.f32 %v603, %v603
      %v708 = vmul.f32 %v604, %v604
      %v709 = vmul.f32 %v605, %v605
      %v710 = vmul.f32 %v606, %v606
      %v711 = vmul.f32 %v607, %v607
      %v712 = vmul.f32 %v608, %v608
      %v713 = vmul.f32 %v609, %v609
      %v714 = vmul.f32 %v610, %v610
      %v715 = vmul.f32 %v611, %v611
      %v716 = vmul.f32 %v612, %v612
      %v717 = vmul.f32 %v613, %v613
      %v718 = vmul.f32 %v614, %v614
      %v719 = vmul.f32 %v615, %v615
      %v720 = vmul.f32 %v616, %v616
      %v721 = vmul.f32 %v617, %v617
      %v722 = vsel %vm618, %v690, 0.0
      %v723 = vsel %vm618, %v691, 0.0
      %v724 = vadd.f32 %v722, %v723
      %v725 = vsel %vm618, %v692, 0.0
      %v726 = vadd.f32 %v724, %v725
      %v727 = vsel %vm618, %v693, 0.0
      %v728 = vadd.f32 %v726, %v727
      %v729 = vsel %vm618, %v694, 0.0
      %v730 = vadd.f32 %v728, %v729
      %v731 = vsel %vm618, %v695, 0.0
      %v732 = vadd.f32 %v730, %v731
      %v733 = vsel %vm618, %v696, 0.0
      %v734 = vadd.f32 %v732, %v733
      %v735 = vsel %vm618, %v697, 0.0
      %v736 = vadd.f32 %v734, %v735
      %v737 = vsel %vm618, %v698, 0.0
      %v738 = vadd.f32 %v736, %v737
      %v739 = vsel %vm618, %v699, 0.0
      %v740 = vadd.f32 %v738, %v739
      %v741 = vsel %vm618, %v700, 0.0
      %v742 = vadd.f32 %v740, %v741
      %v743 = vsel %vm618, %v701, 0.0
      %v744 = vadd.f32 %v742, %v743
      %v745 = vsel %vm618, %v702, 0.0
      %v746 = vadd.f32 %v744, %v745
      %v747 = vsel %vm618, %v703, 0.0
      %v748 = vadd.f32 %v746, %v747
      %v749 = vsel %vm618, %v704, 0.0
      %v750 = vadd.f32 %v748, %v749
      %v751 = vsel %vm618, %v705, 0.0
      %v752 = vadd.f32 %v750, %v751
      %v753 = vsel %vm618, %v706, 0.0
      %v754 = vadd.f32 %v752, %v753
      %v755 = vsel %vm618, %v707, 0.0
      %v756 = vadd.f32 %v754, %v755
      %v757 = vsel %vm618, %v708, 0.0
      %v758 = vadd.f32 %v756, %v757
      %v759 = vsel %vm618, %v709, 0.0
      %v760 = vadd.f32 %v758, %v759
      %v761 = vsel %vm618, %v710, 0.0
      %v762 = vadd.f32 %v760, %v761
      %v763 = vsel %vm618, %v711, 0.0
      %v764 = vadd.f32 %v762, %v763
      %v765 = vsel %vm618, %v712, 0.0
      %v766 = vadd.f32 %v764, %v765
      %v767 = vsel %vm618, %v713, 0.0
      %v768 = vadd.f32 %v766, %v767
      %v769 = vsel %vm618, %v714, 0.0
      %v770 = vadd.f32 %v768, %v769
      %v771 = vsel %vm618, %v715, 0.0
      %v772 = vadd.f32 %v770, %v771
      %v773 = vsel %vm618, %v716, 0.0
      %v774 = vadd.f32 %v772, %v773
      %v775 = vsel %vm618, %v717, 0.0
      %v776 = vadd.f32 %v774, %v775
      %v777 = vsel %vm618, %v718, 0.0
      %v778 = vadd.f32 %v776, %v777
      %v779 = vsel %vm618, %v719, 0.0
      %v780 = vadd.f32 %v778, %v779
      %v781 = vsel %vm618, %v720, 0.0
      %v782 = vadd.f32 %v780, %v781
      %v783 = vsel %vm618, %v721, 0.0
      %v784 = vadd.f32 %v782, %v783
      %v785 = vrot.slane %v784, 4
      %v786 = vadd.f32 %v784, %v785
      %v787 = vrot.slane %v786, 2
      %v788 = vadd.f32 %v786, %v787
      %v789 = vrot.slane %v788, 1
      %v790 = vadd.f32 %v788, %v789
      %791 = vst.msk [vmem:[%s332] sm:$0x1] %vm688, %v790
      %vm792 = vcmask 261120
      %793 = vst.msk [vmem:[#allocation2] sm:$0xff] %vm792, 0.0
      %794 = vst.msk [vmem:[#allocation2 + $0x8] sm:$0xff] %vm792, 0.0
      %795 = vst.msk [vmem:[#allocation2 + $0x10] sm:$0xff] %vm792, 0.0
      %796 = vst.msk [vmem:[#allocation2 + $0x18] sm:$0xff] %vm792, 0.0
      %797 = vst.msk [vmem:[#allocation2 + $0x20] sm:$0xff] %vm792, 0.0
      %798 = vst.msk [vmem:[#allocation2 + $0x28] sm:$0xff] %vm792, 0.0
      %s799 = scalar_lea.vmem [#allocation2], 304
      %800 = vst.msk [vmem:[%s799] sm:$0xff] %vm792, 0.0
      %801 = vst.msk [vmem:[%s799 + $0x8] sm:$0xff] %vm792, 0.0
      %802 = vst.msk [vmem:[%s799 + $0x10] sm:$0xff] %vm792, 0.0
      %803 = vst.msk [vmem:[%s799 + $0x18] sm:$0xff] %vm792, 0.0
      %804 = vst.msk [vmem:[%s799 + $0x20] sm:$0xff] %vm792, 0.0
      %805 = vst.msk [vmem:[%s799 + $0x28] sm:$0xff] %vm792, 0.0
      %838 = vrot.lane.b32.xlu0 %v586, 80
      %v839 = vpop.permute.xlu0 %838
      %840 = vrot.lane.b32.xlu0 %v587, 80
      %v841 = vpop.permute.xlu0 %840
      %842 = vrot.lane.b32.xlu0 %v588, 80
      %v843 = vpop.permute.xlu0 %842
      %844 = vrot.lane.b32.xlu0 %v589, 80
      %v845 = vpop.permute.xlu0 %844
      %846 = vrot.lane.b32.xlu0 %v590, 80
      %v847 = vpop.permute.xlu0 %846
      %848 = vrot.lane.b32.xlu0 %v591, 80
      %v849 = vpop.permute.xlu0 %848
      %850 = vrot.lane.b32.xlu0 %v592, 80
      %v851 = vpop.permute.xlu0 %850
      %852 = vrot.lane.b32.xlu0 %v593, 80
      %v853 = vpop.permute.xlu0 %852
      %854 = vrot.lane.b32.xlu0 %v594, 80
      %v855 = vpop.permute.xlu0 %854
      %856 = vrot.lane.b32.xlu0 %v595, 80
      %v857 = vpop.permute.xlu0 %856
      %858 = vrot.lane.b32.xlu0 %v596, 80
      %v859 = vpop.permute.xlu0 %858
      %860 = vrot.lane.b32.xlu0 %v597, 80
      %v861 = vpop.permute.xlu0 %860
      %862 = vrot.lane.b32.xlu0 %v598, 80
      %v863 = vpop.permute.xlu0 %862
      %864 = vrot.lane.b32.xlu0 %v599, 80
      %v865 = vpop.permute.xlu0 %864
      %866 = vrot.lane.b32.xlu0 %v600, 80
      %v867 = vpop.permute.xlu0 %866
      %868 = vrot.lane.b32.xlu0 %v601, 80
      %v869 = vpop.permute.xlu0 %868
      %870 = vrot.lane.b32.xlu0 %v602, 80
      %v871 = vpop.permute.xlu0 %870
      %872 = vrot.lane.b32.xlu0 %v603, 80
      %v873 = vpop.permute.xlu0 %872
      %874 = vrot.lane.b32.xlu0 %v604, 80
      %v875 = vpop.permute.xlu0 %874
      %876 = vrot.lane.b32.xlu0 %v605, 80
      %v877 = vpop.permute.xlu0 %876
      %878 = vrot.lane.b32.xlu0 %v606, 80
      %v879 = vpop.permute.xlu0 %878
      %880 = vrot.lane.b32.xlu0 %v607, 80
      %v881 = vpop.permute.xlu0 %880
      %882 = vrot.lane.b32.xlu0 %v608, 80
      %v883 = vpop.permute.xlu0 %882
      %884 = vrot.lane.b32.xlu0 %v609, 80
      %v885 = vpop.permute.xlu0 %884
      %886 = vrot.lane.b32.xlu0 %v610, 80
      %v887 = vpop.permute.xlu0 %886
      %888 = vrot.lane.b32.xlu0 %v611, 80
      %v889 = vpop.permute.xlu0 %888
      %890 = vrot.lane.b32.xlu0 %v612, 80
      %v891 = vpop.permute.xlu0 %890
      %892 = vrot.lane.b32.xlu0 %v613, 80
      %v893 = vpop.permute.xlu0 %892
      %894 = vrot.lane.b32.xlu0 %v614, 80
      %v895 = vpop.permute.xlu0 %894
      %896 = vrot.lane.b32.xlu0 %v615, 80
      %v897 = vpop.permute.xlu0 %896
      %898 = vrot.lane.b32.xlu0 %v616, 80
      %v899 = vpop.permute.xlu0 %898
      %900 = vrot.lane.b32.xlu0 %v617, 80
      %v901 = vpop.permute.xlu0 %900
      %s934 = scalar_lea.vmem [#allocation2], 48
      %935 = vst.msk [vmem:[%s934] sm:$0xff] %vm792, %v839
      %936 = vst.msk [vmem:[%s934 + $0x8] sm:$0xff] %vm792, %v841
      %937 = vst.msk [vmem:[%s934 + $0x10] sm:$0xff] %vm792, %v843
      %938 = vst.msk [vmem:[%s934 + $0x18] sm:$0xff] %vm792, %v845
      %939 = vst.msk [vmem:[%s934 + $0x20] sm:$0xff] %vm792, %v847
      %940 = vst.msk [vmem:[%s934 + $0x28] sm:$0xff] %vm792, %v849
      %941 = vst.msk [vmem:[%s934 + $0x30] sm:$0xff] %vm792, %v851
      %942 = vst.msk [vmem:[%s934 + $0x38] sm:$0xff] %vm792, %v853
      %943 = vst.msk [vmem:[%s934 + $0x40] sm:$0xff] %vm792, %v855
      %944 = vst.msk [vmem:[%s934 + $0x48] sm:$0xff] %vm792, %v857
      %945 = vst.msk [vmem:[%s934 + $0x50] sm:$0xff] %vm792, %v859
      %946 = vst.msk [vmem:[%s934 + $0x58] sm:$0xff] %vm792, %v861
      %947 = vst.msk [vmem:[%s934 + $0x60] sm:$0xff] %vm792, %v863
      %948 = vst.msk [vmem:[%s934 + $0x68] sm:$0xff] %vm792, %v865
      %949 = vst.msk [vmem:[%s934 + $0x70] sm:$0xff] %vm792, %v867
      %950 = vst.msk [vmem:[%s934 + $0x78] sm:$0xff] %vm792, %v869
      %951 = vst.msk [vmem:[%s934 + $0x80] sm:$0xff] %vm792, %v871
      %952 = vst.msk [vmem:[%s934 + $0x88] sm:$0xff] %vm792, %v873
      %953 = vst.msk [vmem:[%s934 + $0x90] sm:$0xff] %vm792, %v875
      %954 = vst.msk [vmem:[%s934 + $0x98] sm:$0xff] %vm792, %v877
      %955 = vst.msk [vmem:[%s934 + $0xa0] sm:$0xff] %vm792, %v879
      %956 = vst.msk [vmem:[%s934 + $0xa8] sm:$0xff] %vm792, %v881
      %957 = vst.msk [vmem:[%s934 + $0xb0] sm:$0xff] %vm792, %v883
      %958 = vst.msk [vmem:[%s934 + $0xb8] sm:$0xff] %vm792, %v885
      %959 = vst.msk [vmem:[%s934 + $0xc0] sm:$0xff] %vm792, %v887
      %960 = vst.msk [vmem:[%s934 + $0xc8] sm:$0xff] %vm792, %v889
      %961 = vst.msk [vmem:[%s934 + $0xd0] sm:$0xff] %vm792, %v891
      %962 = vst.msk [vmem:[%s934 + $0xd8] sm:$0xff] %vm792, %v893
      %963 = vst.msk [vmem:[%s934 + $0xe0] sm:$0xff] %vm792, %v895
      %964 = vst.msk [vmem:[%s934 + $0xe8] sm:$0xff] %vm792, %v897
      %965 = vst.msk [vmem:[%s934 + $0xf0] sm:$0xff] %vm792, %v899
      %966 = vst.msk [vmem:[%s934 + $0xf8] sm:$0xff] %vm792, %v901
      %v967 = vld [vmem:[#allocation2] sm:$0xff]
      %v968 = vld [vmem:[#allocation2 + $0x8] sm:$0xff]
      %v969 = vld [vmem:[#allocation2 + $0x10] sm:$0xff]
      %v970 = vld [vmem:[#allocation2 + $0x18] sm:$0xff]
      %v971 = vld [vmem:[#allocation2 + $0x20] sm:$0xff]
      %v972 = vld [vmem:[#allocation2 + $0x28] sm:$0xff]
      %v973 = vld [vmem:[#allocation2 + $0x30] sm:$0xff]
      %v974 = vld [vmem:[#allocation2 + $0x38] sm:$0xff]
      %v975 = vld [vmem:[#allocation2 + $0x40] sm:$0xff]
      %v976 = vld [vmem:[#allocation2 + $0x48] sm:$0xff]
      %v977 = vld [vmem:[#allocation2 + $0x50] sm:$0xff]
      %v978 = vld [vmem:[#allocation2 + $0x58] sm:$0xff]
      %v979 = vld [vmem:[#allocation2 + $0x60] sm:$0xff]
      %v980 = vld [vmem:[#allocation2 + $0x68] sm:$0xff]
      %v981 = vld [vmem:[#allocation2 + $0x70] sm:$0xff]
      %v982 = vld [vmem:[#allocation2 + $0x78] sm:$0xff]
      %v983 = vld [vmem:[#allocation2 + $0x80] sm:$0xff]
      %v984 = vld [vmem:[#allocation2 + $0x88] sm:$0xff]
      %v985 = vld [vmem:[#allocation2 + $0x90] sm:$0xff]
      %v986 = vld [vmem:[#allocation2 + $0x98] sm:$0xff]
      %v987 = vld [vmem:[#allocation2 + $0xa0] sm:$0xff]
      %v988 = vld [vmem:[#allocation2 + $0xa8] sm:$0xff]
      %v989 = vld [vmem:[#allocation2 + $0xb0] sm:$0xff]
      %v990 = vld [vmem:[#allocation2 + $0xb8] sm:$0xff]
      %v991 = vld [vmem:[#allocation2 + $0xc0] sm:$0xff]
      %v992 = vld [vmem:[#allocation2 + $0xc8] sm:$0xff]
      %v993 = vld [vmem:[#allocation2 + $0xd0] sm:$0xff]
      %v994 = vld [vmem:[#allocation2 + $0xd8] sm:$0xff]
      %v995 = vld [vmem:[#allocation2 + $0xe0] sm:$0xff]
      %v996 = vld [vmem:[#allocation2 + $0xe8] sm:$0xff]
      %v997 = vld [vmem:[#allocation2 + $0xf0] sm:$0xff]
      %v998 = vld [vmem:[#allocation2 + $0xf8] sm:$0xff]
      %s999 = scalar_lea.vmem [#allocation2], 16
      %v1000 = vld [vmem:[%s999] sm:$0xff]
      %v1001 = vld [vmem:[%s999 + $0x8] sm:$0xff]
      %v1002 = vld [vmem:[%s999 + $0x10] sm:$0xff]
      %v1003 = vld [vmem:[%s999 + $0x18] sm:$0xff]
      %v1004 = vld [vmem:[%s999 + $0x20] sm:$0xff]
      %v1005 = vld [vmem:[%s999 + $0x28] sm:$0xff]
      %v1006 = vld [vmem:[%s999 + $0x30] sm:$0xff]
      %v1007 = vld [vmem:[%s999 + $0x38] sm:$0xff]
      %v1008 = vld [vmem:[%s999 + $0x40] sm:$0xff]
      %v1009 = vld [vmem:[%s999 + $0x48] sm:$0xff]
      %v1010 = vld [vmem:[%s999 + $0x50] sm:$0xff]
      %v1011 = vld [vmem:[%s999 + $0x58] sm:$0xff]
      %v1012 = vld [vmem:[%s999 + $0x60] sm:$0xff]
      %v1013 = vld [vmem:[%s999 + $0x68] sm:$0xff]
      %v1014 = vld [vmem:[%s999 + $0x70] sm:$0xff]
      %v1015 = vld [vmem:[%s999 + $0x78] sm:$0xff]
      %v1016 = vld [vmem:[%s999 + $0x80] sm:$0xff]
      %v1017 = vld [vmem:[%s999 + $0x88] sm:$0xff]
      %v1018 = vld [vmem:[%s999 + $0x90] sm:$0xff]
      %v1019 = vld [vmem:[%s999 + $0x98] sm:$0xff]
      %v1020 = vld [vmem:[%s999 + $0xa0] sm:$0xff]
      %v1021 = vld [vmem:[%s999 + $0xa8] sm:$0xff]
      %v1022 = vld [vmem:[%s999 + $0xb0] sm:$0xff]
      %v1023 = vld [vmem:[%s999 + $0xb8] sm:$0xff]
      %v1024 = vld [vmem:[%s999 + $0xc0] sm:$0xff]
      %v1025 = vld [vmem:[%s999 + $0xc8] sm:$0xff]
      %v1026 = vld [vmem:[%s999 + $0xd0] sm:$0xff]
      %v1027 = vld [vmem:[%s999 + $0xd8] sm:$0xff]
      %v1028 = vld [vmem:[%s999 + $0xe0] sm:$0xff]
      %v1029 = vld [vmem:[%s999 + $0xe8] sm:$0xff]
      %v1030 = vld [vmem:[%s999 + $0xf0] sm:$0xff]
      %v1031 = vld [vmem:[%s999 + $0xf8] sm:$0xff]
      %s1032 = scalar_lea.vmem [#allocation2], 32
      %v1033 = vld [vmem:[%s1032] sm:$0xff]
      %v1034 = vld [vmem:[%s1032 + $0x8] sm:$0xff]
      %v1035 = vld [vmem:[%s1032 + $0x10] sm:$0xff]
      %v1036 = vld [vmem:[%s1032 + $0x18] sm:$0xff]
      %v1037 = vld [vmem:[%s1032 + $0x20] sm:$0xff]
      %v1038 = vld [vmem:[%s1032 + $0x28] sm:$0xff]
      %v1039 = vld [vmem:[%s1032 + $0x30] sm:$0xff]
      %v1040 = vld [vmem:[%s1032 + $0x38] sm:$0xff]
      %v1041 = vld [vmem:[%s1032 + $0x40] sm:$0xff]
      %v1042 = vld [vmem:[%s1032 + $0x48] sm:$0xff]
      %v1043 = vld [vmem:[%s1032 + $0x50] sm:$0xff]
      %v1044 = vld [vmem:[%s1032 + $0x58] sm:$0xff]
      %v1045 = vld [vmem:[%s1032 + $0x60] sm:$0xff]
      %v1046 = vld [vmem:[%s1032 + $0x68] sm:$0xff]
      %v1047 = vld [vmem:[%s1032 + $0x70] sm:$0xff]
      %v1048 = vld [vmem:[%s1032 + $0x78] sm:$0xff]
      %v1049 = vld [vmem:[%s1032 + $0x80] sm:$0xff]
      %v1050 = vld [vmem:[%s1032 + $0x88] sm:$0xff]
      %v1051 = vld [vmem:[%s1032 + $0x90] sm:$0xff]
      %v1052 = vld [vmem:[%s1032 + $0x98] sm:$0xff]
      %v1053 = vld [vmem:[%s1032 + $0xa0] sm:$0xff]
      %v1054 = vld [vmem:[%s1032 + $0xa8] sm:$0xff]
      %v1055 = vld [vmem:[%s1032 + $0xb0] sm:$0xff]
      %v1056 = vld [vmem:[%s1032 + $0xb8] sm:$0xff]
      %v1057 = vld [vmem:[%s1032 + $0xc0] sm:$0xff]
      %v1058 = vld [vmem:[%s1032 + $0xc8] sm:$0xff]
      %v1059 = vld [vmem:[%s1032 + $0xd0] sm:$0xff]
      %v1060 = vld [vmem:[%s1032 + $0xd8] sm:$0xff]
      %v1061 = vld [vmem:[%s1032 + $0xe0] sm:$0xff]
      %v1062 = vld [vmem:[%s1032 + $0xe8] sm:$0xff]
      %v1063 = vld [vmem:[%s1032 + $0xf0] sm:$0xff]
      %v1064 = vld [vmem:[%s1032 + $0xf8] sm:$0xff]
      %v1065 = vld [vmem:[%s934] sm:$0xff]
      %v1066 = vld [vmem:[%s934 + $0x8] sm:$0xff]
      %v1067 = vld [vmem:[%s934 + $0x10] sm:$0xff]
      %v1068 = vld [vmem:[%s934 + $0x18] sm:$0xff]
      %v1069 = vld [vmem:[%s934 + $0x20] sm:$0xff]
      %v1070 = vld [vmem:[%s934 + $0x28] sm:$0xff]
      %v1071 = vld [vmem:[%s934 + $0x30] sm:$0xff]
      %v1072 = vld [vmem:[%s934 + $0x38] sm:$0xff]
      %v1073 = vld [vmem:[%s934 + $0x40] sm:$0xff]
      %v1074 = vld [vmem:[%s934 + $0x48] sm:$0xff]
      %v1075 = vld [vmem:[%s934 + $0x50] sm:$0xff]
      %v1076 = vld [vmem:[%s934 + $0x58] sm:$0xff]
      %v1077 = vld [vmem:[%s934 + $0x60] sm:$0xff]
      %v1078 = vld [vmem:[%s934 + $0x68] sm:$0xff]
      %v1079 = vld [vmem:[%s934 + $0x70] sm:$0xff]
      %v1080 = vld [vmem:[%s934 + $0x78] sm:$0xff]
      %v1081 = vld [vmem:[%s934 + $0x80] sm:$0xff]
      %v1082 = vld [vmem:[%s934 + $0x88] sm:$0xff]
      %v1083 = vld [vmem:[%s934 + $0x90] sm:$0xff]
      %v1084 = vld [vmem:[%s934 + $0x98] sm:$0xff]
      %v1085 = vld [vmem:[%s934 + $0xa0] sm:$0xff]
      %v1086 = vld [vmem:[%s934 + $0xa8] sm:$0xff]
      %v1087 = vld [vmem:[%s934 + $0xb0] sm:$0xff]
      %v1088 = vld [vmem:[%s934 + $0xb8] sm:$0xff]
      %v1089 = vld [vmem:[%s934 + $0xc0] sm:$0xff]
      %v1090 = vld [vmem:[%s934 + $0xc8] sm:$0xff]
      %v1091 = vld [vmem:[%s934 + $0xd0] sm:$0xff]
      %v1092 = vld [vmem:[%s934 + $0xd8] sm:$0xff]
      %v1093 = vld [vmem:[%s934 + $0xe0] sm:$0xff]
      %v1094 = vld [vmem:[%s934 + $0xe8] sm:$0xff]
      %v1095 = vld [vmem:[%s934 + $0xf0] sm:$0xff]
      %v1096 = vld [vmem:[%s934 + $0xf8] sm:$0xff]
      %s1097 = scalar_lea.vmem [#allocation2], 64
      %v1098 = vld [vmem:[%s1097] sm:$0xff]
      %v1099 = vld [vmem:[%s1097 + $0x8] sm:$0xff]
      %v1100 = vld [vmem:[%s1097 + $0x10] sm:$0xff]
      %v1101 = vld [vmem:[%s1097 + $0x18] sm:$0xff]
      %v1102 = vld [vmem:[%s1097 + $0x20] sm:$0xff]
      %v1103 = vld [vmem:[%s1097 + $0x28] sm:$0xff]
      %v1104 = vld [vmem:[%s1097 + $0x30] sm:$0xff]
      %v1105 = vld [vmem:[%s1097 + $0x38] sm:$0xff]
      %v1106 = vld [vmem:[%s1097 + $0x40] sm:$0xff]
      %v1107 = vld [vmem:[%s1097 + $0x48] sm:$0xff]
      %v1108 = vld [vmem:[%s1097 + $0x50] sm:$0xff]
      %v1109 = vld [vmem:[%s1097 + $0x58] sm:$0xff]
      %v1110 = vld [vmem:[%s1097 + $0x60] sm:$0xff]
      %v1111 = vld [vmem:[%s1097 + $0x68] sm:$0xff]
      %v1112 = vld [vmem:[%s1097 + $0x70] sm:$0xff]
      %v1113 = vld [vmem:[%s1097 + $0x78] sm:$0xff]
      %v1114 = vld [vmem:[%s1097 + $0x80] sm:$0xff]
      %v1115 = vld [vmem:[%s1097 + $0x88] sm:$0xff]
      %v1116 = vld [vmem:[%s1097 + $0x90] sm:$0xff]
      %v1117 = vld [vmem:[%s1097 + $0x98] sm:$0xff]
      %v1118 = vld [vmem:[%s1097 + $0xa0] sm:$0xff]
      %v1119 = vld [vmem:[%s1097 + $0xa8] sm:$0xff]
      %v1120 = vld [vmem:[%s1097 + $0xb0] sm:$0xff]
      %v1121 = vld [vmem:[%s1097 + $0xb8] sm:$0xff]
      %v1122 = vld [vmem:[%s1097 + $0xc0] sm:$0xff]
      %v1123 = vld [vmem:[%s1097 + $0xc8] sm:$0xff]
      %v1124 = vld [vmem:[%s1097 + $0xd0] sm:$0xff]
      %v1125 = vld [vmem:[%s1097 + $0xd8] sm:$0xff]
      %v1126 = vld [vmem:[%s1097 + $0xe0] sm:$0xff]
      %v1127 = vld [vmem:[%s1097 + $0xe8] sm:$0xff]
      %v1128 = vld [vmem:[%s1097 + $0xf0] sm:$0xff]
      %v1129 = vld [vmem:[%s1097 + $0xf8] sm:$0xff]
      %s1130 = scalar_lea.vmem [#allocation2], 80
      %v1131 = vld [vmem:[%s1130] sm:$0xff]
      %v1132 = vld [vmem:[%s1130 + $0x8] sm:$0xff]
      %v1133 = vld [vmem:[%s1130 + $0x10] sm:$0xff]
      %v1134 = vld [vmem:[%s1130 + $0x18] sm:$0xff]
      %v1135 = vld [vmem:[%s1130 + $0x20] sm:$0xff]
      %v1136 = vld [vmem:[%s1130 + $0x28] sm:$0xff]
      %v1137 = vld [vmem:[%s1130 + $0x30] sm:$0xff]
      %v1138 = vld [vmem:[%s1130 + $0x38] sm:$0xff]
      %v1139 = vld [vmem:[%s1130 + $0x40] sm:$0xff]
      %v1140 = vld [vmem:[%s1130 + $0x48] sm:$0xff]
      %v1141 = vld [vmem:[%s1130 + $0x50] sm:$0xff]
      %v1142 = vld [vmem:[%s1130 + $0x58] sm:$0xff]
      %v1143 = vld [vmem:[%s1130 + $0x60] sm:$0xff]
      %v1144 = vld [vmem:[%s1130 + $0x68] sm:$0xff]
      %v1145 = vld [vmem:[%s1130 + $0x70] sm:$0xff]
      %v1146 = vld [vmem:[%s1130 + $0x78] sm:$0xff]
      %v1147 = vld [vmem:[%s1130 + $0x80] sm:$0xff]
      %v1148 = vld [vmem:[%s1130 + $0x88] sm:$0xff]
      %v1149 = vld [vmem:[%s1130 + $0x90] sm:$0xff]
      %v1150 = vld [vmem:[%s1130 + $0x98] sm:$0xff]
      %v1151 = vld [vmem:[%s1130 + $0xa0] sm:$0xff]
      %v1152 = vld [vmem:[%s1130 + $0xa8] sm:$0xff]
      %v1153 = vld [vmem:[%s1130 + $0xb0] sm:$0xff]
      %v1154 = vld [vmem:[%s1130 + $0xb8] sm:$0xff]
      %v1155 = vld [vmem:[%s1130 + $0xc0] sm:$0xff]
      %v1156 = vld [vmem:[%s1130 + $0xc8] sm:$0xff]
      %v1157 = vld [vmem:[%s1130 + $0xd0] sm:$0xff]
      %v1158 = vld [vmem:[%s1130 + $0xd8] sm:$0xff]
      %v1159 = vld [vmem:[%s1130 + $0xe0] sm:$0xff]
      %v1160 = vld [vmem:[%s1130 + $0xe8] sm:$0xff]
      %v1161 = vld [vmem:[%s1130 + $0xf0] sm:$0xff]
      %v1162 = vld [vmem:[%s1130 + $0xf8] sm:$0xff]
      %s1163 = scalar_lea.vmem [#allocation2], 96
      %v1164 = vld [vmem:[%s1163] sm:$0xff]
      %v1165 = vld [vmem:[%s1163 + $0x8] sm:$0xff]
      %v1166 = vld [vmem:[%s1163 + $0x10] sm:$0xff]
      %v1167 = vld [vmem:[%s1163 + $0x18] sm:$0xff]
      %v1168 = vld [vmem:[%s1163 + $0x20] sm:$0xff]
      %v1169 = vld [vmem:[%s1163 + $0x28] sm:$0xff]
      %v1170 = vld [vmem:[%s1163 + $0x30] sm:$0xff]
      %v1171 = vld [vmem:[%s1163 + $0x38] sm:$0xff]
      %v1172 = vld [vmem:[%s1163 + $0x40] sm:$0xff]
      %v1173 = vld [vmem:[%s1163 + $0x48] sm:$0xff]
      %v1174 = vld [vmem:[%s1163 + $0x50] sm:$0xff]
      %v1175 = vld [vmem:[%s1163 + $0x58] sm:$0xff]
      %v1176 = vld [vmem:[%s1163 + $0x60] sm:$0xff]
      %v1177 = vld [vmem:[%s1163 + $0x68] sm:$0xff]
      %v1178 = vld [vmem:[%s1163 + $0x70] sm:$0xff]
      %v1179 = vld [vmem:[%s1163 + $0x78] sm:$0xff]
      %v1180 = vld [vmem:[%s1163 + $0x80] sm:$0xff]
      %v1181 = vld [vmem:[%s1163 + $0x88] sm:$0xff]
      %v1182 = vld [vmem:[%s1163 + $0x90] sm:$0xff]
      %v1183 = vld [vmem:[%s1163 + $0x98] sm:$0xff]
      %v1184 = vld [vmem:[%s1163 + $0xa0] sm:$0xff]
      %v1185 = vld [vmem:[%s1163 + $0xa8] sm:$0xff]
      %v1186 = vld [vmem:[%s1163 + $0xb0] sm:$0xff]
      %v1187 = vld [vmem:[%s1163 + $0xb8] sm:$0xff]
      %v1188 = vld [vmem:[%s1163 + $0xc0] sm:$0xff]
      %v1189 = vld [vmem:[%s1163 + $0xc8] sm:$0xff]
      %v1190 = vld [vmem:[%s1163 + $0xd0] sm:$0xff]
      %v1191 = vld [vmem:[%s1163 + $0xd8] sm:$0xff]
      %v1192 = vld [vmem:[%s1163 + $0xe0] sm:$0xff]
      %v1193 = vld [vmem:[%s1163 + $0xe8] sm:$0xff]
      %v1194 = vld [vmem:[%s1163 + $0xf0] sm:$0xff]
      %v1195 = vld [vmem:[%s1163 + $0xf8] sm:$0xff]
      %1228 = vrot.lane.b32.xlu0 %v1000, 32
      %v1229 = vpop.permute.xlu0 %1228
      %1230 = vrot.lane.b32.xlu0 %v1001, 32
      %v1231 = vpop.permute.xlu0 %1230
      %1232 = vrot.lane.b32.xlu0 %v1002, 32
      %v1233 = vpop.permute.xlu0 %1232
      %1234 = vrot.lane.b32.xlu0 %v1003, 32
      %v1235 = vpop.permute.xlu0 %1234
      %1236 = vrot.lane.b32.xlu0 %v1004, 32
      %v1237 = vpop.permute.xlu0 %1236
      %1238 = vrot.lane.b32.xlu0 %v1005, 32
      %v1239 = vpop.permute.xlu0 %1238
      %1240 = vrot.lane.b32.xlu0 %v1006, 32
      %v1241 = vpop.permute.xlu0 %1240
      %1242 = vrot.lane.b32.xlu0 %v1007, 32
      %v1243 = vpop.permute.xlu0 %1242
      %1244 = vrot.lane.b32.xlu0 %v1008, 32
      %v1245 = vpop.permute.xlu0 %1244
      %1246 = vrot.lane.b32.xlu0 %v1009, 32
      %v1247 = vpop.permute.xlu0 %1246
      %1248 = vrot.lane.b32.xlu0 %v1010, 32
      %v1249 = vpop.permute.xlu0 %1248
      %1250 = vrot.lane.b32.xlu0 %v1011, 32
      %v1251 = vpop.permute.xlu0 %1250
      %1252 = vrot.lane.b32.xlu0 %v1012, 32
      %v1253 = vpop.permute.xlu0 %1252
      %1254 = vrot.lane.b32.xlu0 %v1013, 32
      %v1255 = vpop.permute.xlu0 %1254
      %1256 = vrot.lane.b32.xlu0 %v1014, 32
      %v1257 = vpop.permute.xlu0 %1256
      %1258 = vrot.lane.b32.xlu0 %v1015, 32
      %v1259 = vpop.permute.xlu0 %1258
      %1260 = vrot.lane.b32.xlu0 %v1016, 32
      %v1261 = vpop.permute.xlu0 %1260
      %1262 = vrot.lane.b32.xlu0 %v1017, 32
      %v1263 = vpop.permute.xlu0 %1262
      %1264 = vrot.lane.b32.xlu0 %v1018, 32
      %v1265 = vpop.permute.xlu0 %1264
      %1266 = vrot.lane.b32.xlu0 %v1019, 32
      %v1267 = vpop.permute.xlu0 %1266
      %1268 = vrot.lane.b32.xlu0 %v1020, 32
      %v1269 = vpop.permute.xlu0 %1268
      %1270 = vrot.lane.b32.xlu0 %v1021, 32
      %v1271 = vpop.permute.xlu0 %1270
      %1272 = vrot.lane.b32.xlu0 %v1022, 32
      %v1273 = vpop.permute.xlu0 %1272
      %1274 = vrot.lane.b32.xlu0 %v1023, 32
      %v1275 = vpop.permute.xlu0 %1274
      %1276 = vrot.lane.b32.xlu0 %v1024, 32
      %v1277 = vpop.permute.xlu0 %1276
      %1278 = vrot.lane.b32.xlu0 %v1025, 32
      %v1279 = vpop.permute.xlu0 %1278
      %1280 = vrot.lane.b32.xlu0 %v1026, 32
      %v1281 = vpop.permute.xlu0 %1280
      %1282 = vrot.lane.b32.xlu0 %v1027, 32
      %v1283 = vpop.permute.xlu0 %1282
      %1284 = vrot.lane.b32.xlu0 %v1028, 32
      %v1285 = vpop.permute.xlu0 %1284
      %1286 = vrot.lane.b32.xlu0 %v1029, 32
      %v1287 = vpop.permute.xlu0 %1286
      %1288 = vrot.lane.b32.xlu0 %v1030, 32
      %v1289 = vpop.permute.xlu0 %1288
      %1290 = vrot.lane.b32.xlu0 %v1031, 32
      %v1291 = vpop.permute.xlu0 %1290
      %1356 = vrot.lane.b32.xlu0 %v1033, 64
      %v1357 = vpop.permute.xlu0 %1356
      %1358 = vrot.lane.b32.xlu0 %v1034, 64
      %v1359 = vpop.permute.xlu0 %1358
      %1360 = vrot.lane.b32.xlu0 %v1035, 64
      %v1361 = vpop.permute.xlu0 %1360
      %1362 = vrot.lane.b32.xlu0 %v1036, 64
      %v1363 = vpop.permute.xlu0 %1362
      %1364 = vrot.lane.b32.xlu0 %v1037, 64
      %v1365 = vpop.permute.xlu0 %1364
      %1366 = vrot.lane.b32.xlu0 %v1038, 64
      %v1367 = vpop.permute.xlu0 %1366
      %1368 = vrot.lane.b32.xlu0 %v1039, 64
      %v1369 = vpop.permute.xlu0 %1368
      %1370 = vrot.lane.b32.xlu0 %v1040, 64
      %v1371 = vpop.permute.xlu0 %1370
      %1372 = vrot.lane.b32.xlu0 %v1041, 64
      %v1373 = vpop.permute.xlu0 %1372
      %1374 = vrot.lane.b32.xlu0 %v1042, 64
      %v1375 = vpop.permute.xlu0 %1374
      %1376 = vrot.lane.b32.xlu0 %v1043, 64
      %v1377 = vpop.permute.xlu0 %1376
      %1378 = vrot.lane.b32.xlu0 %v1044, 64
      %v1379 = vpop.permute.xlu0 %1378
      %1380 = vrot.lane.b32.xlu0 %v1045, 64
      %v1381 = vpop.permute.xlu0 %1380
      %1382 = vrot.lane.b32.xlu0 %v1046, 64
      %v1383 = vpop.permute.xlu0 %1382
      %1384 = vrot.lane.b32.xlu0 %v1047, 64
      %v1385 = vpop.permute.xlu0 %1384
      %1386 = vrot.lane.b32.xlu0 %v1048, 64
      %v1387 = vpop.permute.xlu0 %1386
      %1388 = vrot.lane.b32.xlu0 %v1049, 64
      %v1389 = vpop.permute.xlu0 %1388
      %1390 = vrot.lane.b32.xlu0 %v1050, 64
      %v1391 = vpop.permute.xlu0 %1390
      %1392 = vrot.lane.b32.xlu0 %v1051, 64
      %v1393 = vpop.permute.xlu0 %1392
      %1394 = vrot.lane.b32.xlu0 %v1052, 64
      %v1395 = vpop.permute.xlu0 %1394
      %1396 = vrot.lane.b32.xlu0 %v1053, 64
      %v1397 = vpop.permute.xlu0 %1396
      %1398 = vrot.lane.b32.xlu0 %v1054, 64
      %v1399 = vpop.permute.xlu0 %1398
      %1400 = vrot.lane.b32.xlu0 %v1055, 64
      %v1401 = vpop.permute.xlu0 %1400
      %1402 = vrot.lane.b32.xlu0 %v1056, 64
      %v1403 = vpop.permute.xlu0 %1402
      %1404 = vrot.lane.b32.xlu0 %v1057, 64
      %v1405 = vpop.permute.xlu0 %1404
      %1406 = vrot.lane.b32.xlu0 %v1058, 64
      %v1407 = vpop.permute.xlu0 %1406
      %1408 = vrot.lane.b32.xlu0 %v1059, 64
      %v1409 = vpop.permute.xlu0 %1408
      %1410 = vrot.lane.b32.xlu0 %v1060, 64
      %v1411 = vpop.permute.xlu0 %1410
      %1412 = vrot.lane.b32.xlu0 %v1061, 64
      %v1413 = vpop.permute.xlu0 %1412
      %1414 = vrot.lane.b32.xlu0 %v1062, 64
      %v1415 = vpop.permute.xlu0 %1414
      %1416 = vrot.lane.b32.xlu0 %v1063, 64
      %v1417 = vpop.permute.xlu0 %1416
      %1418 = vrot.lane.b32.xlu0 %v1064, 64
      %v1419 = vpop.permute.xlu0 %1418
      %1484 = vrot.lane.b32.xlu0 %v1065, 96
      %v1485 = vpop.permute.xlu0 %1484
      %1486 = vrot.lane.b32.xlu0 %v1066, 96
      %v1487 = vpop.permute.xlu0 %1486
      %1488 = vrot.lane.b32.xlu0 %v1067, 96
      %v1489 = vpop.permute.xlu0 %1488
      %1490 = vrot.lane.b32.xlu0 %v1068, 96
      %v1491 = vpop.permute.xlu0 %1490
      %1492 = vrot.lane.b32.xlu0 %v1069, 96
      %v1493 = vpop.permute.xlu0 %1492
      %1494 = vrot.lane.b32.xlu0 %v1070, 96
      %v1495 = vpop.permute.xlu0 %1494
      %1496 = vrot.lane.b32.xlu0 %v1071, 96
      %v1497 = vpop.permute.xlu0 %1496
      %1498 = vrot.lane.b32.xlu0 %v1072, 96
      %v1499 = vpop.permute.xlu0 %1498
      %1500 = vrot.lane.b32.xlu0 %v1073, 96
      %v1501 = vpop.permute.xlu0 %1500
      %1502 = vrot.lane.b32.xlu0 %v1074, 96
      %v1503 = vpop.permute.xlu0 %1502
      %1504 = vrot.lane.b32.xlu0 %v1075, 96
      %v1505 = vpop.permute.xlu0 %1504
      %1506 = vrot.lane.b32.xlu0 %v1076, 96
      %v1507 = vpop.permute.xlu0 %1506
      %1508 = vrot.lane.b32.xlu0 %v1077, 96
      %v1509 = vpop.permute.xlu0 %1508
      %1510 = vrot.lane.b32.xlu0 %v1078, 96
      %v1511 = vpop.permute.xlu0 %1510
      %1512 = vrot.lane.b32.xlu0 %v1079, 96
      %v1513 = vpop.permute.xlu0 %1512
      %1514 = vrot.lane.b32.xlu0 %v1080, 96
      %v1515 = vpop.permute.xlu0 %1514
      %1516 = vrot.lane.b32.xlu0 %v1081, 96
      %v1517 = vpop.permute.xlu0 %1516
      %1518 = vrot.lane.b32.xlu0 %v1082, 96
      %v1519 = vpop.permute.xlu0 %1518
      %1520 = vrot.lane.b32.xlu0 %v1083, 96
      %v1521 = vpop.permute.xlu0 %1520
      %1522 = vrot.lane.b32.xlu0 %v1084, 96
      %v1523 = vpop.permute.xlu0 %1522
      %1524 = vrot.lane.b32.xlu0 %v1085, 96
      %v1525 = vpop.permute.xlu0 %1524
      %1526 = vrot.lane.b32.xlu0 %v1086, 96
      %v1527 = vpop.permute.xlu0 %1526
      %1528 = vrot.lane.b32.xlu0 %v1087, 96
      %v1529 = vpop.permute.xlu0 %1528
      %1530 = vrot.lane.b32.xlu0 %v1088, 96
      %v1531 = vpop.permute.xlu0 %1530
      %1532 = vrot.lane.b32.xlu0 %v1089, 96
      %v1533 = vpop.permute.xlu0 %1532
      %1534 = vrot.lane.b32.xlu0 %v1090, 96
      %v1535 = vpop.permute.xlu0 %1534
      %1536 = vrot.lane.b32.xlu0 %v1091, 96
      %v1537 = vpop.permute.xlu0 %1536
      %1538 = vrot.lane.b32.xlu0 %v1092, 96
      %v1539 = vpop.permute.xlu0 %1538
      %1540 = vrot.lane.b32.xlu0 %v1093, 96
      %v1541 = vpop.permute.xlu0 %1540
      %1542 = vrot.lane.b32.xlu0 %v1094, 96
      %v1543 = vpop.permute.xlu0 %1542
      %1544 = vrot.lane.b32.xlu0 %v1095, 96
      %v1545 = vpop.permute.xlu0 %1544
      %1546 = vrot.lane.b32.xlu0 %v1096, 96
      %v1547 = vpop.permute.xlu0 %1546
      %1612 = vrot.lane.b32.xlu0 %v1131, 32
      %v1613 = vpop.permute.xlu0 %1612
      %1614 = vrot.lane.b32.xlu0 %v1132, 32
      %v1615 = vpop.permute.xlu0 %1614
      %1616 = vrot.lane.b32.xlu0 %v1133, 32
      %v1617 = vpop.permute.xlu0 %1616
      %1618 = vrot.lane.b32.xlu0 %v1134, 32
      %v1619 = vpop.permute.xlu0 %1618
      %1620 = vrot.lane.b32.xlu0 %v1135, 32
      %v1621 = vpop.permute.xlu0 %1620
      %1622 = vrot.lane.b32.xlu0 %v1136, 32
      %v1623 = vpop.permute.xlu0 %1622
      %1624 = vrot.lane.b32.xlu0 %v1137, 32
      %v1625 = vpop.permute.xlu0 %1624
      %1626 = vrot.lane.b32.xlu0 %v1138, 32
      %v1627 = vpop.permute.xlu0 %1626
      %1628 = vrot.lane.b32.xlu0 %v1139, 32
      %v1629 = vpop.permute.xlu0 %1628
      %1630 = vrot.lane.b32.xlu0 %v1140, 32
      %v1631 = vpop.permute.xlu0 %1630
      %1632 = vrot.lane.b32.xlu0 %v1141, 32
      %v1633 = vpop.permute.xlu0 %1632
      %1634 = vrot.lane.b32.xlu0 %v1142, 32
      %v1635 = vpop.permute.xlu0 %1634
      %1636 = vrot.lane.b32.xlu0 %v1143, 32
      %v1637 = vpop.permute.xlu0 %1636
      %1638 = vrot.lane.b32.xlu0 %v1144, 32
      %v1639 = vpop.permute.xlu0 %1638
      %1640 = vrot.lane.b32.xlu0 %v1145, 32
      %v1641 = vpop.permute.xlu0 %1640
      %1642 = vrot.lane.b32.xlu0 %v1146, 32
      %v1643 = vpop.permute.xlu0 %1642
      %1644 = vrot.lane.b32.xlu0 %v1147, 32
      %v1645 = vpop.permute.xlu0 %1644
      %1646 = vrot.lane.b32.xlu0 %v1148, 32
      %v1647 = vpop.permute.xlu0 %1646
      %1648 = vrot.lane.b32.xlu0 %v1149, 32
      %v1649 = vpop.permute.xlu0 %1648
      %1650 = vrot.lane.b32.xlu0 %v1150, 32
      %v1651 = vpop.permute.xlu0 %1650
      %1652 = vrot.lane.b32.xlu0 %v1151, 32
      %v1653 = vpop.permute.xlu0 %1652
      %1654 = vrot.lane.b32.xlu0 %v1152, 32
      %v1655 = vpop.permute.xlu0 %1654
      %1656 = vrot.lane.b32.xlu0 %v1153, 32
      %v1657 = vpop.permute.xlu0 %1656
      %1658 = vrot.lane.b32.xlu0 %v1154, 32
      %v1659 = vpop.permute.xlu0 %1658
      %1660 = vrot.lane.b32.xlu0 %v1155, 32
      %v1661 = vpop.permute.xlu0 %1660
      %1662 = vrot.lane.b32.xlu0 %v1156, 32
      %v1663 = vpop.permute.xlu0 %1662
      %1664 = vrot.lane.b32.xlu0 %v1157, 32
      %v1665 = vpop.permute.xlu0 %1664
      %1666 = vrot.lane.b32.xlu0 %v1158, 32
      %v1667 = vpop.permute.xlu0 %1666
      %1668 = vrot.lane.b32.xlu0 %v1159, 32
      %v1669 = vpop.permute.xlu0 %1668
      %1670 = vrot.lane.b32.xlu0 %v1160, 32
      %v1671 = vpop.permute.xlu0 %1670
      %1672 = vrot.lane.b32.xlu0 %v1161, 32
      %v1673 = vpop.permute.xlu0 %1672
      %1674 = vrot.lane.b32.xlu0 %v1162, 32
      %v1675 = vpop.permute.xlu0 %1674
      %1740 = vrot.lane.b32.xlu0 %v1164, 64
      %v1741 = vpop.permute.xlu0 %1740
      %1742 = vrot.lane.b32.xlu0 %v1165, 64
      %v1743 = vpop.permute.xlu0 %1742
      %1744 = vrot.lane.b32.xlu0 %v1166, 64
      %v1745 = vpop.permute.xlu0 %1744
      %1746 = vrot.lane.b32.xlu0 %v1167, 64
      %v1747 = vpop.permute.xlu0 %1746
      %1748 = vrot.lane.b32.xlu0 %v1168, 64
      %v1749 = vpop.permute.xlu0 %1748
      %1750 = vrot.lane.b32.xlu0 %v1169, 64
      %v1751 = vpop.permute.xlu0 %1750
      %1752 = vrot.lane.b32.xlu0 %v1170, 64
      %v1753 = vpop.permute.xlu0 %1752
      %1754 = vrot.lane.b32.xlu0 %v1171, 64
      %v1755 = vpop.permute.xlu0 %1754
      %1756 = vrot.lane.b32.xlu0 %v1172, 64
      %v1757 = vpop.permute.xlu0 %1756
      %1758 = vrot.lane.b32.xlu0 %v1173, 64
      %v1759 = vpop.permute.xlu0 %1758
      %1760 = vrot.lane.b32.xlu0 %v1174, 64
      %v1761 = vpop.permute.xlu0 %1760
      %1762 = vrot.lane.b32.xlu0 %v1175, 64
      %v1763 = vpop.permute.xlu0 %1762
      %1764 = vrot.lane.b32.xlu0 %v1176, 64
      %v1765 = vpop.permute.xlu0 %1764
      %1766 = vrot.lane.b32.xlu0 %v1177, 64
      %v1767 = vpop.permute.xlu0 %1766
      %1768 = vrot.lane.b32.xlu0 %v1178, 64
      %v1769 = vpop.permute.xlu0 %1768
      %1770 = vrot.lane.b32.xlu0 %v1179, 64
      %v1771 = vpop.permute.xlu0 %1770
      %1772 = vrot.lane.b32.xlu0 %v1180, 64
      %v1773 = vpop.permute.xlu0 %1772
      %1774 = vrot.lane.b32.xlu0 %v1181, 64
      %v1775 = vpop.permute.xlu0 %1774
      %1776 = vrot.lane.b32.xlu0 %v1182, 64
      %v1777 = vpop.permute.xlu0 %1776
      %1778 = vrot.lane.b32.xlu0 %v1183, 64
      %v1779 = vpop.permute.xlu0 %1778
      %1780 = vrot.lane.b32.xlu0 %v1184, 64
      %v1781 = vpop.permute.xlu0 %1780
      %1782 = vrot.lane.b32.xlu0 %v1185, 64
      %v1783 = vpop.permute.xlu0 %1782
      %1784 = vrot.lane.b32.xlu0 %v1186, 64
      %v1785 = vpop.permute.xlu0 %1784
      %1786 = vrot.lane.b32.xlu0 %v1187, 64
      %v1787 = vpop.permute.xlu0 %1786
      %1788 = vrot.lane.b32.xlu0 %v1188, 64
      %v1789 = vpop.permute.xlu0 %1788
      %1790 = vrot.lane.b32.xlu0 %v1189, 64
      %v1791 = vpop.permute.xlu0 %1790
      %1792 = vrot.lane.b32.xlu0 %v1190, 64
      %v1793 = vpop.permute.xlu0 %1792
      %1794 = vrot.lane.b32.xlu0 %v1191, 64
      %v1795 = vpop.permute.xlu0 %1794
      %1796 = vrot.lane.b32.xlu0 %v1192, 64
      %v1797 = vpop.permute.xlu0 %1796
      %1798 = vrot.lane.b32.xlu0 %v1193, 64
      %v1799 = vpop.permute.xlu0 %1798
      %1800 = vrot.lane.b32.xlu0 %v1194, 64
      %v1801 = vpop.permute.xlu0 %1800
      %1802 = vrot.lane.b32.xlu0 %v1195, 64
      %v1803 = vpop.permute.xlu0 %1802
      %v1836 = vsel %vm792, %v967, %v1229
      %v1837 = vsel %vm792, %v968, %v1231
      %v1838 = vsel %vm792, %v969, %v1233
      %v1839 = vsel %vm792, %v970, %v1235
      %v1840 = vsel %vm792, %v971, %v1237
      %v1841 = vsel %vm792, %v972, %v1239
      %v1842 = vsel %vm792, %v973, %v1241
      %v1843 = vsel %vm792, %v974, %v1243
      %v1844 = vsel %vm792, %v975, %v1245
      %v1845 = vsel %vm792, %v976, %v1247
      %v1846 = vsel %vm792, %v977, %v1249
      %v1847 = vsel %vm792, %v978, %v1251
      %v1848 = vsel %vm792, %v979, %v1253
      %v1849 = vsel %vm792, %v980, %v1255
      %v1850 = vsel %vm792, %v981, %v1257
      %v1851 = vsel %vm792, %v982, %v1259
      %v1852 = vsel %vm792, %v983, %v1261
      %v1853 = vsel %vm792, %v984, %v1263
      %v1854 = vsel %vm792, %v985, %v1265
      %v1855 = vsel %vm792, %v986, %v1267
      %v1856 = vsel %vm792, %v987, %v1269
      %v1857 = vsel %vm792, %v988, %v1271
      %v1858 = vsel %vm792, %v989, %v1273
      %v1859 = vsel %vm792, %v990, %v1275
      %v1860 = vsel %vm792, %v991, %v1277
      %v1861 = vsel %vm792, %v992, %v1279
      %v1862 = vsel %vm792, %v993, %v1281
      %v1863 = vsel %vm792, %v994, %v1283
      %v1864 = vsel %vm792, %v995, %v1285
      %v1865 = vsel %vm792, %v996, %v1287
      %v1866 = vsel %vm792, %v997, %v1289
      %v1867 = vsel %vm792, %v998, %v1291
      %vm1868 = vcmask 523264
      %v1869 = vsel %vm1868, %v1836, %v1357
      %v1870 = vsel %vm1868, %v1837, %v1359
      %v1871 = vsel %vm1868, %v1838, %v1361
      %v1872 = vsel %vm1868, %v1839, %v1363
      %v1873 = vsel %vm1868, %v1840, %v1365
      %v1874 = vsel %vm1868, %v1841, %v1367
      %v1875 = vsel %vm1868, %v1842, %v1369
      %v1876 = vsel %vm1868, %v1843, %v1371
      %v1877 = vsel %vm1868, %v1844, %v1373
      %v1878 = vsel %vm1868, %v1845, %v1375
      %v1879 = vsel %vm1868, %v1846, %v1377
      %v1880 = vsel %vm1868, %v1847, %v1379
      %v1881 = vsel %vm1868, %v1848, %v1381
      %v1882 = vsel %vm1868, %v1849, %v1383
      %v1883 = vsel %vm1868, %v1850, %v1385
      %v1884 = vsel %vm1868, %v1851, %v1387
      %v1885 = vsel %vm1868, %v1852, %v1389
      %v1886 = vsel %vm1868, %v1853, %v1391
      %v1887 = vsel %vm1868, %v1854, %v1393
      %v1888 = vsel %vm1868, %v1855, %v1395
      %v1889 = vsel %vm1868, %v1856, %v1397
      %v1890 = vsel %vm1868, %v1857, %v1399
      %v1891 = vsel %vm1868, %v1858, %v1401
      %v1892 = vsel %vm1868, %v1859, %v1403
      %v1893 = vsel %vm1868, %v1860, %v1405
      %v1894 = vsel %vm1868, %v1861, %v1407
      %v1895 = vsel %vm1868, %v1862, %v1409
      %v1896 = vsel %vm1868, %v1863, %v1411
      %v1897 = vsel %vm1868, %v1864, %v1413
      %v1898 = vsel %vm1868, %v1865, %v1415
      %v1899 = vsel %vm1868, %v1866, %v1417
      %v1900 = vsel %vm1868, %v1867, %v1419
      %vm1901 = vcmask 785408
      %v1902 = vsel %vm1901, %v1869, %v1485
      %v1903 = vsel %vm1901, %v1870, %v1487
      %v1904 = vsel %vm1901, %v1871, %v1489
      %v1905 = vsel %vm1901, %v1872, %v1491
      %v1906 = vsel %vm1901, %v1873, %v1493
      %v1907 = vsel %vm1901, %v1874, %v1495
      %v1908 = vsel %vm1901, %v1875, %v1497
      %v1909 = vsel %vm1901, %v1876, %v1499
      %v1910 = vsel %vm1901, %v1877, %v1501
      %v1911 = vsel %vm1901, %v1878, %v1503
      %v1912 = vsel %vm1901, %v1879, %v1505
      %v1913 = vsel %vm1901, %v1880, %v1507
      %v1914 = vsel %vm1901, %v1881, %v1509
      %v1915 = vsel %vm1901, %v1882, %v1511
      %v1916 = vsel %vm1901, %v1883, %v1513
      %v1917 = vsel %vm1901, %v1884, %v1515
      %v1918 = vsel %vm1901, %v1885, %v1517
      %v1919 = vsel %vm1901, %v1886, %v1519
      %v1920 = vsel %vm1901, %v1887, %v1521
      %v1921 = vsel %vm1901, %v1888, %v1523
      %v1922 = vsel %vm1901, %v1889, %v1525
      %v1923 = vsel %vm1901, %v1890, %v1527
      %v1924 = vsel %vm1901, %v1891, %v1529
      %v1925 = vsel %vm1901, %v1892, %v1531
      %v1926 = vsel %vm1901, %v1893, %v1533
      %v1927 = vsel %vm1901, %v1894, %v1535
      %v1928 = vsel %vm1901, %v1895, %v1537
      %v1929 = vsel %vm1901, %v1896, %v1539
      %v1930 = vsel %vm1901, %v1897, %v1541
      %v1931 = vsel %vm1901, %v1898, %v1543
      %v1932 = vsel %vm1901, %v1899, %v1545
      %v1933 = vsel %vm1901, %v1900, %v1547
      %v1934 = vsel %vm792, %v1098, %v1613
      %v1935 = vsel %vm792, %v1099, %v1615
      %v1936 = vsel %vm792, %v1100, %v1617
      %v1937 = vsel %vm792, %v1101, %v1619
      %v1938 = vsel %vm792, %v1102, %v1621
      %v1939 = vsel %vm792, %v1103, %v1623
      %v1940 = vsel %vm792, %v1104, %v1625
      %v1941 = vsel %vm792, %v1105, %v1627
      %v1942 = vsel %vm792, %v1106, %v1629
      %v1943 = vsel %vm792, %v1107, %v1631
      %v1944 = vsel %vm792, %v1108, %v1633
      %v1945 = vsel %vm792, %v1109, %v1635
      %v1946 = vsel %vm792, %v1110, %v1637
      %v1947 = vsel %vm792, %v1111, %v1639
      %v1948 = vsel %vm792, %v1112, %v1641
      %v1949 = vsel %vm792, %v1113, %v1643
      %v1950 = vsel %vm792, %v1114, %v1645
      %v1951 = vsel %vm792, %v1115, %v1647
      %v1952 = vsel %vm792, %v1116, %v1649
      %v1953 = vsel %vm792, %v1117, %v1651
      %v1954 = vsel %vm792, %v1118, %v1653
      %v1955 = vsel %vm792, %v1119, %v1655
      %v1956 = vsel %vm792, %v1120, %v1657
      %v1957 = vsel %vm792, %v1121, %v1659
      %v1958 = vsel %vm792, %v1122, %v1661
      %v1959 = vsel %vm792, %v1123, %v1663
      %v1960 = vsel %vm792, %v1124, %v1665
      %v1961 = vsel %vm792, %v1125, %v1667
      %v1962 = vsel %vm792, %v1126, %v1669
      %v1963 = vsel %vm792, %v1127, %v1671
      %v1964 = vsel %vm792, %v1128, %v1673
      %v1965 = vsel %vm792, %v1129, %v1675
      %v1966 = vsel %vm1868, %v1934, %v1741
      %v1967 = vsel %vm1868, %v1935, %v1743
      %v1968 = vsel %vm1868, %v1936, %v1745
      %v1969 = vsel %vm1868, %v1937, %v1747
      %v1970 = vsel %vm1868, %v1938, %v1749
      %v1971 = vsel %vm1868, %v1939, %v1751
      %v1972 = vsel %vm1868, %v1940, %v1753
      %v1973 = vsel %vm1868, %v1941, %v1755
      %v1974 = vsel %vm1868, %v1942, %v1757
      %v1975 = vsel %vm1868, %v1943, %v1759
      %v1976 = vsel %vm1868, %v1944, %v1761
      %v1977 = vsel %vm1868, %v1945, %v1763
      %v1978 = vsel %vm1868, %v1946, %v1765
      %v1979 = vsel %vm1868, %v1947, %v1767
      %v1980 = vsel %vm1868, %v1948, %v1769
      %v1981 = vsel %vm1868, %v1949, %v1771
      %v1982 = vsel %vm1868, %v1950, %v1773
      %v1983 = vsel %vm1868, %v1951, %v1775
      %v1984 = vsel %vm1868, %v1952, %v1777
      %v1985 = vsel %vm1868, %v1953, %v1779
      %v1986 = vsel %vm1868, %v1954, %v1781
      %v1987 = vsel %vm1868, %v1955, %v1783
      %v1988 = vsel %vm1868, %v1956, %v1785
      %v1989 = vsel %vm1868, %v1957, %v1787
      %v1990 = vsel %vm1868, %v1958, %v1789
      %v1991 = vsel %vm1868, %v1959, %v1791
      %v1992 = vsel %vm1868, %v1960, %v1793
      %v1993 = vsel %vm1868, %v1961, %v1795
      %v1994 = vsel %vm1868, %v1962, %v1797
      %v1995 = vsel %vm1868, %v1963, %v1799
      %v1996 = vsel %vm1868, %v1964, %v1801
      %v1997 = vsel %vm1868, %v1965, %v1803
      %v1998 = vld [vmem:[%s2] sm:$0xff]
      %v1999 = vld [vmem:[%s2 + $0x8] sm:$0xff]
      %v2000 = vld [vmem:[%s2 + $0x10] sm:$0xff]
      %v2001 = vld [vmem:[%s2 + $0x18] sm:$0xff]
      %v2002 = vld [vmem:[%s2 + $0x20] sm:$0xff]
      %v2003 = vld [vmem:[%s2 + $0x28] sm:$0xff]
      %v2004 = vld [vmem:[%s2 + $0x30] sm:$0xff]
      %v2005 = vld [vmem:[%s2 + $0x38] sm:$0xff]
      %v2006 = vld [vmem:[%s2 + $0x40] sm:$0xff]
      %v2007 = vld [vmem:[%s2 + $0x48] sm:$0xff]
      %v2008 = vld [vmem:[%s2 + $0x50] sm:$0xff]
      %v2009 = vld [vmem:[%s2 + $0x58] sm:$0xff]
      %v2010 = vld [vmem:[%s2 + $0x60] sm:$0xff]
      %v2011 = vld [vmem:[%s2 + $0x68] sm:$0xff]
      %v2012 = vld [vmem:[%s2 + $0x70] sm:$0xff]
      %v2013 = vld [vmem:[%s2 + $0x78] sm:$0xff]
      %v2014 = vld [vmem:[%s2 + $0x80] sm:$0xff]
      %v2015 = vld [vmem:[%s2 + $0x88] sm:$0xff]
      %v2016 = vld [vmem:[%s2 + $0x90] sm:$0xff]
      %v2017 = vld [vmem:[%s2 + $0x98] sm:$0xff]
      %v2018 = vld [vmem:[%s2 + $0xa0] sm:$0xff]
      %v2019 = vld [vmem:[%s2 + $0xa8] sm:$0xff]
      %v2020 = vld [vmem:[%s2 + $0xb0] sm:$0xff]
      %v2021 = vld [vmem:[%s2 + $0xb8] sm:$0xff]
      %v2022 = vld [vmem:[%s2 + $0xc0] sm:$0xff]
      %v2023 = vld [vmem:[%s2 + $0xc8] sm:$0xff]
      %v2024 = vld [vmem:[%s2 + $0xd0] sm:$0xff]
      %v2025 = vld [vmem:[%s2 + $0xd8] sm:$0xff]
      %v2027 = vsel %vm1901, %v1966, 0
      %v2030 = vsel %vm1901, %v1967, 0
      %v2033 = vsel %vm1901, %v1968, 0
      %v2036 = vsel %vm1901, %v1969, 0
      %v2039 = vsel %vm1901, %v1970, 0
      %v2042 = vsel %vm1901, %v1971, 0
      %v2045 = vsel %vm1901, %v1972, 0
      %v2048 = vsel %vm1901, %v1973, 0
      %v2051 = vsel %vm1901, %v1974, 0
      %v2054 = vsel %vm1901, %v1975, 0
      %v2057 = vsel %vm1901, %v1976, 0
      %v2060 = vsel %vm1901, %v1977, 0
      %v2063 = vsel %vm1901, %v1978, 0
      %v2066 = vsel %vm1901, %v1979, 0
      %v2069 = vsel %vm1901, %v1980, 0
      %v2072 = vsel %vm1901, %v1981, 0
      %v2075 = vsel %vm1901, %v1982, 0
      %v2078 = vsel %vm1901, %v1983, 0
      %v2081 = vsel %vm1901, %v1984, 0
      %v2084 = vsel %vm1901, %v1985, 0
      %v2087 = vsel %vm1901, %v1986, 0
      %v2090 = vsel %vm1901, %v1987, 0
      %v2093 = vsel %vm1901, %v1988, 0
      %v2096 = vsel %vm1901, %v1989, 0
      %v2099 = vsel %vm1901, %v1990, 0
      %v2102 = vsel %vm1901, %v1991, 0
      %v2105 = vsel %vm1901, %v1992, 0
      %v2108 = vsel %vm1901, %v1993, 0
      %v2111 = vsel %vm1901, %v1994, 0
      %v2114 = vsel %vm1901, %v1995, 0
      %v2117 = vsel %vm1901, %v1996, 0
      %v2120 = vsel %vm1901, %v1997, 0
      %2122 = vmatpush.msra.mxu0 %v2013
      %2123 = vmatpush.msra.mxu0 %v2012
      %2124 = vmatpush.msra.mxu0 %v2011
      %2125 = vmatpush.msra.mxu0 %v2010
      %2126 = vmatpush.msra.mxu0 %v2009
      %2127 = vmatpush.msra.mxu0 %v2008
      %2128 = vmatpush.msra.mxu0 %v2007
      %2129 = vmatpush.msra.mxu0 %v2006
      %2130 = vmatpush.msra.mxu0 %v2005
      %2131 = vmatpush.msra.mxu0 %v2004
      %2132 = vmatpush.msra.mxu0 %v2003
      %2133 = vmatpush.msra.mxu0 %v2002
      %2134 = vmatpush.msra.mxu0 %v2001
      %2135 = vmatpush.msra.mxu0 %v2000
      %2136 = vmatpush.msra.mxu0 %v1999
      %2137 = vmatpush.msra.mxu0 %v1998
      %2138 = vmatmul.f32.gmra.mxu0 %v1902
      %v2139 = vpop.f32.mrf.mxu0
      %v2140 = vadd.f32 0.0, %v2139
      %2141 = vmatmul.f32.gmra.mxu0 %v1903
      %v2142 = vpop.f32.mrf.mxu0
      %v2143 = vadd.f32 0.0, %v2142
      %2144 = vmatmul.f32.gmra.mxu0 %v1904
      %v2145 = vpop.f32.mrf.mxu0
      %v2146 = vadd.f32 0.0, %v2145
      %2147 = vmatmul.f32.gmra.mxu0 %v1905
      %v2148 = vpop.f32.mrf.mxu0
      %v2149 = vadd.f32 0.0, %v2148
      %2150 = vmatmul.f32.gmra.mxu0 %v1906
      %v2151 = vpop.f32.mrf.mxu0
      %v2152 = vadd.f32 0.0, %v2151
      %2153 = vmatmul.f32.gmra.mxu0 %v1907
      %v2154 = vpop.f32.mrf.mxu0
      %v2155 = vadd.f32 0.0, %v2154
      %2156 = vmatmul.f32.gmra.mxu0 %v1908
      %v2157 = vpop.f32.mrf.mxu0
      %v2158 = vadd.f32 0.0, %v2157
      %2159 = vmatmul.f32.gmra.mxu0 %v1909
      %v2160 = vpop.f32.mrf.mxu0
      %v2161 = vadd.f32 0.0, %v2160
      %2162 = vmatmul.f32.gmra.mxu0 %v1910
      %v2163 = vpop.f32.mrf.mxu0
      %v2164 = vadd.f32 0.0, %v2163
      %2165 = vmatmul.f32.gmra.mxu0 %v1911
      %v2166 = vpop.f32.mrf.mxu0
      %v2167 = vadd.f32 0.0, %v2166
      %2168 = vmatmul.f32.gmra.mxu0 %v1912
      %v2169 = vpop.f32.mrf.mxu0
      %v2170 = vadd.f32 0.0, %v2169
      %2171 = vmatmul.f32.gmra.mxu0 %v1913
      %v2172 = vpop.f32.mrf.mxu0
      %v2173 = vadd.f32 0.0, %v2172
      %2174 = vmatmul.f32.gmra.mxu0 %v1914
      %v2175 = vpop.f32.mrf.mxu0
      %v2176 = vadd.f32 0.0, %v2175
      %2177 = vmatmul.f32.gmra.mxu0 %v1915
      %v2178 = vpop.f32.mrf.mxu0
      %v2179 = vadd.f32 0.0, %v2178
      %2180 = vmatmul.f32.gmra.mxu0 %v1916
      %v2181 = vpop.f32.mrf.mxu0
      %v2182 = vadd.f32 0.0, %v2181
      %2183 = vmatmul.f32.gmra.mxu0 %v1917
      %v2184 = vpop.f32.mrf.mxu0
      %v2185 = vadd.f32 0.0, %v2184
      %2186 = vmatmul.f32.gmra.mxu0 %v1918
      %v2187 = vpop.f32.mrf.mxu0
      %v2188 = vadd.f32 0.0, %v2187
      %2189 = vmatmul.f32.gmra.mxu0 %v1919
      %v2190 = vpop.f32.mrf.mxu0
      %v2191 = vadd.f32 0.0, %v2190
      %2192 = vmatmul.f32.gmra.mxu0 %v1920
      %v2193 = vpop.f32.mrf.mxu0
      %v2194 = vadd.f32 0.0, %v2193
      %2195 = vmatmul.f32.gmra.mxu0 %v1921
      %v2196 = vpop.f32.mrf.mxu0
      %v2197 = vadd.f32 0.0, %v2196
      %2198 = vmatmul.f32.gmra.mxu0 %v1922
      %v2199 = vpop.f32.mrf.mxu0
      %v2200 = vadd.f32 0.0, %v2199
      %2201 = vmatmul.f32.gmra.mxu0 %v1923
      %v2202 = vpop.f32.mrf.mxu0
      %v2203 = vadd.f32 0.0, %v2202
      %2204 = vmatmul.f32.gmra.mxu0 %v1924
      %v2205 = vpop.f32.mrf.mxu0
      %v2206 = vadd.f32 0.0, %v2205
      %2207 = vmatmul.f32.gmra.mxu0 %v1925
      %v2208 = vpop.f32.mrf.mxu0
      %v2209 = vadd.f32 0.0, %v2208
      %2210 = vmatmul.f32.gmra.mxu0 %v1926
      %v2211 = vpop.f32.mrf.mxu0
      %v2212 = vadd.f32 0.0, %v2211
      %2213 = vmatmul.f32.gmra.mxu0 %v1927
      %v2214 = vpop.f32.mrf.mxu0
      %v2215 = vadd.f32 0.0, %v2214
      %2216 = vmatmul.f32.gmra.mxu0 %v1928
      %v2217 = vpop.f32.mrf.mxu0
      %v2218 = vadd.f32 0.0, %v2217
      %2219 = vmatmul.f32.gmra.mxu0 %v1929
      %v2220 = vpop.f32.mrf.mxu0
      %v2221 = vadd.f32 0.0, %v2220
      %2222 = vmatmul.f32.gmra.mxu0 %v1930
      %v2223 = vpop.f32.mrf.mxu0
      %v2224 = vadd.f32 0.0, %v2223
      %2225 = vmatmul.f32.gmra.mxu0 %v1931
      %v2226 = vpop.f32.mrf.mxu0
      %v2227 = vadd.f32 0.0, %v2226
      %2228 = vmatmul.f32.gmra.mxu0 %v1932
      %v2229 = vpop.f32.mrf.mxu0
      %v2230 = vadd.f32 0.0, %v2229
      %2231 = vmatmul.f32.gmra.mxu0 %v1933
      %v2232 = vpop.f32.mrf.mxu0
      %v2233 = vadd.f32 0.0, %v2232
      %2234 = vdwg.mxu0
      %2235 = vmatpush.msra.mxu0 0.0
      %2236 = vmatpush.msra.mxu0 0.0
      %2237 = vmatpush.msra.mxu0 0.0
      %2238 = vmatpush.msra.mxu0 0.0
      %2239 = vmatpush.msra.mxu0 %v2025
      %2240 = vmatpush.msra.mxu0 %v2024
      %2241 = vmatpush.msra.mxu0 %v2023
      %2242 = vmatpush.msra.mxu0 %v2022
      %2243 = vmatpush.msra.mxu0 %v2021
      %2244 = vmatpush.msra.mxu0 %v2020
      %2245 = vmatpush.msra.mxu0 %v2019
      %2246 = vmatpush.msra.mxu0 %v2018
      %2247 = vmatpush.msra.mxu0 %v2017
      %2248 = vmatpush.msra.mxu0 %v2016
      %2249 = vmatpush.msra.mxu0 %v2015
      %2250 = vmatpush.msra.mxu0 %v2014
      %2251 = vmatmul.f32.gmra.mxu0 %v2027
      %v2252 = vpop.f32.mrf.mxu0
      %v2253 = vadd.f32 %v2140, %v2252
      %2254 = vmatmul.f32.gmra.mxu0 %v2030
      %v2255 = vpop.f32.mrf.mxu0
      %v2256 = vadd.f32 %v2143, %v2255
      %2257 = vmatmul.f32.gmra.mxu0 %v2033
      %v2258 = vpop.f32.mrf.mxu0
      %v2259 = vadd.f32 %v2146, %v2258
      %2260 = vmatmul.f32.gmra.mxu0 %v2036
      %v2261 = vpop.f32.mrf.mxu0
      %v2262 = vadd.f32 %v2149, %v2261
      %2263 = vmatmul.f32.gmra.mxu0 %v2039
      %v2264 = vpop.f32.mrf.mxu0
      %v2265 = vadd.f32 %v2152, %v2264
      %2266 = vmatmul.f32.gmra.mxu0 %v2042
      %v2267 = vpop.f32.mrf.mxu0
      %v2268 = vadd.f32 %v2155, %v2267
      %2269 = vmatmul.f32.gmra.mxu0 %v2045
      %v2270 = vpop.f32.mrf.mxu0
      %v2271 = vadd.f32 %v2158, %v2270
      %2272 = vmatmul.f32.gmra.mxu0 %v2048
      %v2273 = vpop.f32.mrf.mxu0
      %v2274 = vadd.f32 %v2161, %v2273
      %2275 = vmatmul.f32.gmra.mxu0 %v2051
      %v2276 = vpop.f32.mrf.mxu0
      %v2277 = vadd.f32 %v2164, %v2276
      %2278 = vmatmul.f32.gmra.mxu0 %v2054
      %v2279 = vpop.f32.mrf.mxu0
      %v2280 = vadd.f32 %v2167, %v2279
      %2281 = vmatmul.f32.gmra.mxu0 %v2057
      %v2282 = vpop.f32.mrf.mxu0
      %v2283 = vadd.f32 %v2170, %v2282
      %2284 = vmatmul.f32.gmra.mxu0 %v2060
      %v2285 = vpop.f32.mrf.mxu0
      %v2286 = vadd.f32 %v2173, %v2285
      %2287 = vmatmul.f32.gmra.mxu0 %v2063
      %v2288 = vpop.f32.mrf.mxu0
      %v2289 = vadd.f32 %v2176, %v2288
      %2290 = vmatmul.f32.gmra.mxu0 %v2066
      %v2291 = vpop.f32.mrf.mxu0
      %v2292 = vadd.f32 %v2179, %v2291
      %2293 = vmatmul.f32.gmra.mxu0 %v2069
      %v2294 = vpop.f32.mrf.mxu0
      %v2295 = vadd.f32 %v2182, %v2294
      %2296 = vmatmul.f32.gmra.mxu0 %v2072
      %v2297 = vpop.f32.mrf.mxu0
      %v2298 = vadd.f32 %v2185, %v2297
      %2299 = vmatmul.f32.gmra.mxu0 %v2075
      %v2300 = vpop.f32.mrf.mxu0
      %v2301 = vadd.f32 %v2188, %v2300
      %2302 = vmatmul.f32.gmra.mxu0 %v2078
      %v2303 = vpop.f32.mrf.mxu0
      %v2304 = vadd.f32 %v2191, %v2303
      %2305 = vmatmul.f32.gmra.mxu0 %v2081
      %v2306 = vpop.f32.mrf.mxu0
      %v2307 = vadd.f32 %v2194, %v2306
      %2308 = vmatmul.f32.gmra.mxu0 %v2084
      %v2309 = vpop.f32.mrf.mxu0
      %v2310 = vadd.f32 %v2197, %v2309
      %2311 = vmatmul.f32.gmra.mxu0 %v2087
      %v2312 = vpop.f32.mrf.mxu0
      %v2313 = vadd.f32 %v2200, %v2312
      %2314 = vmatmul.f32.gmra.mxu0 %v2090
      %v2315 = vpop.f32.mrf.mxu0
      %v2316 = vadd.f32 %v2203, %v2315
      %2317 = vmatmul.f32.gmra.mxu0 %v2093
      %v2318 = vpop.f32.mrf.mxu0
      %v2319 = vadd.f32 %v2206, %v2318
      %2320 = vmatmul.f32.gmra.mxu0 %v2096
      %v2321 = vpop.f32.mrf.mxu0
      %v2322 = vadd.f32 %v2209, %v2321
      %2323 = vmatmul.f32.gmra.mxu0 %v2099
      %v2324 = vpop.f32.mrf.mxu0
      %v2325 = vadd.f32 %v2212, %v2324
      %2326 = vmatmul.f32.gmra.mxu0 %v2102
      %v2327 = vpop.f32.mrf.mxu0
      %v2328 = vadd.f32 %v2215, %v2327
      %2329 = vmatmul.f32.gmra.mxu0 %v2105
      %v2330 = vpop.f32.mrf.mxu0
      %v2331 = vadd.f32 %v2218, %v2330
      %2332 = vmatmul.f32.gmra.mxu0 %v2108
      %v2333 = vpop.f32.mrf.mxu0
      %v2334 = vadd.f32 %v2221, %v2333
      %2335 = vmatmul.f32.gmra.mxu0 %v2111
      %v2336 = vpop.f32.mrf.mxu0
      %v2337 = vadd.f32 %v2224, %v2336
      %2338 = vmatmul.f32.gmra.mxu0 %v2114
      %v2339 = vpop.f32.mrf.mxu0
      %v2340 = vadd.f32 %v2227, %v2339
      %2341 = vmatmul.f32.gmra.mxu0 %v2117
      %v2342 = vpop.f32.mrf.mxu0
      %v2343 = vadd.f32 %v2230, %v2342
      %2344 = vmatmul.f32.gmra.mxu0 %v2120
      %v2345 = vpop.f32.mrf.mxu0
      %v2346 = vadd.f32 %v2233, %v2345
      %2347 = vdwg.mxu0
      %v2348 = vmax.f32 %v2253, 0.0
      %v2349 = vmax.f32 %v2256, 0.0
      %v2350 = vmax.f32 %v2259, 0.0
      %v2351 = vmax.f32 %v2262, 0.0
      %v2352 = vmax.f32 %v2265, 0.0
      %v2353 = vmax.f32 %v2268, 0.0
      %v2354 = vmax.f32 %v2271, 0.0
      %v2355 = vmax.f32 %v2274, 0.0
      %v2356 = vmax.f32 %v2277, 0.0
      %v2357 = vmax.f32 %v2280, 0.0
      %v2358 = vmax.f32 %v2283, 0.0
      %v2359 = vmax.f32 %v2286, 0.0
      %v2360 = vmax.f32 %v2289, 0.0
      %v2361 = vmax.f32 %v2292, 0.0
      %v2362 = vmax.f32 %v2295, 0.0
      %v2363 = vmax.f32 %v2298, 0.0
      %v2364 = vmax.f32 %v2301, 0.0
      %v2365 = vmax.f32 %v2304, 0.0
      %v2366 = vmax.f32 %v2307, 0.0
      %v2367 = vmax.f32 %v2310, 0.0
      %v2368 = vmax.f32 %v2313, 0.0
      %v2369 = vmax.f32 %v2316, 0.0
      %v2370 = vmax.f32 %v2319, 0.0
      %v2371 = vmax.f32 %v2322, 0.0
      %v2372 = vmax.f32 %v2325, 0.0
      %v2373 = vmax.f32 %v2328, 0.0
      %v2374 = vmax.f32 %v2331, 0.0
      %v2375 = vmax.f32 %v2334, 0.0
      %v2376 = vmax.f32 %v2337, 0.0
      %v2377 = vmax.f32 %v2340, 0.0
      %v2378 = vmax.f32 %v2343, 0.0
      %v2379 = vmax.f32 %v2346, 0.0
      %vm2380 = vcmask 326656
      %2381 = vst.msk [vmem:[#allocation3] sm:$0xff] %vm2380, 0.0
      %2382 = vst.msk [vmem:[#allocation3 + $0x8] sm:$0xff] %vm2380, 0.0
      %2383 = vst.msk [vmem:[#allocation3 + $0x10] sm:$0xff] %vm2380, 0.0
      %2384 = vst.msk [vmem:[#allocation3 + $0x18] sm:$0xff] %vm2380, 0.0
      %2385 = vst.msk [vmem:[#allocation3 + $0x20] sm:$0xff] %vm2380, 0.0
      %2386 = vst.msk [vmem:[#allocation3 + $0x28] sm:$0xff] %vm2380, 0.0
      %s2387 = scalar_lea.vmem [#allocation3], 304
      %2388 = vst.msk [vmem:[%s2387] sm:$0xff] %vm2380, 0.0
      %2389 = vst.msk [vmem:[%s2387 + $0x8] sm:$0xff] %vm2380, 0.0
      %2390 = vst.msk [vmem:[%s2387 + $0x10] sm:$0xff] %vm2380, 0.0
      %2391 = vst.msk [vmem:[%s2387 + $0x18] sm:$0xff] %vm2380, 0.0
      %2392 = vst.msk [vmem:[%s2387 + $0x20] sm:$0xff] %vm2380, 0.0
      %2393 = vst.msk [vmem:[%s2387 + $0x28] sm:$0xff] %vm2380, 0.0
      %v2394 = vrot.slane %v2352, 4
      %vm2395 = vcmask 1047556
      %v2396 = vsel %vm2395, %v2394, %v2348
      %v2397 = vrot.slane %v2348, 4
      %v2398 = vsel %vm2395, %v2352, %v2397
      %v2400 = vunpack.c.l.s4 1983009808
      %v2401 = vunpack.c.0.s8 %v2400
      %v2402 = vperm.slane %v2396, %v2401
      %v2404 = vunpack.c.l.s4 1983009808
      %v2405 = vunpack.c.0.s8 %v2404
      %v2406 = vperm.slane %v2398, %v2405
      %v2407 = vrot.slane %v2354, 4
      %v2408 = vsel %vm2395, %v2407, %v2350
      %v2409 = vrot.slane %v2350, 4
      %v2410 = vsel %vm2395, %v2354, %v2409
      %v2412 = vunpack.c.l.s4 1983009808
      %v2413 = vunpack.c.0.s8 %v2412
      %v2414 = vperm.slane %v2408, %v2413
      %v2416 = vunpack.c.l.s4 1983009808
      %v2417 = vunpack.c.0.s8 %v2416
      %v2418 = vperm.slane %v2410, %v2417
      %v2419 = vrot.slane %v2360, 4
      %v2420 = vsel %vm2395, %v2419, %v2356
      %v2421 = vrot.slane %v2356, 4
      %v2422 = vsel %vm2395, %v2360, %v2421
      %v2424 = vunpack.c.l.s4 1983009808
      %v2425 = vunpack.c.0.s8 %v2424
      %v2426 = vperm.slane %v2420, %v2425
      %v2428 = vunpack.c.l.s4 1983009808
      %v2429 = vunpack.c.0.s8 %v2428
      %v2430 = vperm.slane %v2422, %v2429
      %v2431 = vrot.slane %v2362, 4
      %v2432 = vsel %vm2395, %v2431, %v2358
      %v2433 = vrot.slane %v2358, 4
      %v2434 = vsel %vm2395, %v2362, %v2433
      %v2436 = vunpack.c.l.s4 1983009808
      %v2437 = vunpack.c.0.s8 %v2436
      %v2438 = vperm.slane %v2432, %v2437
      %v2440 = vunpack.c.l.s4 1983009808
      %v2441 = vunpack.c.0.s8 %v2440
      %v2442 = vperm.slane %v2434, %v2441
      %v2443 = vrot.slane %v2414, 4
      %v2444 = vsel %vm2395, %v2443, %v2402
      %v2445 = vrot.slane %v2402, 4
      %v2446 = vsel %vm2395, %v2414, %v2445
      %v2448 = vunpack.c.l.s4 1934713408
      %v2449 = vunpack.c.0.s8 %v2448
      %v2450 = vperm.slane %v2444, %v2449
      %v2452 = vunpack.c.l.s4 1934713408
      %v2453 = vunpack.c.0.s8 %v2452
      %v2454 = vperm.slane %v2446, %v2453
      %v2455 = vrot.slane %v2418, 4
      %v2456 = vsel %vm2395, %v2455, %v2406
      %v2457 = vrot.slane %v2406, 4
      %v2458 = vsel %vm2395, %v2418, %v2457
      %v2460 = vunpack.c.l.s4 1934713408
      %v2461 = vunpack.c.0.s8 %v2460
      %v2462 = vperm.slane %v2456, %v2461
      %v2464 = vunpack.c.l.s4 1934713408
      %v2465 = vunpack.c.0.s8 %v2464
      %v2466 = vperm.slane %v2458, %v2465
      %v2467 = vrot.slane %v2438, 4
      %v2468 = vsel %vm2395, %v2467, %v2426
      %v2469 = vrot.slane %v2426, 4
      %v2470 = vsel %vm2395, %v2438, %v2469
      %v2472 = vunpack.c.l.s4 1934713408
      %v2473 = vunpack.c.0.s8 %v2472
      %v2474 = vperm.slane %v2468, %v2473
      %v2476 = vunpack.c.l.s4 1934713408
      %v2477 = vunpack.c.0.s8 %v2476
      %v2478 = vperm.slane %v2470, %v2477
      %v2479 = vrot.slane %v2442, 4
      %v2480 = vsel %vm2395, %v2479, %v2430
      %v2481 = vrot.slane %v2430, 4
      %v2482 = vsel %vm2395, %v2442, %v2481
      %v2484 = vunpack.c.l.s4 1934713408
      %v2485 = vunpack.c.0.s8 %v2484
      %v2486 = vperm.slane %v2480, %v2485
      %v2488 = vunpack.c.l.s4 1934713408
      %v2489 = vunpack.c.0.s8 %v2488
      %v2490 = vperm.slane %v2482, %v2489
      %v2491 = vrot.slane %v2474, 4
      %v2492 = vsel %vm2395, %v2491, %v2450
      %v2493 = vrot.slane %v2450, 4
      %v2494 = vsel %vm2395, %v2474, %v2493
      %v2495 = vrot.slane %v2478, 4
      %v2496 = vsel %vm2395, %v2495, %v2454
      %v2497 = vrot.slane %v2454, 4
      %v2498 = vsel %vm2395, %v2478, %v2497
      %v2499 = vrot.slane %v2486, 4
      %v2500 = vsel %vm2395, %v2499, %v2462
      %v2501 = vrot.slane %v2462, 4
      %v2502 = vsel %vm2395, %v2486, %v2501
      %v2503 = vrot.slane %v2490, 4
      %v2504 = vsel %vm2395, %v2503, %v2466
      %v2505 = vrot.slane %v2466, 4
      %v2506 = vsel %vm2395, %v2490, %v2505
      %v2507 = vrot.slane %v2368, 4
      %v2508 = vsel %vm2395, %v2507, %v2364
      %v2509 = vrot.slane %v2364, 4
      %v2510 = vsel %vm2395, %v2368, %v2509
      %v2512 = vunpack.c.l.s4 1983009808
      %v2513 = vunpack.c.0.s8 %v2512
      %v2514 = vperm.slane %v2508, %v2513
      %v2516 = vunpack.c.l.s4 1983009808
      %v2517 = vunpack.c.0.s8 %v2516
      %v2518 = vperm.slane %v2510, %v2517
      %v2519 = vrot.slane %v2370, 4
      %v2520 = vsel %vm2395, %v2519, %v2366
      %v2521 = vrot.slane %v2366, 4
      %v2522 = vsel %vm2395, %v2370, %v2521
      %v2524 = vunpack.c.l.s4 1983009808
      %v2525 = vunpack.c.0.s8 %v2524
      %v2526 = vperm.slane %v2520, %v2525
      %v2528 = vunpack.c.l.s4 1983009808
      %v2529 = vunpack.c.0.s8 %v2528
      %v2530 = vperm.slane %v2522, %v2529
      %v2531 = vrot.slane %v2376, 4
      %v2532 = vsel %vm2395, %v2531, %v2372
      %v2533 = vrot.slane %v2372, 4
      %v2534 = vsel %vm2395, %v2376, %v2533
      %v2536 = vunpack.c.l.s4 1983009808
      %v2537 = vunpack.c.0.s8 %v2536
      %v2538 = vperm.slane %v2532, %v2537
      %v2540 = vunpack.c.l.s4 1983009808
      %v2541 = vunpack.c.0.s8 %v2540
      %v2542 = vperm.slane %v2534, %v2541
      %v2543 = vrot.slane %v2378, 4
      %v2544 = vsel %vm2395, %v2543, %v2374
      %v2545 = vrot.slane %v2374, 4
      %v2546 = vsel %vm2395, %v2378, %v2545
      %v2548 = vunpack.c.l.s4 1983009808
      %v2549 = vunpack.c.0.s8 %v2548
      %v2550 = vperm.slane %v2544, %v2549
      %v2552 = vunpack.c.l.s4 1983009808
      %v2553 = vunpack.c.0.s8 %v2552
      %v2554 = vperm.slane %v2546, %v2553
      %v2555 = vrot.slane %v2526, 4
      %v2556 = vsel %vm2395, %v2555, %v2514
      %v2557 = vrot.slane %v2514, 4
      %v2558 = vsel %vm2395, %v2526, %v2557
      %v2560 = vunpack.c.l.s4 1934713408
      %v2561 = vunpack.c.0.s8 %v2560
      %v2562 = vperm.slane %v2556, %v2561
      %v2564 = vunpack.c.l.s4 1934713408
      %v2565 = vunpack.c.0.s8 %v2564
      %v2566 = vperm.slane %v2558, %v2565
      %v2567 = vrot.slane %v2530, 4
      %v2568 = vsel %vm2395, %v2567, %v2518
      %v2569 = vrot.slane %v2518, 4
      %v2570 = vsel %vm2395, %v2530, %v2569
      %v2572 = vunpack.c.l.s4 1934713408
      %v2573 = vunpack.c.0.s8 %v2572
      %v2574 = vperm.slane %v2568, %v2573
      %v2576 = vunpack.c.l.s4 1934713408
      %v2577 = vunpack.c.0.s8 %v2576
      %v2578 = vperm.slane %v2570, %v2577
      %v2579 = vrot.slane %v2550, 4
      %v2580 = vsel %vm2395, %v2579, %v2538
      %v2581 = vrot.slane %v2538, 4
      %v2582 = vsel %vm2395, %v2550, %v2581
      %v2584 = vunpack.c.l.s4 1934713408
      %v2585 = vunpack.c.0.s8 %v2584
      %v2586 = vperm.slane %v2580, %v2585
      %v2588 = vunpack.c.l.s4 1934713408
      %v2589 = vunpack.c.0.s8 %v2588
      %v2590 = vperm.slane %v2582, %v2589
      %v2591 = vrot.slane %v2554, 4
      %v2592 = vsel %vm2395, %v2591, %v2542
      %v2593 = vrot.slane %v2542, 4
      %v2594 = vsel %vm2395, %v2554, %v2593
      %v2596 = vunpack.c.l.s4 1934713408
      %v2597 = vunpack.c.0.s8 %v2596
      %v2598 = vperm.slane %v2592, %v2597
      %v2600 = vunpack.c.l.s4 1934713408
      %v2601 = vunpack.c.0.s8 %v2600
      %v2602 = vperm.slane %v2594, %v2601
      %v2603 = vrot.slane %v2586, 4
      %v2604 = vsel %vm2395, %v2603, %v2562
      %v2605 = vrot.slane %v2562, 4
      %v2606 = vsel %vm2395, %v2586, %v2605
      %v2607 = vrot.slane %v2590, 4
      %v2608 = vsel %vm2395, %v2607, %v2566
      %v2609 = vrot.slane %v2566, 4
      %v2610 = vsel %vm2395, %v2590, %v2609
      %v2611 = vrot.slane %v2598, 4
      %v2612 = vsel %vm2395, %v2611, %v2574
      %v2613 = vrot.slane %v2574, 4
      %v2614 = vsel %vm2395, %v2598, %v2613
      %v2615 = vrot.slane %v2602, 4
      %v2616 = vsel %vm2395, %v2615, %v2578
      %v2617 = vrot.slane %v2578, 4
      %v2618 = vsel %vm2395, %v2602, %v2617
      %v2619 = vrot.slane %v2353, 4
      %v2620 = vsel %vm2395, %v2619, %v2349
      %v2621 = vrot.slane %v2349, 4
      %v2622 = vsel %vm2395, %v2353, %v2621
      %v2624 = vunpack.c.l.s4 1983009808
      %v2625 = vunpack.c.0.s8 %v2624
      %v2626 = vperm.slane %v2620, %v2625
      %v2628 = vunpack.c.l.s4 1983009808
      %v2629 = vunpack.c.0.s8 %v2628
      %v2630 = vperm.slane %v2622, %v2629
      %v2631 = vrot.slane %v2355, 4
      %v2632 = vsel %vm2395, %v2631, %v2351
      %v2633 = vrot.slane %v2351, 4
      %v2634 = vsel %vm2395, %v2355, %v2633
      %v2636 = vunpack.c.l.s4 1983009808
      %v2637 = vunpack.c.0.s8 %v2636
      %v2638 = vperm.slane %v2632, %v2637
      %v2640 = vunpack.c.l.s4 1983009808
      %v2641 = vunpack.c.0.s8 %v2640
      %v2642 = vperm.slane %v2634, %v2641
      %v2643 = vrot.slane %v2361, 4
      %v2644 = vsel %vm2395, %v2643, %v2357
      %v2645 = vrot.slane %v2357, 4
      %v2646 = vsel %vm2395, %v2361, %v2645
      %v2648 = vunpack.c.l.s4 1983009808
      %v2649 = vunpack.c.0.s8 %v2648
      %v2650 = vperm.slane %v2644, %v2649
      %v2652 = vunpack.c.l.s4 1983009808
      %v2653 = vunpack.c.0.s8 %v2652
      %v2654 = vperm.slane %v2646, %v2653
      %v2655 = vrot.slane %v2363, 4
      %v2656 = vsel %vm2395, %v2655, %v2359
      %v2657 = vrot.slane %v2359, 4
      %v2658 = vsel %vm2395, %v2363, %v2657
      %v2660 = vunpack.c.l.s4 1983009808
      %v2661 = vunpack.c.0.s8 %v2660
      %v2662 = vperm.slane %v2656, %v2661
      %v2664 = vunpack.c.l.s4 1983009808
      %v2665 = vunpack.c.0.s8 %v2664
      %v2666 = vperm.slane %v2658, %v2665
      %v2667 = vrot.slane %v2638, 4
      %v2668 = vsel %vm2395, %v2667, %v2626
      %v2669 = vrot.slane %v2626, 4
      %v2670 = vsel %vm2395, %v2638, %v2669
      %v2672 = vunpack.c.l.s4 1934713408
      %v2673 = vunpack.c.0.s8 %v2672
      %v2674 = vperm.slane %v2668, %v2673
      %v2676 = vunpack.c.l.s4 1934713408
      %v2677 = vunpack.c.0.s8 %v2676
      %v2678 = vperm.slane %v2670, %v2677
      %v2679 = vrot.slane %v2642, 4
      %v2680 = vsel %vm2395, %v2679, %v2630
      %v2681 = vrot.slane %v2630, 4
      %v2682 = vsel %vm2395, %v2642, %v2681
      %v2684 = vunpack.c.l.s4 1934713408
      %v2685 = vunpack.c.0.s8 %v2684
      %v2686 = vperm.slane %v2680, %v2685
      %v2688 = vunpack.c.l.s4 1934713408
      %v2689 = vunpack.c.0.s8 %v2688
      %v2690 = vperm.slane %v2682, %v2689
      %v2691 = vrot.slane %v2662, 4
      %v2692 = vsel %vm2395, %v2691, %v2650
      %v2693 = vrot.slane %v2650, 4
      %v2694 = vsel %vm2395, %v2662, %v2693
      %v2696 = vunpack.c.l.s4 1934713408
      %v2697 = vunpack.c.0.s8 %v2696
      %v2698 = vperm.slane %v2692, %v2697
      %v2700 = vunpack.c.l.s4 1934713408
      %v2701 = vunpack.c.0.s8 %v2700
      %v2702 = vperm.slane %v2694, %v2701
      %v2703 = vrot.slane %v2666, 4
      %v2704 = vsel %vm2395, %v2703, %v2654
      %v2705 = vrot.slane %v2654, 4
      %v2706 = vsel %vm2395, %v2666, %v2705
      %v2708 = vunpack.c.l.s4 1934713408
      %v2709 = vunpack.c.0.s8 %v2708
      %v2710 = vperm.slane %v2704, %v2709
      %v2712 = vunpack.c.l.s4 1934713408
      %v2713 = vunpack.c.0.s8 %v2712
      %v2714 = vperm.slane %v2706, %v2713
      %v2715 = vrot.slane %v2698, 4
      %v2716 = vsel %vm2395, %v2715, %v2674
      %v2717 = vrot.slane %v2674, 4
      %v2718 = vsel %vm2395, %v2698, %v2717
      %v2719 = vrot.slane %v2702, 4
      %v2720 = vsel %vm2395, %v2719, %v2678
      %v2721 = vrot.slane %v2678, 4
      %v2722 = vsel %vm2395, %v2702, %v2721
      %v2723 = vrot.slane %v2710, 4
      %v2724 = vsel %vm2395, %v2723, %v2686
      %v2725 = vrot.slane %v2686, 4
      %v2726 = vsel %vm2395, %v2710, %v2725
      %v2727 = vrot.slane %v2714, 4
      %v2728 = vsel %vm2395, %v2727, %v2690
      %v2729 = vrot.slane %v2690, 4
      %v2730 = vsel %vm2395, %v2714, %v2729
      %v2731 = vrot.slane %v2369, 4
      %v2732 = vsel %vm2395, %v2731, %v2365
      %v2733 = vrot.slane %v2365, 4
      %v2734 = vsel %vm2395, %v2369, %v2733
      %v2736 = vunpack.c.l.s4 1983009808
      %v2737 = vunpack.c.0.s8 %v2736
      %v2738 = vperm.slane %v2732, %v2737
      %v2740 = vunpack.c.l.s4 1983009808
      %v2741 = vunpack.c.0.s8 %v2740
      %v2742 = vperm.slane %v2734, %v2741
      %v2743 = vrot.slane %v2371, 4
      %v2744 = vsel %vm2395, %v2743, %v2367
      %v2745 = vrot.slane %v2367, 4
      %v2746 = vsel %vm2395, %v2371, %v2745
      %v2748 = vunpack.c.l.s4 1983009808
      %v2749 = vunpack.c.0.s8 %v2748
      %v2750 = vperm.slane %v2744, %v2749
      %v2752 = vunpack.c.l.s4 1983009808
      %v2753 = vunpack.c.0.s8 %v2752
      %v2754 = vperm.slane %v2746, %v2753
      %v2755 = vrot.slane %v2377, 4
      %v2756 = vsel %vm2395, %v2755, %v2373
      %v2757 = vrot.slane %v2373, 4
      %v2758 = vsel %vm2395, %v2377, %v2757
      %v2760 = vunpack.c.l.s4 1983009808
      %v2761 = vunpack.c.0.s8 %v2760
      %v2762 = vperm.slane %v2756, %v2761
      %v2764 = vunpack.c.l.s4 1983009808
      %v2765 = vunpack.c.0.s8 %v2764
      %v2766 = vperm.slane %v2758, %v2765
      %v2767 = vrot.slane %v2379, 4
      %v2768 = vsel %vm2395, %v2767, %v2375
      %v2769 = vrot.slane %v2375, 4
      %v2770 = vsel %vm2395, %v2379, %v2769
      %v2772 = vunpack.c.l.s4 1983009808
      %v2773 = vunpack.c.0.s8 %v2772
      %v2774 = vperm.slane %v2768, %v2773
      %v2776 = vunpack.c.l.s4 1983009808
      %v2777 = vunpack.c.0.s8 %v2776
      %v2778 = vperm.slane %v2770, %v2777
      %v2779 = vrot.slane %v2750, 4
      %v2780 = vsel %vm2395, %v2779, %v2738
      %v2781 = vrot.slane %v2738, 4
      %v2782 = vsel %vm2395, %v2750, %v2781
      %v2784 = vunpack.c.l.s4 1934713408
      %v2785 = vunpack.c.0.s8 %v2784
      %v2786 = vperm.slane %v2780, %v2785
      %v2788 = vunpack.c.l.s4 1934713408
      %v2789 = vunpack.c.0.s8 %v2788
      %v2790 = vperm.slane %v2782, %v2789
      %v2791 = vrot.slane %v2754, 4
      %v2792 = vsel %vm2395, %v2791, %v2742
      %v2793 = vrot.slane %v2742, 4
      %v2794 = vsel %vm2395, %v2754, %v2793
      %v2796 = vunpack.c.l.s4 1934713408
      %v2797 = vunpack.c.0.s8 %v2796
      %v2798 = vperm.slane %v2792, %v2797
      %v2800 = vunpack.c.l.s4 1934713408
      %v2801 = vunpack.c.0.s8 %v2800
      %v2802 = vperm.slane %v2794, %v2801
      %v2803 = vrot.slane %v2774, 4
      %v2804 = vsel %vm2395, %v2803, %v2762
      %v2805 = vrot.slane %v2762, 4
      %v2806 = vsel %vm2395, %v2774, %v2805
      %v2808 = vunpack.c.l.s4 1934713408
      %v2809 = vunpack.c.0.s8 %v2808
      %v2810 = vperm.slane %v2804, %v2809
      %v2812 = vunpack.c.l.s4 1934713408
      %v2813 = vunpack.c.0.s8 %v2812
      %v2814 = vperm.slane %v2806, %v2813
      %v2815 = vrot.slane %v2778, 4
      %v2816 = vsel %vm2395, %v2815, %v2766
      %v2817 = vrot.slane %v2766, 4
      %v2818 = vsel %vm2395, %v2778, %v2817
      %v2820 = vunpack.c.l.s4 1934713408
      %v2821 = vunpack.c.0.s8 %v2820
      %v2822 = vperm.slane %v2816, %v2821
      %v2824 = vunpack.c.l.s4 1934713408
      %v2825 = vunpack.c.0.s8 %v2824
      %v2826 = vperm.slane %v2818, %v2825
      %v2827 = vrot.slane %v2810, 4
      %v2828 = vsel %vm2395, %v2827, %v2786
      %v2829 = vrot.slane %v2786, 4
      %v2830 = vsel %vm2395, %v2810, %v2829
      %v2831 = vrot.slane %v2814, 4
      %v2832 = vsel %vm2395, %v2831, %v2790
      %v2833 = vrot.slane %v2790, 4
      %v2834 = vsel %vm2395, %v2814, %v2833
      %v2835 = vrot.slane %v2822, 4
      %v2836 = vsel %vm2395, %v2835, %v2798
      %v2837 = vrot.slane %v2798, 4
      %v2838 = vsel %vm2395, %v2822, %v2837
      %v2839 = vrot.slane %v2826, 4
      %v2840 = vsel %vm2395, %v2839, %v2802
      %v2841 = vrot.slane %v2802, 4
      %v2842 = vsel %vm2395, %v2826, %v2841
      %s2843 = scalar_lea.vmem [#allocation3], 48
      %2844 = vst.msk [vmem:[%s2843] sm:$0xff] %vm2380, %v2492
      %2845 = vst.msk [vmem:[%s2843 + $0x8] sm:$0xff] %vm2380, %v2604
      %2846 = vst.msk [vmem:[%s2843 + $0x10] sm:$0xff] %vm2380, %v2494
      %2847 = vst.msk [vmem:[%s2843 + $0x18] sm:$0xff] %vm2380, %v2606
      %2848 = vst.msk [vmem:[%s2843 + $0x20] sm:$0xff] %vm2380, %v2496
      %2849 = vst.msk [vmem:[%s2843 + $0x28] sm:$0xff] %vm2380, %v2608
      %2850 = vst.msk [vmem:[%s2843 + $0x30] sm:$0xff] %vm2380, %v2498
      %2851 = vst.msk [vmem:[%s2843 + $0x38] sm:$0xff] %vm2380, %v2610
      %2852 = vst.msk [vmem:[%s2843 + $0x40] sm:$0xff] %vm2380, %v2500
      %2853 = vst.msk [vmem:[%s2843 + $0x48] sm:$0xff] %vm2380, %v2612
      %2854 = vst.msk [vmem:[%s2843 + $0x50] sm:$0xff] %vm2380, %v2502
      %2855 = vst.msk [vmem:[%s2843 + $0x58] sm:$0xff] %vm2380, %v2614
      %2856 = vst.msk [vmem:[%s2843 + $0x60] sm:$0xff] %vm2380, %v2504
      %2857 = vst.msk [vmem:[%s2843 + $0x68] sm:$0xff] %vm2380, %v2616
      %2858 = vst.msk [vmem:[%s2843 + $0x70] sm:$0xff] %vm2380, %v2506
      %2859 = vst.msk [vmem:[%s2843 + $0x78] sm:$0xff] %vm2380, %v2618
      %2860 = vst.msk [vmem:[%s2843 + $0x80] sm:$0xff] %vm2380, %v2716
      %2861 = vst.msk [vmem:[%s2843 + $0x88] sm:$0xff] %vm2380, %v2828
      %2862 = vst.msk [vmem:[%s2843 + $0x90] sm:$0xff] %vm2380, %v2718
      %2863 = vst.msk [vmem:[%s2843 + $0x98] sm:$0xff] %vm2380, %v2830
      %2864 = vst.msk [vmem:[%s2843 + $0xa0] sm:$0xff] %vm2380, %v2720
      %2865 = vst.msk [vmem:[%s2843 + $0xa8] sm:$0xff] %vm2380, %v2832
      %2866 = vst.msk [vmem:[%s2843 + $0xb0] sm:$0xff] %vm2380, %v2722
      %2867 = vst.msk [vmem:[%s2843 + $0xb8] sm:$0xff] %vm2380, %v2834
      %2868 = vst.msk [vmem:[%s2843 + $0xc0] sm:$0xff] %vm2380, %v2724
      %2869 = vst.msk [vmem:[%s2843 + $0xc8] sm:$0xff] %vm2380, %v2836
      %2870 = vst.msk [vmem:[%s2843 + $0xd0] sm:$0xff] %vm2380, %v2726
      %2871 = vst.msk [vmem:[%s2843 + $0xd8] sm:$0xff] %vm2380, %v2838
      %2872 = vst.msk [vmem:[%s2843 + $0xe0] sm:$0xff] %vm2380, %v2728
      %2873 = vst.msk [vmem:[%s2843 + $0xe8] sm:$0xff] %vm2380, %v2840
      %2874 = vst.msk [vmem:[%s2843 + $0xf0] sm:$0xff] %vm2380, %v2730
      %2875 = vst.msk [vmem:[%s2843 + $0xf8] sm:$0xff] %vm2380, %v2842
      %v2876 = vld [vmem:[#allocation3] sm:$0xff]
      %v2877 = vld [vmem:[#allocation3 + $0x8] sm:$0xff]
      %v2878 = vld [vmem:[#allocation3 + $0x10] sm:$0xff]
      %v2879 = vld [vmem:[#allocation3 + $0x18] sm:$0xff]
      %v2880 = vld [vmem:[#allocation3 + $0x20] sm:$0xff]
      %v2881 = vld [vmem:[#allocation3 + $0x28] sm:$0xff]
      %v2882 = vld [vmem:[#allocation3 + $0x30] sm:$0xff]
      %v2883 = vld [vmem:[#allocation3 + $0x38] sm:$0xff]
      %v2884 = vld [vmem:[#allocation3 + $0x40] sm:$0xff]
      %v2885 = vld [vmem:[#allocation3 + $0x48] sm:$0xff]
      %v2886 = vld [vmem:[#allocation3 + $0x50] sm:$0xff]
      %v2887 = vld [vmem:[#allocation3 + $0x58] sm:$0xff]
      %v2888 = vld [vmem:[#allocation3 + $0x60] sm:$0xff]
      %v2889 = vld [vmem:[#allocation3 + $0x68] sm:$0xff]
      %v2890 = vld [vmem:[#allocation3 + $0x70] sm:$0xff]
      %v2891 = vld [vmem:[#allocation3 + $0x78] sm:$0xff]
      %v2892 = vld [vmem:[#allocation3 + $0x80] sm:$0xff]
      %v2893 = vld [vmem:[#allocation3 + $0x88] sm:$0xff]
      %v2894 = vld [vmem:[#allocation3 + $0x90] sm:$0xff]
      %v2895 = vld [vmem:[#allocation3 + $0x98] sm:$0xff]
      %v2896 = vld [vmem:[#allocation3 + $0xa0] sm:$0xff]
      %v2897 = vld [vmem:[#allocation3 + $0xa8] sm:$0xff]
      %v2898 = vld [vmem:[#allocation3 + $0xb0] sm:$0xff]
      %v2899 = vld [vmem:[#allocation3 + $0xb8] sm:$0xff]
      %v2900 = vld [vmem:[#allocation3 + $0xc0] sm:$0xff]
      %v2901 = vld [vmem:[#allocation3 + $0xc8] sm:$0xff]
      %v2902 = vld [vmem:[#allocation3 + $0xd0] sm:$0xff]
      %v2903 = vld [vmem:[#allocation3 + $0xd8] sm:$0xff]
      %v2904 = vld [vmem:[#allocation3 + $0xe0] sm:$0xff]
      %v2905 = vld [vmem:[#allocation3 + $0xe8] sm:$0xff]
      %v2906 = vld [vmem:[#allocation3 + $0xf0] sm:$0xff]
      %v2907 = vld [vmem:[#allocation3 + $0xf8] sm:$0xff]
      %s2908 = scalar_lea.vmem [#allocation3], 16
      %v2909 = vld [vmem:[%s2908] sm:$0xff]
      %v2910 = vld [vmem:[%s2908 + $0x8] sm:$0xff]
      %v2911 = vld [vmem:[%s2908 + $0x10] sm:$0xff]
      %v2912 = vld [vmem:[%s2908 + $0x18] sm:$0xff]
      %v2913 = vld [vmem:[%s2908 + $0x20] sm:$0xff]
      %v2914 = vld [vmem:[%s2908 + $0x28] sm:$0xff]
      %v2915 = vld [vmem:[%s2908 + $0x30] sm:$0xff]
      %v2916 = vld [vmem:[%s2908 + $0x38] sm:$0xff]
      %v2917 = vld [vmem:[%s2908 + $0x40] sm:$0xff]
      %v2918 = vld [vmem:[%s2908 + $0x48] sm:$0xff]
      %v2919 = vld [vmem:[%s2908 + $0x50] sm:$0xff]
      %v2920 = vld [vmem:[%s2908 + $0x58] sm:$0xff]
      %v2921 = vld [vmem:[%s2908 + $0x60] sm:$0xff]
      %v2922 = vld [vmem:[%s2908 + $0x68] sm:$0xff]
      %v2923 = vld [vmem:[%s2908 + $0x70] sm:$0xff]
      %v2924 = vld [vmem:[%s2908 + $0x78] sm:$0xff]
      %v2925 = vld [vmem:[%s2908 + $0x80] sm:$0xff]
      %v2926 = vld [vmem:[%s2908 + $0x88] sm:$0xff]
      %v2927 = vld [vmem:[%s2908 + $0x90] sm:$0xff]
      %v2928 = vld [vmem:[%s2908 + $0x98] sm:$0xff]
      %v2929 = vld [vmem:[%s2908 + $0xa0] sm:$0xff]
      %v2930 = vld [vmem:[%s2908 + $0xa8] sm:$0xff]
      %v2931 = vld [vmem:[%s2908 + $0xb0] sm:$0xff]
      %v2932 = vld [vmem:[%s2908 + $0xb8] sm:$0xff]
      %v2933 = vld [vmem:[%s2908 + $0xc0] sm:$0xff]
      %v2934 = vld [vmem:[%s2908 + $0xc8] sm:$0xff]
      %v2935 = vld [vmem:[%s2908 + $0xd0] sm:$0xff]
      %v2936 = vld [vmem:[%s2908 + $0xd8] sm:$0xff]
      %v2937 = vld [vmem:[%s2908 + $0xe0] sm:$0xff]
      %v2938 = vld [vmem:[%s2908 + $0xe8] sm:$0xff]
      %v2939 = vld [vmem:[%s2908 + $0xf0] sm:$0xff]
      %v2940 = vld [vmem:[%s2908 + $0xf8] sm:$0xff]
      %s2941 = scalar_lea.vmem [#allocation3], 32
      %v2942 = vld [vmem:[%s2941] sm:$0xff]
      %v2943 = vld [vmem:[%s2941 + $0x8] sm:$0xff]
      %v2944 = vld [vmem:[%s2941 + $0x10] sm:$0xff]
      %v2945 = vld [vmem:[%s2941 + $0x18] sm:$0xff]
      %v2946 = vld [vmem:[%s2941 + $0x20] sm:$0xff]
      %v2947 = vld [vmem:[%s2941 + $0x28] sm:$0xff]
      %v2948 = vld [vmem:[%s2941 + $0x30] sm:$0xff]
      %v2949 = vld [vmem:[%s2941 + $0x38] sm:$0xff]
      %v2950 = vld [vmem:[%s2941 + $0x40] sm:$0xff]
      %v2951 = vld [vmem:[%s2941 + $0x48] sm:$0xff]
      %v2952 = vld [vmem:[%s2941 + $0x50] sm:$0xff]
      %v2953 = vld [vmem:[%s2941 + $0x58] sm:$0xff]
      %v2954 = vld [vmem:[%s2941 + $0x60] sm:$0xff]
      %v2955 = vld [vmem:[%s2941 + $0x68] sm:$0xff]
      %v2956 = vld [vmem:[%s2941 + $0x70] sm:$0xff]
      %v2957 = vld [vmem:[%s2941 + $0x78] sm:$0xff]
      %v2958 = vld [vmem:[%s2941 + $0x80] sm:$0xff]
      %v2959 = vld [vmem:[%s2941 + $0x88] sm:$0xff]
      %v2960 = vld [vmem:[%s2941 + $0x90] sm:$0xff]
      %v2961 = vld [vmem:[%s2941 + $0x98] sm:$0xff]
      %v2962 = vld [vmem:[%s2941 + $0xa0] sm:$0xff]
      %v2963 = vld [vmem:[%s2941 + $0xa8] sm:$0xff]
      %v2964 = vld [vmem:[%s2941 + $0xb0] sm:$0xff]
      %v2965 = vld [vmem:[%s2941 + $0xb8] sm:$0xff]
      %v2966 = vld [vmem:[%s2941 + $0xc0] sm:$0xff]
      %v2967 = vld [vmem:[%s2941 + $0xc8] sm:$0xff]
      %v2968 = vld [vmem:[%s2941 + $0xd0] sm:$0xff]
      %v2969 = vld [vmem:[%s2941 + $0xd8] sm:$0xff]
      %v2970 = vld [vmem:[%s2941 + $0xe0] sm:$0xff]
      %v2971 = vld [vmem:[%s2941 + $0xe8] sm:$0xff]
      %v2972 = vld [vmem:[%s2941 + $0xf0] sm:$0xff]
      %v2973 = vld [vmem:[%s2941 + $0xf8] sm:$0xff]
      %v2974 = vld [vmem:[%s2843] sm:$0xff]
      %v2975 = vld [vmem:[%s2843 + $0x8] sm:$0xff]
      %v2976 = vld [vmem:[%s2843 + $0x10] sm:$0xff]
      %v2977 = vld [vmem:[%s2843 + $0x18] sm:$0xff]
      %v2978 = vld [vmem:[%s2843 + $0x20] sm:$0xff]
      %v2979 = vld [vmem:[%s2843 + $0x28] sm:$0xff]
      %v2980 = vld [vmem:[%s2843 + $0x30] sm:$0xff]
      %v2981 = vld [vmem:[%s2843 + $0x38] sm:$0xff]
      %v2982 = vld [vmem:[%s2843 + $0x40] sm:$0xff]
      %v2983 = vld [vmem:[%s2843 + $0x48] sm:$0xff]
      %v2984 = vld [vmem:[%s2843 + $0x50] sm:$0xff]
      %v2985 = vld [vmem:[%s2843 + $0x58] sm:$0xff]
      %v2986 = vld [vmem:[%s2843 + $0x60] sm:$0xff]
      %v2987 = vld [vmem:[%s2843 + $0x68] sm:$0xff]
      %v2988 = vld [vmem:[%s2843 + $0x70] sm:$0xff]
      %v2989 = vld [vmem:[%s2843 + $0x78] sm:$0xff]
      %v2990 = vld [vmem:[%s2843 + $0x80] sm:$0xff]
      %v2991 = vld [vmem:[%s2843 + $0x88] sm:$0xff]
      %v2992 = vld [vmem:[%s2843 + $0x90] sm:$0xff]
      %v2993 = vld [vmem:[%s2843 + $0x98] sm:$0xff]
      %v2994 = vld [vmem:[%s2843 + $0xa0] sm:$0xff]
      %v2995 = vld [vmem:[%s2843 + $0xa8] sm:$0xff]
      %v2996 = vld [vmem:[%s2843 + $0xb0] sm:$0xff]
      %v2997 = vld [vmem:[%s2843 + $0xb8] sm:$0xff]
      %v2998 = vld [vmem:[%s2843 + $0xc0] sm:$0xff]
      %v2999 = vld [vmem:[%s2843 + $0xc8] sm:$0xff]
      %v3000 = vld [vmem:[%s2843 + $0xd0] sm:$0xff]
      %v3001 = vld [vmem:[%s2843 + $0xd8] sm:$0xff]
      %v3002 = vld [vmem:[%s2843 + $0xe0] sm:$0xff]
      %v3003 = vld [vmem:[%s2843 + $0xe8] sm:$0xff]
      %v3004 = vld [vmem:[%s2843 + $0xf0] sm:$0xff]
      %v3005 = vld [vmem:[%s2843 + $0xf8] sm:$0xff]
      %s3006 = scalar_lea.vmem [#allocation3], 64
      %v3007 = vld [vmem:[%s3006] sm:$0xff]
      %v3008 = vld [vmem:[%s3006 + $0x8] sm:$0xff]
      %v3009 = vld [vmem:[%s3006 + $0x10] sm:$0xff]
      %v3010 = vld [vmem:[%s3006 + $0x18] sm:$0xff]
      %v3011 = vld [vmem:[%s3006 + $0x20] sm:$0xff]
      %v3012 = vld [vmem:[%s3006 + $0x28] sm:$0xff]
      %v3013 = vld [vmem:[%s3006 + $0x30] sm:$0xff]
      %v3014 = vld [vmem:[%s3006 + $0x38] sm:$0xff]
      %v3015 = vld [vmem:[%s3006 + $0x40] sm:$0xff]
      %v3016 = vld [vmem:[%s3006 + $0x48] sm:$0xff]
      %v3017 = vld [vmem:[%s3006 + $0x50] sm:$0xff]
      %v3018 = vld [vmem:[%s3006 + $0x58] sm:$0xff]
      %v3019 = vld [vmem:[%s3006 + $0x60] sm:$0xff]
      %v3020 = vld [vmem:[%s3006 + $0x68] sm:$0xff]
      %v3021 = vld [vmem:[%s3006 + $0x70] sm:$0xff]
      %v3022 = vld [vmem:[%s3006 + $0x78] sm:$0xff]
      %v3023 = vld [vmem:[%s3006 + $0x80] sm:$0xff]
      %v3024 = vld [vmem:[%s3006 + $0x88] sm:$0xff]
      %v3025 = vld [vmem:[%s3006 + $0x90] sm:$0xff]
      %v3026 = vld [vmem:[%s3006 + $0x98] sm:$0xff]
      %v3027 = vld [vmem:[%s3006 + $0xa0] sm:$0xff]
      %v3028 = vld [vmem:[%s3006 + $0xa8] sm:$0xff]
      %v3029 = vld [vmem:[%s3006 + $0xb0] sm:$0xff]
      %v3030 = vld [vmem:[%s3006 + $0xb8] sm:$0xff]
      %v3031 = vld [vmem:[%s3006 + $0xc0] sm:$0xff]
      %v3032 = vld [vmem:[%s3006 + $0xc8] sm:$0xff]
      %v3033 = vld [vmem:[%s3006 + $0xd0] sm:$0xff]
      %v3034 = vld [vmem:[%s3006 + $0xd8] sm:$0xff]
      %v3035 = vld [vmem:[%s3006 + $0xe0] sm:$0xff]
      %v3036 = vld [vmem:[%s3006 + $0xe8] sm:$0xff]
      %v3037 = vld [vmem:[%s3006 + $0xf0] sm:$0xff]
      %v3038 = vld [vmem:[%s3006 + $0xf8] sm:$0xff]
      %s3039 = scalar_lea.vmem [#allocation3], 80
      %v3040 = vld [vmem:[%s3039] sm:$0xff]
      %v3041 = vld [vmem:[%s3039 + $0x8] sm:$0xff]
      %v3042 = vld [vmem:[%s3039 + $0x10] sm:$0xff]
      %v3043 = vld [vmem:[%s3039 + $0x18] sm:$0xff]
      %v3044 = vld [vmem:[%s3039 + $0x20] sm:$0xff]
      %v3045 = vld [vmem:[%s3039 + $0x28] sm:$0xff]
      %v3046 = vld [vmem:[%s3039 + $0x30] sm:$0xff]
      %v3047 = vld [vmem:[%s3039 + $0x38] sm:$0xff]
      %v3048 = vld [vmem:[%s3039 + $0x40] sm:$0xff]
      %v3049 = vld [vmem:[%s3039 + $0x48] sm:$0xff]
      %v3050 = vld [vmem:[%s3039 + $0x50] sm:$0xff]
      %v3051 = vld [vmem:[%s3039 + $0x58] sm:$0xff]
      %v3052 = vld [vmem:[%s3039 + $0x60] sm:$0xff]
      %v3053 = vld [vmem:[%s3039 + $0x68] sm:$0xff]
      %v3054 = vld [vmem:[%s3039 + $0x70] sm:$0xff]
      %v3055 = vld [vmem:[%s3039 + $0x78] sm:$0xff]
      %v3056 = vld [vmem:[%s3039 + $0x80] sm:$0xff]
      %v3057 = vld [vmem:[%s3039 + $0x88] sm:$0xff]
      %v3058 = vld [vmem:[%s3039 + $0x90] sm:$0xff]
      %v3059 = vld [vmem:[%s3039 + $0x98] sm:$0xff]
      %v3060 = vld [vmem:[%s3039 + $0xa0] sm:$0xff]
      %v3061 = vld [vmem:[%s3039 + $0xa8] sm:$0xff]
      %v3062 = vld [vmem:[%s3039 + $0xb0] sm:$0xff]
      %v3063 = vld [vmem:[%s3039 + $0xb8] sm:$0xff]
      %v3064 = vld [vmem:[%s3039 + $0xc0] sm:$0xff]
      %v3065 = vld [vmem:[%s3039 + $0xc8] sm:$0xff]
      %v3066 = vld [vmem:[%s3039 + $0xd0] sm:$0xff]
      %v3067 = vld [vmem:[%s3039 + $0xd8] sm:$0xff]
      %v3068 = vld [vmem:[%s3039 + $0xe0] sm:$0xff]
      %v3069 = vld [vmem:[%s3039 + $0xe8] sm:$0xff]
      %v3070 = vld [vmem:[%s3039 + $0xf0] sm:$0xff]
      %v3071 = vld [vmem:[%s3039 + $0xf8] sm:$0xff]
      %s3072 = scalar_lea.vmem [#allocation3], 96
      %v3073 = vld [vmem:[%s3072] sm:$0xff]
      %v3074 = vld [vmem:[%s3072 + $0x8] sm:$0xff]
      %v3075 = vld [vmem:[%s3072 + $0x10] sm:$0xff]
      %v3076 = vld [vmem:[%s3072 + $0x18] sm:$0xff]
      %v3077 = vld [vmem:[%s3072 + $0x20] sm:$0xff]
      %v3078 = vld [vmem:[%s3072 + $0x28] sm:$0xff]
      %v3079 = vld [vmem:[%s3072 + $0x30] sm:$0xff]
      %v3080 = vld [vmem:[%s3072 + $0x38] sm:$0xff]
      %v3081 = vld [vmem:[%s3072 + $0x40] sm:$0xff]
      %v3082 = vld [vmem:[%s3072 + $0x48] sm:$0xff]
      %v3083 = vld [vmem:[%s3072 + $0x50] sm:$0xff]
      %v3084 = vld [vmem:[%s3072 + $0x58] sm:$0xff]
      %v3085 = vld [vmem:[%s3072 + $0x60] sm:$0xff]
      %v3086 = vld [vmem:[%s3072 + $0x68] sm:$0xff]
      %v3087 = vld [vmem:[%s3072 + $0x70] sm:$0xff]
      %v3088 = vld [vmem:[%s3072 + $0x78] sm:$0xff]
      %v3089 = vld [vmem:[%s3072 + $0x80] sm:$0xff]
      %v3090 = vld [vmem:[%s3072 + $0x88] sm:$0xff]
      %v3091 = vld [vmem:[%s3072 + $0x90] sm:$0xff]
      %v3092 = vld [vmem:[%s3072 + $0x98] sm:$0xff]
      %v3093 = vld [vmem:[%s3072 + $0xa0] sm:$0xff]
      %v3094 = vld [vmem:[%s3072 + $0xa8] sm:$0xff]
      %v3095 = vld [vmem:[%s3072 + $0xb0] sm:$0xff]
      %v3096 = vld [vmem:[%s3072 + $0xb8] sm:$0xff]
      %v3097 = vld [vmem:[%s3072 + $0xc0] sm:$0xff]
      %v3098 = vld [vmem:[%s3072 + $0xc8] sm:$0xff]
      %v3099 = vld [vmem:[%s3072 + $0xd0] sm:$0xff]
      %v3100 = vld [vmem:[%s3072 + $0xd8] sm:$0xff]
      %v3101 = vld [vmem:[%s3072 + $0xe0] sm:$0xff]
      %v3102 = vld [vmem:[%s3072 + $0xe8] sm:$0xff]
      %v3103 = vld [vmem:[%s3072 + $0xf0] sm:$0xff]
      %v3104 = vld [vmem:[%s3072 + $0xf8] sm:$0xff]
      %3137 = vrot.lane.b32.xlu0 %v2909, 40
      %v3138 = vpop.permute.xlu0 %3137
      %3139 = vrot.lane.b32.xlu0 %v2910, 40
      %v3140 = vpop.permute.xlu0 %3139
      %3141 = vrot.lane.b32.xlu0 %v2911, 40
      %v3142 = vpop.permute.xlu0 %3141
      %3143 = vrot.lane.b32.xlu0 %v2912, 40
      %v3144 = vpop.permute.xlu0 %3143
      %3145 = vrot.lane.b32.xlu0 %v2913, 40
      %v3146 = vpop.permute.xlu0 %3145
      %3147 = vrot.lane.b32.xlu0 %v2914, 40
      %v3148 = vpop.permute.xlu0 %3147
      %3149 = vrot.lane.b32.xlu0 %v2915, 40
      %v3150 = vpop.permute.xlu0 %3149
      %3151 = vrot.lane.b32.xlu0 %v2916, 40
      %v3152 = vpop.permute.xlu0 %3151
      %3153 = vrot.lane.b32.xlu0 %v2917, 40
      %v3154 = vpop.permute.xlu0 %3153
      %3155 = vrot.lane.b32.xlu0 %v2918, 40
      %v3156 = vpop.permute.xlu0 %3155
      %3157 = vrot.lane.b32.xlu0 %v2919, 40
      %v3158 = vpop.permute.xlu0 %3157
      %3159 = vrot.lane.b32.xlu0 %v2920, 40
      %v3160 = vpop.permute.xlu0 %3159
      %3161 = vrot.lane.b32.xlu0 %v2921, 40
      %v3162 = vpop.permute.xlu0 %3161
      %3163 = vrot.lane.b32.xlu0 %v2922, 40
      %v3164 = vpop.permute.xlu0 %3163
      %3165 = vrot.lane.b32.xlu0 %v2923, 40
      %v3166 = vpop.permute.xlu0 %3165
      %3167 = vrot.lane.b32.xlu0 %v2924, 40
      %v3168 = vpop.permute.xlu0 %3167
      %3169 = vrot.lane.b32.xlu0 %v2925, 40
      %v3170 = vpop.permute.xlu0 %3169
      %3171 = vrot.lane.b32.xlu0 %v2926, 40
      %v3172 = vpop.permute.xlu0 %3171
      %3173 = vrot.lane.b32.xlu0 %v2927, 40
      %v3174 = vpop.permute.xlu0 %3173
      %3175 = vrot.lane.b32.xlu0 %v2928, 40
      %v3176 = vpop.permute.xlu0 %3175
      %3177 = vrot.lane.b32.xlu0 %v2929, 40
      %v3178 = vpop.permute.xlu0 %3177
      %3179 = vrot.lane.b32.xlu0 %v2930, 40
      %v3180 = vpop.permute.xlu0 %3179
      %3181 = vrot.lane.b32.xlu0 %v2931, 40
      %v3182 = vpop.permute.xlu0 %3181
      %3183 = vrot.lane.b32.xlu0 %v2932, 40
      %v3184 = vpop.permute.xlu0 %3183
      %3185 = vrot.lane.b32.xlu0 %v2933, 40
      %v3186 = vpop.permute.xlu0 %3185
      %3187 = vrot.lane.b32.xlu0 %v2934, 40
      %v3188 = vpop.permute.xlu0 %3187
      %3189 = vrot.lane.b32.xlu0 %v2935, 40
      %v3190 = vpop.permute.xlu0 %3189
      %3191 = vrot.lane.b32.xlu0 %v2936, 40
      %v3192 = vpop.permute.xlu0 %3191
      %3193 = vrot.lane.b32.xlu0 %v2937, 40
      %v3194 = vpop.permute.xlu0 %3193
      %3195 = vrot.lane.b32.xlu0 %v2938, 40
      %v3196 = vpop.permute.xlu0 %3195
      %3197 = vrot.lane.b32.xlu0 %v2939, 40
      %v3198 = vpop.permute.xlu0 %3197
      %3199 = vrot.lane.b32.xlu0 %v2940, 40
      %v3200 = vpop.permute.xlu0 %3199
      %3265 = vrot.lane.b32.xlu0 %v2942, 80
      %v3266 = vpop.permute.xlu0 %3265
      %3267 = vrot.lane.b32.xlu0 %v2943, 80
      %v3268 = vpop.permute.xlu0 %3267
      %3269 = vrot.lane.b32.xlu0 %v2944, 80
      %v3270 = vpop.permute.xlu0 %3269
      %3271 = vrot.lane.b32.xlu0 %v2945, 80
      %v3272 = vpop.permute.xlu0 %3271
      %3273 = vrot.lane.b32.xlu0 %v2946, 80
      %v3274 = vpop.permute.xlu0 %3273
      %3275 = vrot.lane.b32.xlu0 %v2947, 80
      %v3276 = vpop.permute.xlu0 %3275
      %3277 = vrot.lane.b32.xlu0 %v2948, 80
      %v3278 = vpop.permute.xlu0 %3277
      %3279 = vrot.lane.b32.xlu0 %v2949, 80
      %v3280 = vpop.permute.xlu0 %3279
      %3281 = vrot.lane.b32.xlu0 %v2950, 80
      %v3282 = vpop.permute.xlu0 %3281
      %3283 = vrot.lane.b32.xlu0 %v2951, 80
      %v3284 = vpop.permute.xlu0 %3283
      %3285 = vrot.lane.b32.xlu0 %v2952, 80
      %v3286 = vpop.permute.xlu0 %3285
      %3287 = vrot.lane.b32.xlu0 %v2953, 80
      %v3288 = vpop.permute.xlu0 %3287
      %3289 = vrot.lane.b32.xlu0 %v2954, 80
      %v3290 = vpop.permute.xlu0 %3289
      %3291 = vrot.lane.b32.xlu0 %v2955, 80
      %v3292 = vpop.permute.xlu0 %3291
      %3293 = vrot.lane.b32.xlu0 %v2956, 80
      %v3294 = vpop.permute.xlu0 %3293
      %3295 = vrot.lane.b32.xlu0 %v2957, 80
      %v3296 = vpop.permute.xlu0 %3295
      %3297 = vrot.lane.b32.xlu0 %v2958, 80
      %v3298 = vpop.permute.xlu0 %3297
      %3299 = vrot.lane.b32.xlu0 %v2959, 80
      %v3300 = vpop.permute.xlu0 %3299
      %3301 = vrot.lane.b32.xlu0 %v2960, 80
      %v3302 = vpop.permute.xlu0 %3301
      %3303 = vrot.lane.b32.xlu0 %v2961, 80
      %v3304 = vpop.permute.xlu0 %3303
      %3305 = vrot.lane.b32.xlu0 %v2962, 80
      %v3306 = vpop.permute.xlu0 %3305
      %3307 = vrot.lane.b32.xlu0 %v2963, 80
      %v3308 = vpop.permute.xlu0 %3307
      %3309 = vrot.lane.b32.xlu0 %v2964, 80
      %v3310 = vpop.permute.xlu0 %3309
      %3311 = vrot.lane.b32.xlu0 %v2965, 80
      %v3312 = vpop.permute.xlu0 %3311
      %3313 = vrot.lane.b32.xlu0 %v2966, 80
      %v3314 = vpop.permute.xlu0 %3313
      %3315 = vrot.lane.b32.xlu0 %v2967, 80
      %v3316 = vpop.permute.xlu0 %3315
      %3317 = vrot.lane.b32.xlu0 %v2968, 80
      %v3318 = vpop.permute.xlu0 %3317
      %3319 = vrot.lane.b32.xlu0 %v2969, 80
      %v3320 = vpop.permute.xlu0 %3319
      %3321 = vrot.lane.b32.xlu0 %v2970, 80
      %v3322 = vpop.permute.xlu0 %3321
      %3323 = vrot.lane.b32.xlu0 %v2971, 80
      %v3324 = vpop.permute.xlu0 %3323
      %3325 = vrot.lane.b32.xlu0 %v2972, 80
      %v3326 = vpop.permute.xlu0 %3325
      %3327 = vrot.lane.b32.xlu0 %v2973, 80
      %v3328 = vpop.permute.xlu0 %3327
      %3393 = vrot.lane.b32.xlu0 %v2974, 120
      %v3394 = vpop.permute.xlu0 %3393
      %3395 = vrot.lane.b32.xlu0 %v2975, 120
      %v3396 = vpop.permute.xlu0 %3395
      %3397 = vrot.lane.b32.xlu0 %v2976, 120
      %v3398 = vpop.permute.xlu0 %3397
      %3399 = vrot.lane.b32.xlu0 %v2977, 120
      %v3400 = vpop.permute.xlu0 %3399
      %3401 = vrot.lane.b32.xlu0 %v2978, 120
      %v3402 = vpop.permute.xlu0 %3401
      %3403 = vrot.lane.b32.xlu0 %v2979, 120
      %v3404 = vpop.permute.xlu0 %3403
      %3405 = vrot.lane.b32.xlu0 %v2980, 120
      %v3406 = vpop.permute.xlu0 %3405
      %3407 = vrot.lane.b32.xlu0 %v2981, 120
      %v3408 = vpop.permute.xlu0 %3407
      %3409 = vrot.lane.b32.xlu0 %v2982, 120
      %v3410 = vpop.permute.xlu0 %3409
      %3411 = vrot.lane.b32.xlu0 %v2983, 120
      %v3412 = vpop.permute.xlu0 %3411
      %3413 = vrot.lane.b32.xlu0 %v2984, 120
      %v3414 = vpop.permute.xlu0 %3413
      %3415 = vrot.lane.b32.xlu0 %v2985, 120
      %v3416 = vpop.permute.xlu0 %3415
      %3417 = vrot.lane.b32.xlu0 %v2986, 120
      %v3418 = vpop.permute.xlu0 %3417
      %3419 = vrot.lane.b32.xlu0 %v2987, 120
      %v3420 = vpop.permute.xlu0 %3419
      %3421 = vrot.lane.b32.xlu0 %v2988, 120
      %v3422 = vpop.permute.xlu0 %3421
      %3423 = vrot.lane.b32.xlu0 %v2989, 120
      %v3424 = vpop.permute.xlu0 %3423
      %3425 = vrot.lane.b32.xlu0 %v2990, 120
      %v3426 = vpop.permute.xlu0 %3425
      %3427 = vrot.lane.b32.xlu0 %v2991, 120
      %v3428 = vpop.permute.xlu0 %3427
      %3429 = vrot.lane.b32.xlu0 %v2992, 120
      %v3430 = vpop.permute.xlu0 %3429
      %3431 = vrot.lane.b32.xlu0 %v2993, 120
      %v3432 = vpop.permute.xlu0 %3431
      %3433 = vrot.lane.b32.xlu0 %v2994, 120
      %v3434 = vpop.permute.xlu0 %3433
      %3435 = vrot.lane.b32.xlu0 %v2995, 120
      %v3436 = vpop.permute.xlu0 %3435
      %3437 = vrot.lane.b32.xlu0 %v2996, 120
      %v3438 = vpop.permute.xlu0 %3437
      %3439 = vrot.lane.b32.xlu0 %v2997, 120
      %v3440 = vpop.permute.xlu0 %3439
      %3441 = vrot.lane.b32.xlu0 %v2998, 120
      %v3442 = vpop.permute.xlu0 %3441
      %3443 = vrot.lane.b32.xlu0 %v2999, 120
      %v3444 = vpop.permute.xlu0 %3443
      %3445 = vrot.lane.b32.xlu0 %v3000, 120
      %v3446 = vpop.permute.xlu0 %3445
      %3447 = vrot.lane.b32.xlu0 %v3001, 120
      %v3448 = vpop.permute.xlu0 %3447
      %3449 = vrot.lane.b32.xlu0 %v3002, 120
      %v3450 = vpop.permute.xlu0 %3449
      %3451 = vrot.lane.b32.xlu0 %v3003, 120
      %v3452 = vpop.permute.xlu0 %3451
      %3453 = vrot.lane.b32.xlu0 %v3004, 120
      %v3454 = vpop.permute.xlu0 %3453
      %3455 = vrot.lane.b32.xlu0 %v3005, 120
      %v3456 = vpop.permute.xlu0 %3455
      %3521 = vrot.lane.b32.xlu0 %v3007, 32
      %v3522 = vpop.permute.xlu0 %3521
      %3523 = vrot.lane.b32.xlu0 %v3008, 32
      %v3524 = vpop.permute.xlu0 %3523
      %3525 = vrot.lane.b32.xlu0 %v3009, 32
      %v3526 = vpop.permute.xlu0 %3525
      %3527 = vrot.lane.b32.xlu0 %v3010, 32
      %v3528 = vpop.permute.xlu0 %3527
      %3529 = vrot.lane.b32.xlu0 %v3011, 32
      %v3530 = vpop.permute.xlu0 %3529
      %3531 = vrot.lane.b32.xlu0 %v3012, 32
      %v3532 = vpop.permute.xlu0 %3531
      %3533 = vrot.lane.b32.xlu0 %v3013, 32
      %v3534 = vpop.permute.xlu0 %3533
      %3535 = vrot.lane.b32.xlu0 %v3014, 32
      %v3536 = vpop.permute.xlu0 %3535
      %3537 = vrot.lane.b32.xlu0 %v3015, 32
      %v3538 = vpop.permute.xlu0 %3537
      %3539 = vrot.lane.b32.xlu0 %v3016, 32
      %v3540 = vpop.permute.xlu0 %3539
      %3541 = vrot.lane.b32.xlu0 %v3017, 32
      %v3542 = vpop.permute.xlu0 %3541
      %3543 = vrot.lane.b32.xlu0 %v3018, 32
      %v3544 = vpop.permute.xlu0 %3543
      %3545 = vrot.lane.b32.xlu0 %v3019, 32
      %v3546 = vpop.permute.xlu0 %3545
      %3547 = vrot.lane.b32.xlu0 %v3020, 32
      %v3548 = vpop.permute.xlu0 %3547
      %3549 = vrot.lane.b32.xlu0 %v3021, 32
      %v3550 = vpop.permute.xlu0 %3549
      %3551 = vrot.lane.b32.xlu0 %v3022, 32
      %v3552 = vpop.permute.xlu0 %3551
      %3553 = vrot.lane.b32.xlu0 %v3023, 32
      %v3554 = vpop.permute.xlu0 %3553
      %3555 = vrot.lane.b32.xlu0 %v3024, 32
      %v3556 = vpop.permute.xlu0 %3555
      %3557 = vrot.lane.b32.xlu0 %v3025, 32
      %v3558 = vpop.permute.xlu0 %3557
      %3559 = vrot.lane.b32.xlu0 %v3026, 32
      %v3560 = vpop.permute.xlu0 %3559
      %3561 = vrot.lane.b32.xlu0 %v3027, 32
      %v3562 = vpop.permute.xlu0 %3561
      %3563 = vrot.lane.b32.xlu0 %v3028, 32
      %v3564 = vpop.permute.xlu0 %3563
      %3565 = vrot.lane.b32.xlu0 %v3029, 32
      %v3566 = vpop.permute.xlu0 %3565
      %3567 = vrot.lane.b32.xlu0 %v3030, 32
      %v3568 = vpop.permute.xlu0 %3567
      %3569 = vrot.lane.b32.xlu0 %v3031, 32
      %v3570 = vpop.permute.xlu0 %3569
      %3571 = vrot.lane.b32.xlu0 %v3032, 32
      %v3572 = vpop.permute.xlu0 %3571
      %3573 = vrot.lane.b32.xlu0 %v3033, 32
      %v3574 = vpop.permute.xlu0 %3573
      %3575 = vrot.lane.b32.xlu0 %v3034, 32
      %v3576 = vpop.permute.xlu0 %3575
      %3577 = vrot.lane.b32.xlu0 %v3035, 32
      %v3578 = vpop.permute.xlu0 %3577
      %3579 = vrot.lane.b32.xlu0 %v3036, 32
      %v3580 = vpop.permute.xlu0 %3579
      %3581 = vrot.lane.b32.xlu0 %v3037, 32
      %v3582 = vpop.permute.xlu0 %3581
      %3583 = vrot.lane.b32.xlu0 %v3038, 32
      %v3584 = vpop.permute.xlu0 %3583
      %3649 = vrot.lane.b32.xlu0 %v3040, 72
      %v3650 = vpop.permute.xlu0 %3649
      %3651 = vrot.lane.b32.xlu0 %v3041, 72
      %v3652 = vpop.permute.xlu0 %3651
      %3653 = vrot.lane.b32.xlu0 %v3042, 72
      %v3654 = vpop.permute.xlu0 %3653
      %3655 = vrot.lane.b32.xlu0 %v3043, 72
      %v3656 = vpop.permute.xlu0 %3655
      %3657 = vrot.lane.b32.xlu0 %v3044, 72
      %v3658 = vpop.permute.xlu0 %3657
      %3659 = vrot.lane.b32.xlu0 %v3045, 72
      %v3660 = vpop.permute.xlu0 %3659
      %3661 = vrot.lane.b32.xlu0 %v3046, 72
      %v3662 = vpop.permute.xlu0 %3661
      %3663 = vrot.lane.b32.xlu0 %v3047, 72
      %v3664 = vpop.permute.xlu0 %3663
      %3665 = vrot.lane.b32.xlu0 %v3048, 72
      %v3666 = vpop.permute.xlu0 %3665
      %3667 = vrot.lane.b32.xlu0 %v3049, 72
      %v3668 = vpop.permute.xlu0 %3667
      %3669 = vrot.lane.b32.xlu0 %v3050, 72
      %v3670 = vpop.permute.xlu0 %3669
      %3671 = vrot.lane.b32.xlu0 %v3051, 72
      %v3672 = vpop.permute.xlu0 %3671
      %3673 = vrot.lane.b32.xlu0 %v3052, 72
      %v3674 = vpop.permute.xlu0 %3673
      %3675 = vrot.lane.b32.xlu0 %v3053, 72
      %v3676 = vpop.permute.xlu0 %3675
      %3677 = vrot.lane.b32.xlu0 %v3054, 72
      %v3678 = vpop.permute.xlu0 %3677
      %3679 = vrot.lane.b32.xlu0 %v3055, 72
      %v3680 = vpop.permute.xlu0 %3679
      %3681 = vrot.lane.b32.xlu0 %v3056, 72
      %v3682 = vpop.permute.xlu0 %3681
      %3683 = vrot.lane.b32.xlu0 %v3057, 72
      %v3684 = vpop.permute.xlu0 %3683
      %3685 = vrot.lane.b32.xlu0 %v3058, 72
      %v3686 = vpop.permute.xlu0 %3685
      %3687 = vrot.lane.b32.xlu0 %v3059, 72
      %v3688 = vpop.permute.xlu0 %3687
      %3689 = vrot.lane.b32.xlu0 %v3060, 72
      %v3690 = vpop.permute.xlu0 %3689
      %3691 = vrot.lane.b32.xlu0 %v3061, 72
      %v3692 = vpop.permute.xlu0 %3691
      %3693 = vrot.lane.b32.xlu0 %v3062, 72
      %v3694 = vpop.permute.xlu0 %3693
      %3695 = vrot.lane.b32.xlu0 %v3063, 72
      %v3696 = vpop.permute.xlu0 %3695
      %3697 = vrot.lane.b32.xlu0 %v3064, 72
      %v3698 = vpop.permute.xlu0 %3697
      %3699 = vrot.lane.b32.xlu0 %v3065, 72
      %v3700 = vpop.permute.xlu0 %3699
      %3701 = vrot.lane.b32.xlu0 %v3066, 72
      %v3702 = vpop.permute.xlu0 %3701
      %3703 = vrot.lane.b32.xlu0 %v3067, 72
      %v3704 = vpop.permute.xlu0 %3703
      %3705 = vrot.lane.b32.xlu0 %v3068, 72
      %v3706 = vpop.permute.xlu0 %3705
      %3707 = vrot.lane.b32.xlu0 %v3069, 72
      %v3708 = vpop.permute.xlu0 %3707
      %3709 = vrot.lane.b32.xlu0 %v3070, 72
      %v3710 = vpop.permute.xlu0 %3709
      %3711 = vrot.lane.b32.xlu0 %v3071, 72
      %v3712 = vpop.permute.xlu0 %3711
      %3777 = vrot.lane.b32.xlu0 %v3073, 112
      %v3778 = vpop.permute.xlu0 %3777
      %3779 = vrot.lane.b32.xlu0 %v3074, 112
      %v3780 = vpop.permute.xlu0 %3779
      %3781 = vrot.lane.b32.xlu0 %v3075, 112
      %v3782 = vpop.permute.xlu0 %3781
      %3783 = vrot.lane.b32.xlu0 %v3076, 112
      %v3784 = vpop.permute.xlu0 %3783
      %3785 = vrot.lane.b32.xlu0 %v3077, 112
      %v3786 = vpop.permute.xlu0 %3785
      %3787 = vrot.lane.b32.xlu0 %v3078, 112
      %v3788 = vpop.permute.xlu0 %3787
      %3789 = vrot.lane.b32.xlu0 %v3079, 112
      %v3790 = vpop.permute.xlu0 %3789
      %3791 = vrot.lane.b32.xlu0 %v3080, 112
      %v3792 = vpop.permute.xlu0 %3791
      %3793 = vrot.lane.b32.xlu0 %v3081, 112
      %v3794 = vpop.permute.xlu0 %3793
      %3795 = vrot.lane.b32.xlu0 %v3082, 112
      %v3796 = vpop.permute.xlu0 %3795
      %3797 = vrot.lane.b32.xlu0 %v3083, 112
      %v3798 = vpop.permute.xlu0 %3797
      %3799 = vrot.lane.b32.xlu0 %v3084, 112
      %v3800 = vpop.permute.xlu0 %3799
      %3801 = vrot.lane.b32.xlu0 %v3085, 112
      %v3802 = vpop.permute.xlu0 %3801
      %3803 = vrot.lane.b32.xlu0 %v3086, 112
      %v3804 = vpop.permute.xlu0 %3803
      %3805 = vrot.lane.b32.xlu0 %v3087, 112
      %v3806 = vpop.permute.xlu0 %3805
      %3807 = vrot.lane.b32.xlu0 %v3088, 112
      %v3808 = vpop.permute.xlu0 %3807
      %3809 = vrot.lane.b32.xlu0 %v3089, 112
      %v3810 = vpop.permute.xlu0 %3809
      %3811 = vrot.lane.b32.xlu0 %v3090, 112
      %v3812 = vpop.permute.xlu0 %3811
      %3813 = vrot.lane.b32.xlu0 %v3091, 112
      %v3814 = vpop.permute.xlu0 %3813
      %3815 = vrot.lane.b32.xlu0 %v3092, 112
      %v3816 = vpop.permute.xlu0 %3815
      %3817 = vrot.lane.b32.xlu0 %v3093, 112
      %v3818 = vpop.permute.xlu0 %3817
      %3819 = vrot.lane.b32.xlu0 %v3094, 112
      %v3820 = vpop.permute.xlu0 %3819
      %3821 = vrot.lane.b32.xlu0 %v3095, 112
      %v3822 = vpop.permute.xlu0 %3821
      %3823 = vrot.lane.b32.xlu0 %v3096, 112
      %v3824 = vpop.permute.xlu0 %3823
      %3825 = vrot.lane.b32.xlu0 %v3097, 112
      %v3826 = vpop.permute.xlu0 %3825
      %3827 = vrot.lane.b32.xlu0 %v3098, 112
      %v3828 = vpop.permute.xlu0 %3827
      %3829 = vrot.lane.b32.xlu0 %v3099, 112
      %v3830 = vpop.permute.xlu0 %3829
      %3831 = vrot.lane.b32.xlu0 %v3100, 112
      %v3832 = vpop.permute.xlu0 %3831
      %3833 = vrot.lane.b32.xlu0 %v3101, 112
      %v3834 = vpop.permute.xlu0 %3833
      %3835 = vrot.lane.b32.xlu0 %v3102, 112
      %v3836 = vpop.permute.xlu0 %3835
      %3837 = vrot.lane.b32.xlu0 %v3103, 112
      %v3838 = vpop.permute.xlu0 %3837
      %3839 = vrot.lane.b32.xlu0 %v3104, 112
      %v3840 = vpop.permute.xlu0 %3839
      %v3873 = vsel %vm2380, %v2876, %v3138
      %v3874 = vsel %vm2380, %v2877, %v3140
      %v3875 = vsel %vm2380, %v2878, %v3142
      %v3876 = vsel %vm2380, %v2879, %v3144
      %v3877 = vsel %vm2380, %v2880, %v3146
      %v3878 = vsel %vm2380, %v2881, %v3148
      %v3879 = vsel %vm2380, %v2882, %v3150
      %v3880 = vsel %vm2380, %v2883, %v3152
      %v3881 = vsel %vm2380, %v2884, %v3154
      %v3882 = vsel %vm2380, %v2885, %v3156
      %v3883 = vsel %vm2380, %v2886, %v3158
      %v3884 = vsel %vm2380, %v2887, %v3160
      %v3885 = vsel %vm2380, %v2888, %v3162
      %v3886 = vsel %vm2380, %v2889, %v3164
      %v3887 = vsel %vm2380, %v2890, %v3166
      %v3888 = vsel %vm2380, %v2891, %v3168
      %v3889 = vsel %vm2380, %v2892, %v3170
      %v3890 = vsel %vm2380, %v2893, %v3172
      %v3891 = vsel %vm2380, %v2894, %v3174
      %v3892 = vsel %vm2380, %v2895, %v3176
      %v3893 = vsel %vm2380, %v2896, %v3178
      %v3894 = vsel %vm2380, %v2897, %v3180
      %v3895 = vsel %vm2380, %v2898, %v3182
      %v3896 = vsel %vm2380, %v2899, %v3184
      %v3897 = vsel %vm2380, %v2900, %v3186
      %v3898 = vsel %vm2380, %v2901, %v3188
      %v3899 = vsel %vm2380, %v2902, %v3190
      %v3900 = vsel %vm2380, %v2903, %v3192
      %v3901 = vsel %vm2380, %v2904, %v3194
      %v3902 = vsel %vm2380, %v2905, %v3196
      %v3903 = vsel %vm2380, %v2906, %v3198
      %v3904 = vsel %vm2380, %v2907, %v3200
      %vm3905 = vcmask 654336
      %v3906 = vsel %vm3905, %v3873, %v3266
      %v3907 = vsel %vm3905, %v3874, %v3268
      %v3908 = vsel %vm3905, %v3875, %v3270
      %v3909 = vsel %vm3905, %v3876, %v3272
      %v3910 = vsel %vm3905, %v3877, %v3274
      %v3911 = vsel %vm3905, %v3878, %v3276
      %v3912 = vsel %vm3905, %v3879, %v3278
      %v3913 = vsel %vm3905, %v3880, %v3280
      %v3914 = vsel %vm3905, %v3881, %v3282
      %v3915 = vsel %vm3905, %v3882, %v3284
      %v3916 = vsel %vm3905, %v3883, %v3286
      %v3917 = vsel %vm3905, %v3884, %v3288
      %v3918 = vsel %vm3905, %v3885, %v3290
      %v3919 = vsel %vm3905, %v3886, %v3292
      %v3920 = vsel %vm3905, %v3887, %v3294
      %v3921 = vsel %vm3905, %v3888, %v3296
      %v3922 = vsel %vm3905, %v3889, %v3298
      %v3923 = vsel %vm3905, %v3890, %v3300
      %v3924 = vsel %vm3905, %v3891, %v3302
      %v3925 = vsel %vm3905, %v3892, %v3304
      %v3926 = vsel %vm3905, %v3893, %v3306
      %v3927 = vsel %vm3905, %v3894, %v3308
      %v3928 = vsel %vm3905, %v3895, %v3310
      %v3929 = vsel %vm3905, %v3896, %v3312
      %v3930 = vsel %vm3905, %v3897, %v3314
      %v3931 = vsel %vm3905, %v3898, %v3316
      %v3932 = vsel %vm3905, %v3899, %v3318
      %v3933 = vsel %vm3905, %v3900, %v3320
      %v3934 = vsel %vm3905, %v3901, %v3322
      %v3935 = vsel %vm3905, %v3902, %v3324
      %v3936 = vsel %vm3905, %v3903, %v3326
      %v3937 = vsel %vm3905, %v3904, %v3328
      %vm3938 = vcmask 982016
      %v3939 = vsel %vm3938, %v3906, %v3394
      %v3940 = vsel %vm3938, %v3907, %v3396
      %v3941 = vsel %vm3938, %v3908, %v3398
      %v3942 = vsel %vm3938, %v3909, %v3400
      %v3943 = vsel %vm3938, %v3910, %v3402
      %v3944 = vsel %vm3938, %v3911, %v3404
      %v3945 = vsel %vm3938, %v3912, %v3406
      %v3946 = vsel %vm3938, %v3913, %v3408
      %v3947 = vsel %vm3938, %v3914, %v3410
      %v3948 = vsel %vm3938, %v3915, %v3412
      %v3949 = vsel %vm3938, %v3916, %v3414
      %v3950 = vsel %vm3938, %v3917, %v3416
      %v3951 = vsel %vm3938, %v3918, %v3418
      %v3952 = vsel %vm3938, %v3919, %v3420
      %v3953 = vsel %vm3938, %v3920, %v3422
      %v3954 = vsel %vm3938, %v3921, %v3424
      %v3955 = vsel %vm3938, %v3922, %v3426
      %v3956 = vsel %vm3938, %v3923, %v3428
      %v3957 = vsel %vm3938, %v3924, %v3430
      %v3958 = vsel %vm3938, %v3925, %v3432
      %v3959 = vsel %vm3938, %v3926, %v3434
      %v3960 = vsel %vm3938, %v3927, %v3436
      %v3961 = vsel %vm3938, %v3928, %v3438
      %v3962 = vsel %vm3938, %v3929, %v3440
      %v3963 = vsel %vm3938, %v3930, %v3442
      %v3964 = vsel %vm3938, %v3931, %v3444
      %v3965 = vsel %vm3938, %v3932, %v3446
      %v3966 = vsel %vm3938, %v3933, %v3448
      %v3967 = vsel %vm3938, %v3934, %v3450
      %v3968 = vsel %vm3938, %v3935, %v3452
      %v3969 = vsel %vm3938, %v3936, %v3454
      %v3970 = vsel %vm3938, %v3937, %v3456
      %v3971 = vsel %vm792, %v3394, %v3522
      %v3972 = vsel %vm792, %v3396, %v3524
      %v3973 = vsel %vm792, %v3398, %v3526
      %v3974 = vsel %vm792, %v3400, %v3528
      %v3975 = vsel %vm792, %v3402, %v3530
      %v3976 = vsel %vm792, %v3404, %v3532
      %v3977 = vsel %vm792, %v3406, %v3534
      %v3978 = vsel %vm792, %v3408, %v3536
      %v3979 = vsel %vm792, %v3410, %v3538
      %v3980 = vsel %vm792, %v3412, %v3540
      %v3981 = vsel %vm792, %v3414, %v3542
      %v3982 = vsel %vm792, %v3416, %v3544
      %v3983 = vsel %vm792, %v3418, %v3546
      %v3984 = vsel %vm792, %v3420, %v3548
      %v3985 = vsel %vm792, %v3422, %v3550
      %v3986 = vsel %vm792, %v3424, %v3552
      %v3987 = vsel %vm792, %v3426, %v3554
      %v3988 = vsel %vm792, %v3428, %v3556
      %v3989 = vsel %vm792, %v3430, %v3558
      %v3990 = vsel %vm792, %v3432, %v3560
      %v3991 = vsel %vm792, %v3434, %v3562
      %v3992 = vsel %vm792, %v3436, %v3564
      %v3993 = vsel %vm792, %v3438, %v3566
      %v3994 = vsel %vm792, %v3440, %v3568
      %v3995 = vsel %vm792, %v3442, %v3570
      %v3996 = vsel %vm792, %v3444, %v3572
      %v3997 = vsel %vm792, %v3446, %v3574
      %v3998 = vsel %vm792, %v3448, %v3576
      %v3999 = vsel %vm792, %v3450, %v3578
      %v4000 = vsel %vm792, %v3452, %v3580
      %v4001 = vsel %vm792, %v3454, %v3582
      %v4002 = vsel %vm792, %v3456, %v3584
      %vm4003 = vcmask 588800
      %v4004 = vsel %vm4003, %v3971, %v3650
      %v4005 = vsel %vm4003, %v3972, %v3652
      %v4006 = vsel %vm4003, %v3973, %v3654
      %v4007 = vsel %vm4003, %v3974, %v3656
      %v4008 = vsel %vm4003, %v3975, %v3658
      %v4009 = vsel %vm4003, %v3976, %v3660
      %v4010 = vsel %vm4003, %v3977, %v3662
      %v4011 = vsel %vm4003, %v3978, %v3664
      %v4012 = vsel %vm4003, %v3979, %v3666
      %v4013 = vsel %vm4003, %v3980, %v3668
      %v4014 = vsel %vm4003, %v3981, %v3670
      %v4015 = vsel %vm4003, %v3982, %v3672
      %v4016 = vsel %vm4003, %v3983, %v3674
      %v4017 = vsel %vm4003, %v3984, %v3676
      %v4018 = vsel %vm4003, %v3985, %v3678
      %v4019 = vsel %vm4003, %v3986, %v3680
      %v4020 = vsel %vm4003, %v3987, %v3682
      %v4021 = vsel %vm4003, %v3988, %v3684
      %v4022 = vsel %vm4003, %v3989, %v3686
      %v4023 = vsel %vm4003, %v3990, %v3688
      %v4024 = vsel %vm4003, %v3991, %v3690
      %v4025 = vsel %vm4003, %v3992, %v3692
      %v4026 = vsel %vm4003, %v3993, %v3694
      %v4027 = vsel %vm4003, %v3994, %v3696
      %v4028 = vsel %vm4003, %v3995, %v3698
      %v4029 = vsel %vm4003, %v3996, %v3700
      %v4030 = vsel %vm4003, %v3997, %v3702
      %v4031 = vsel %vm4003, %v3998, %v3704
      %v4032 = vsel %vm4003, %v3999, %v3706
      %v4033 = vsel %vm4003, %v4000, %v3708
      %v4034 = vsel %vm4003, %v4001, %v3710
      %v4035 = vsel %vm4003, %v4002, %v3712
      %vm4036 = vcmask 916480
      %v4037 = vsel %vm4036, %v4004, %v3778
      %v4038 = vsel %vm4036, %v4005, %v3780
      %v4039 = vsel %vm4036, %v4006, %v3782
      %v4040 = vsel %vm4036, %v4007, %v3784
      %v4041 = vsel %vm4036, %v4008, %v3786
      %v4042 = vsel %vm4036, %v4009, %v3788
      %v4043 = vsel %vm4036, %v4010, %v3790
      %v4044 = vsel %vm4036, %v4011, %v3792
      %v4045 = vsel %vm4036, %v4012, %v3794
      %v4046 = vsel %vm4036, %v4013, %v3796
      %v4047 = vsel %vm4036, %v4014, %v3798
      %v4048 = vsel %vm4036, %v4015, %v3800
      %v4049 = vsel %vm4036, %v4016, %v3802
      %v4050 = vsel %vm4036, %v4017, %v3804
      %v4051 = vsel %vm4036, %v4018, %v3806
      %v4052 = vsel %vm4036, %v4019, %v3808
      %v4053 = vsel %vm4036, %v4020, %v3810
      %v4054 = vsel %vm4036, %v4021, %v3812
      %v4055 = vsel %vm4036, %v4022, %v3814
      %v4056 = vsel %vm4036, %v4023, %v3816
      %v4057 = vsel %vm4036, %v4024, %v3818
      %v4058 = vsel %vm4036, %v4025, %v3820
      %v4059 = vsel %vm4036, %v4026, %v3822
      %v4060 = vsel %vm4036, %v4027, %v3824
      %v4061 = vsel %vm4036, %v4028, %v3826
      %v4062 = vsel %vm4036, %v4029, %v3828
      %v4063 = vsel %vm4036, %v4030, %v3830
      %v4064 = vsel %vm4036, %v4031, %v3832
      %v4065 = vsel %vm4036, %v4032, %v3834
      %v4066 = vsel %vm4036, %v4033, %v3836
      %v4067 = vsel %vm4036, %v4034, %v3838
      %v4068 = vsel %vm4036, %v4035, %v3840
      %v4069 = vld [vmem:[%s3] sm:$0xff]
      %v4070 = vld [vmem:[%s3 + $0x8] sm:$0xff]
      %v4071 = vld [vmem:[%s3 + $0x10] sm:$0xff]
      %v4072 = vld [vmem:[%s3 + $0x18] sm:$0xff]
      %v4073 = vld [vmem:[%s3 + $0x20] sm:$0xff]
      %v4074 = vld [vmem:[%s3 + $0x28] sm:$0xff]
      %v4075 = vld [vmem:[%s3 + $0x30] sm:$0xff]
      %v4076 = vld [vmem:[%s3 + $0x38] sm:$0xff]
      %v4077 = vld [vmem:[%s3 + $0x40] sm:$0xff]
      %v4078 = vld [vmem:[%s3 + $0x48] sm:$0xff]
      %v4079 = vld [vmem:[%s3 + $0x50] sm:$0xff]
      %v4080 = vld [vmem:[%s3 + $0x58] sm:$0xff]
      %v4081 = vld [vmem:[%s3 + $0x60] sm:$0xff]
      %v4082 = vld [vmem:[%s3 + $0x68] sm:$0xff]
      %v4083 = vld [vmem:[%s3 + $0x70] sm:$0xff]
      %v4084 = vld [vmem:[%s3 + $0x78] sm:$0xff]
      %v4085 = vld [vmem:[%s3 + $0x80] sm:$0xff]
      %v4086 = vld [vmem:[%s3 + $0x88] sm:$0xff]
      %v4087 = vld [vmem:[%s3 + $0x90] sm:$0xff]
      %v4088 = vld [vmem:[%s3 + $0x98] sm:$0xff]
      %v4089 = vld [vmem:[%s3 + $0xa0] sm:$0xff]
      %v4090 = vld [vmem:[%s3 + $0xa8] sm:$0xff]
      %v4091 = vld [vmem:[%s3 + $0xb0] sm:$0xff]
      %v4092 = vld [vmem:[%s3 + $0xb8] sm:$0xff]
      %v4093 = vld [vmem:[%s3 + $0xc0] sm:$0xff]
      %v4094 = vld [vmem:[%s3 + $0xc8] sm:$0xff]
      %v4095 = vld [vmem:[%s3 + $0xd0] sm:$0xff]
      %v4096 = vld [vmem:[%s3 + $0xd8] sm:$0xff]
      %v4097 = vld [vmem:[%s3 + $0xe0] sm:$0xff]
      %v4098 = vld [vmem:[%s3 + $0xe8] sm:$0xff]
      %v4099 = vld [vmem:[%s3 + $0xf0] sm:$0xff]
      %v4100 = vld [vmem:[%s3 + $0xf8] sm:$0xff]
      %v4101 = vld [vmem:[%s3 + $0x100] sm:$0xff]
      %v4102 = vld [vmem:[%s3 + $0x108] sm:$0xff]
      %v4103 = vld [vmem:[%s3 + $0x110] sm:$0xff]
      %vm4104 = vcmask 195584
      %v4105 = vsel %vm4104, %v3778, 0
      %v4107 = vsel %vm4104, %v3780, 0
      %v4109 = vsel %vm4104, %v3782, 0
      %v4111 = vsel %vm4104, %v3784, 0
      %v4113 = vsel %vm4104, %v3786, 0
      %v4115 = vsel %vm4104, %v3788, 0
      %v4117 = vsel %vm4104, %v3790, 0
      %v4119 = vsel %vm4104, %v3792, 0
      %v4121 = vsel %vm4104, %v3794, 0
      %v4123 = vsel %vm4104, %v3796, 0
      %v4125 = vsel %vm4104, %v3798, 0
      %v4127 = vsel %vm4104, %v3800, 0
      %v4129 = vsel %vm4104, %v3802, 0
      %v4131 = vsel %vm4104, %v3804, 0
      %v4133 = vsel %vm4104, %v3806, 0
      %v4135 = vsel %vm4104, %v3808, 0
      %v4137 = vsel %vm4104, %v3810, 0
      %v4139 = vsel %vm4104, %v3812, 0
      %v4141 = vsel %vm4104, %v3814, 0
      %v4143 = vsel %vm4104, %v3816, 0
      %v4145 = vsel %vm4104, %v3818, 0
      %v4147 = vsel %vm4104, %v3820, 0
      %v4149 = vsel %vm4104, %v3822, 0
      %v4151 = vsel %vm4104, %v3824, 0
      %v4153 = vsel %vm4104, %v3826, 0
      %v4155 = vsel %vm4104, %v3828, 0
      %v4157 = vsel %vm4104, %v3830, 0
      %v4159 = vsel %vm4104, %v3832, 0
      %v4161 = vsel %vm4104, %v3834, 0
      %v4163 = vsel %vm4104, %v3836, 0
      %v4165 = vsel %vm4104, %v3838, 0
      %v4167 = vsel %vm4104, %v3840, 0
      %4169 = vmatpush.msra.mxu0 %v4084
      %4170 = vmatpush.msra.mxu0 %v4083
      %4171 = vmatpush.msra.mxu0 %v4082
      %4172 = vmatpush.msra.mxu0 %v4081
      %4173 = vmatpush.msra.mxu0 %v4080
      %4174 = vmatpush.msra.mxu0 %v4079
      %4175 = vmatpush.msra.mxu0 %v4078
      %4176 = vmatpush.msra.mxu0 %v4077
      %4177 = vmatpush.msra.mxu0 %v4076
      %4178 = vmatpush.msra.mxu0 %v4075
      %4179 = vmatpush.msra.mxu0 %v4074
      %4180 = vmatpush.msra.mxu0 %v4073
      %4181 = vmatpush.msra.mxu0 %v4072
      %4182 = vmatpush.msra.mxu0 %v4071
      %4183 = vmatpush.msra.mxu0 %v4070
      %4184 = vmatpush.msra.mxu0 %v4069
      %4185 = vmatmul.f32.gmra.mxu0 %v3939
      %v4186 = vpop.f32.mrf.mxu0
      %v4187 = vadd.f32 0.0, %v4186
      %4188 = vmatmul.f32.gmra.mxu0 %v3940
      %v4189 = vpop.f32.mrf.mxu0
      %v4190 = vadd.f32 0.0, %v4189
      %4191 = vmatmul.f32.gmra.mxu0 %v3941
      %v4192 = vpop.f32.mrf.mxu0
      %v4193 = vadd.f32 0.0, %v4192
      %4194 = vmatmul.f32.gmra.mxu0 %v3942
      %v4195 = vpop.f32.mrf.mxu0
      %v4196 = vadd.f32 0.0, %v4195
      %4197 = vmatmul.f32.gmra.mxu0 %v3943
      %v4198 = vpop.f32.mrf.mxu0
      %v4199 = vadd.f32 0.0, %v4198
      %4200 = vmatmul.f32.gmra.mxu0 %v3944
      %v4201 = vpop.f32.mrf.mxu0
      %v4202 = vadd.f32 0.0, %v4201
      %4203 = vmatmul.f32.gmra.mxu0 %v3945
      %v4204 = vpop.f32.mrf.mxu0
      %v4205 = vadd.f32 0.0, %v4204
      %4206 = vmatmul.f32.gmra.mxu0 %v3946
      %v4207 = vpop.f32.mrf.mxu0
      %v4208 = vadd.f32 0.0, %v4207
      %4209 = vmatmul.f32.gmra.mxu0 %v3947
      %v4210 = vpop.f32.mrf.mxu0
      %v4211 = vadd.f32 0.0, %v4210
      %4212 = vmatmul.f32.gmra.mxu0 %v3948
      %v4213 = vpop.f32.mrf.mxu0
      %v4214 = vadd.f32 0.0, %v4213
      %4215 = vmatmul.f32.gmra.mxu0 %v3949
      %v4216 = vpop.f32.mrf.mxu0
      %v4217 = vadd.f32 0.0, %v4216
      %4218 = vmatmul.f32.gmra.mxu0 %v3950
      %v4219 = vpop.f32.mrf.mxu0
      %v4220 = vadd.f32 0.0, %v4219
      %4221 = vmatmul.f32.gmra.mxu0 %v3951
      %v4222 = vpop.f32.mrf.mxu0
      %v4223 = vadd.f32 0.0, %v4222
      %4224 = vmatmul.f32.gmra.mxu0 %v3952
      %v4225 = vpop.f32.mrf.mxu0
      %v4226 = vadd.f32 0.0, %v4225
      %4227 = vmatmul.f32.gmra.mxu0 %v3953
      %v4228 = vpop.f32.mrf.mxu0
      %v4229 = vadd.f32 0.0, %v4228
      %4230 = vmatmul.f32.gmra.mxu0 %v3954
      %v4231 = vpop.f32.mrf.mxu0
      %v4232 = vadd.f32 0.0, %v4231
      %4233 = vmatmul.f32.gmra.mxu0 %v3955
      %v4234 = vpop.f32.mrf.mxu0
      %v4235 = vadd.f32 0.0, %v4234
      %4236 = vmatmul.f32.gmra.mxu0 %v3956
      %v4237 = vpop.f32.mrf.mxu0
      %v4238 = vadd.f32 0.0, %v4237
      %4239 = vmatmul.f32.gmra.mxu0 %v3957
      %v4240 = vpop.f32.mrf.mxu0
      %v4241 = vadd.f32 0.0, %v4240
      %4242 = vmatmul.f32.gmra.mxu0 %v3958
      %v4243 = vpop.f32.mrf.mxu0
      %v4244 = vadd.f32 0.0, %v4243
      %4245 = vmatmul.f32.gmra.mxu0 %v3959
      %v4246 = vpop.f32.mrf.mxu0
      %v4247 = vadd.f32 0.0, %v4246
      %4248 = vmatmul.f32.gmra.mxu0 %v3960
      %v4249 = vpop.f32.mrf.mxu0
      %v4250 = vadd.f32 0.0, %v4249
      %4251 = vmatmul.f32.gmra.mxu0 %v3961
      %v4252 = vpop.f32.mrf.mxu0
      %v4253 = vadd.f32 0.0, %v4252
      %4254 = vmatmul.f32.gmra.mxu0 %v3962
      %v4255 = vpop.f32.mrf.mxu0
      %v4256 = vadd.f32 0.0, %v4255
      %4257 = vmatmul.f32.gmra.mxu0 %v3963
      %v4258 = vpop.f32.mrf.mxu0
      %v4259 = vadd.f32 0.0, %v4258
      %4260 = vmatmul.f32.gmra.mxu0 %v3964
      %v4261 = vpop.f32.mrf.mxu0
      %v4262 = vadd.f32 0.0, %v4261
      %4263 = vmatmul.f32.gmra.mxu0 %v3965
      %v4264 = vpop.f32.mrf.mxu0
      %v4265 = vadd.f32 0.0, %v4264
      %4266 = vmatmul.f32.gmra.mxu0 %v3966
      %v4267 = vpop.f32.mrf.mxu0
      %v4268 = vadd.f32 0.0, %v4267
      %4269 = vmatmul.f32.gmra.mxu0 %v3967
      %v4270 = vpop.f32.mrf.mxu0
      %v4271 = vadd.f32 0.0, %v4270
      %4272 = vmatmul.f32.gmra.mxu0 %v3968
      %v4273 = vpop.f32.mrf.mxu0
      %v4274 = vadd.f32 0.0, %v4273
      %4275 = vmatmul.f32.gmra.mxu0 %v3969
      %v4276 = vpop.f32.mrf.mxu0
      %v4277 = vadd.f32 0.0, %v4276
      %4278 = vmatmul.f32.gmra.mxu0 %v3970
      %v4279 = vpop.f32.mrf.mxu0
      %v4280 = vadd.f32 0.0, %v4279
      %4281 = vdwg.mxu0
      %4282 = vmatpush.msra.mxu0 %v4100
      %4283 = vmatpush.msra.mxu0 %v4099
      %4284 = vmatpush.msra.mxu0 %v4098
      %4285 = vmatpush.msra.mxu0 %v4097
      %4286 = vmatpush.msra.mxu0 %v4096
      %4287 = vmatpush.msra.mxu0 %v4095
      %4288 = vmatpush.msra.mxu0 %v4094
      %4289 = vmatpush.msra.mxu0 %v4093
      %4290 = vmatpush.msra.mxu0 %v4092
      %4291 = vmatpush.msra.mxu0 %v4091
      %4292 = vmatpush.msra.mxu0 %v4090
      %4293 = vmatpush.msra.mxu0 %v4089
      %4294 = vmatpush.msra.mxu0 %v4088
      %4295 = vmatpush.msra.mxu0 %v4087
      %4296 = vmatpush.msra.mxu0 %v4086
      %4297 = vmatpush.msra.mxu0 %v4085
      %4298 = vmatmul.f32.gmra.mxu0 %v4037
      %v4299 = vpop.f32.mrf.mxu0
      %v4300 = vadd.f32 %v4187, %v4299
      %4301 = vmatmul.f32.gmra.mxu0 %v4038
      %v4302 = vpop.f32.mrf.mxu0
      %v4303 = vadd.f32 %v4190, %v4302
      %4304 = vmatmul.f32.gmra.mxu0 %v4039
      %v4305 = vpop.f32.mrf.mxu0
      %v4306 = vadd.f32 %v4193, %v4305
      %4307 = vmatmul.f32.gmra.mxu0 %v4040
      %v4308 = vpop.f32.mrf.mxu0
      %v4309 = vadd.f32 %v4196, %v4308
      %4310 = vmatmul.f32.gmra.mxu0 %v4041
      %v4311 = vpop.f32.mrf.mxu0
      %v4312 = vadd.f32 %v4199, %v4311
      %4313 = vmatmul.f32.gmra.mxu0 %v4042
      %v4314 = vpop.f32.mrf.mxu0
      %v4315 = vadd.f32 %v4202, %v4314
      %4316 = vmatmul.f32.gmra.mxu0 %v4043
      %v4317 = vpop.f32.mrf.mxu0
      %v4318 = vadd.f32 %v4205, %v4317
      %4319 = vmatmul.f32.gmra.mxu0 %v4044
      %v4320 = vpop.f32.mrf.mxu0
      %v4321 = vadd.f32 %v4208, %v4320
      %4322 = vmatmul.f32.gmra.mxu0 %v4045
      %v4323 = vpop.f32.mrf.mxu0
      %v4324 = vadd.f32 %v4211, %v4323
      %4325 = vmatmul.f32.gmra.mxu0 %v4046
      %v4326 = vpop.f32.mrf.mxu0
      %v4327 = vadd.f32 %v4214, %v4326
      %4328 = vmatmul.f32.gmra.mxu0 %v4047
      %v4329 = vpop.f32.mrf.mxu0
      %v4330 = vadd.f32 %v4217, %v4329
      %4331 = vmatmul.f32.gmra.mxu0 %v4048
      %v4332 = vpop.f32.mrf.mxu0
      %v4333 = vadd.f32 %v4220, %v4332
      %4334 = vmatmul.f32.gmra.mxu0 %v4049
      %v4335 = vpop.f32.mrf.mxu0
      %v4336 = vadd.f32 %v4223, %v4335
      %4337 = vmatmul.f32.gmra.mxu0 %v4050
      %v4338 = vpop.f32.mrf.mxu0
      %v4339 = vadd.f32 %v4226, %v4338
      %4340 = vmatmul.f32.gmra.mxu0 %v4051
      %v4341 = vpop.f32.mrf.mxu0
      %v4342 = vadd.f32 %v4229, %v4341
      %4343 = vmatmul.f32.gmra.mxu0 %v4052
      %v4344 = vpop.f32.mrf.mxu0
      %v4345 = vadd.f32 %v4232, %v4344
      %4346 = vmatmul.f32.gmra.mxu0 %v4053
      %v4347 = vpop.f32.mrf.mxu0
      %v4348 = vadd.f32 %v4235, %v4347
      %4349 = vmatmul.f32.gmra.mxu0 %v4054
      %v4350 = vpop.f32.mrf.mxu0
      %v4351 = vadd.f32 %v4238, %v4350
      %4352 = vmatmul.f32.gmra.mxu0 %v4055
      %v4353 = vpop.f32.mrf.mxu0
      %v4354 = vadd.f32 %v4241, %v4353
      %4355 = vmatmul.f32.gmra.mxu0 %v4056
      %v4356 = vpop.f32.mrf.mxu0
      %v4357 = vadd.f32 %v4244, %v4356
      %4358 = vmatmul.f32.gmra.mxu0 %v4057
      %v4359 = vpop.f32.mrf.mxu0
      %v4360 = vadd.f32 %v4247, %v4359
      %4361 = vmatmul.f32.gmra.mxu0 %v4058
      %v4362 = vpop.f32.mrf.mxu0
      %v4363 = vadd.f32 %v4250, %v4362
      %4364 = vmatmul.f32.gmra.mxu0 %v4059
      %v4365 = vpop.f32.mrf.mxu0
      %v4366 = vadd.f32 %v4253, %v4365
      %4367 = vmatmul.f32.gmra.mxu0 %v4060
      %v4368 = vpop.f32.mrf.mxu0
      %v4369 = vadd.f32 %v4256, %v4368
      %4370 = vmatmul.f32.gmra.mxu0 %v4061
      %v4371 = vpop.f32.mrf.mxu0
      %v4372 = vadd.f32 %v4259, %v4371
      %4373 = vmatmul.f32.gmra.mxu0 %v4062
      %v4374 = vpop.f32.mrf.mxu0
      %v4375 = vadd.f32 %v4262, %v4374
      %4376 = vmatmul.f32.gmra.mxu0 %v4063
      %v4377 = vpop.f32.mrf.mxu0
      %v4378 = vadd.f32 %v4265, %v4377
      %4379 = vmatmul.f32.gmra.mxu0 %v4064
      %v4380 = vpop.f32.mrf.mxu0
      %v4381 = vadd.f32 %v4268, %v4380
      %4382 = vmatmul.f32.gmra.mxu0 %v4065
      %v4383 = vpop.f32.mrf.mxu0
      %v4384 = vadd.f32 %v4271, %v4383
      %4385 = vmatmul.f32.gmra.mxu0 %v4066
      %v4386 = vpop.f32.mrf.mxu0
      %v4387 = vadd.f32 %v4274, %v4386
      %4388 = vmatmul.f32.gmra.mxu0 %v4067
      %v4389 = vpop.f32.mrf.mxu0
      %v4390 = vadd.f32 %v4277, %v4389
      %4391 = vmatmul.f32.gmra.mxu0 %v4068
      %v4392 = vpop.f32.mrf.mxu0
      %v4393 = vadd.f32 %v4280, %v4392
      %4394 = vdwg.mxu0
      %4395 = vmatpush.msra.mxu0 0.0
      %4396 = vmatpush.msra.mxu0 0.0
      %4397 = vmatpush.msra.mxu0 0.0
      %4398 = vmatpush.msra.mxu0 0.0
      %4399 = vmatpush.msra.mxu0 0.0
      %4400 = vmatpush.msra.mxu0 0.0
      %4401 = vmatpush.msra.mxu0 0.0
      %4402 = vmatpush.msra.mxu0 0.0
      %4403 = vmatpush.msra.mxu0 0.0
      %4404 = vmatpush.msra.mxu0 0.0
      %4405 = vmatpush.msra.mxu0 0.0
      %4406 = vmatpush.msra.mxu0 0.0
      %4407 = vmatpush.msra.mxu0 0.0
      %4408 = vmatpush.msra.mxu0 %v4103
      %4409 = vmatpush.msra.mxu0 %v4102
      %4410 = vmatpush.msra.mxu0 %v4101
      %4411 = vmatmul.f32.gmra.mxu0 %v4105
      %v4412 = vpop.f32.mrf.mxu0
      %v4413 = vadd.f32 %v4300, %v4412
      %4414 = vmatmul.f32.gmra.mxu0 %v4107
      %v4415 = vpop.f32.mrf.mxu0
      %v4416 = vadd.f32 %v4303, %v4415
      %4417 = vmatmul.f32.gmra.mxu0 %v4109
      %v4418 = vpop.f32.mrf.mxu0
      %v4419 = vadd.f32 %v4306, %v4418
      %4420 = vmatmul.f32.gmra.mxu0 %v4111
      %v4421 = vpop.f32.mrf.mxu0
      %v4422 = vadd.f32 %v4309, %v4421
      %4423 = vmatmul.f32.gmra.mxu0 %v4113
      %v4424 = vpop.f32.mrf.mxu0
      %v4425 = vadd.f32 %v4312, %v4424
      %4426 = vmatmul.f32.gmra.mxu0 %v4115
      %v4427 = vpop.f32.mrf.mxu0
      %v4428 = vadd.f32 %v4315, %v4427
      %4429 = vmatmul.f32.gmra.mxu0 %v4117
      %v4430 = vpop.f32.mrf.mxu0
      %v4431 = vadd.f32 %v4318, %v4430
      %4432 = vmatmul.f32.gmra.mxu0 %v4119
      %v4433 = vpop.f32.mrf.mxu0
      %v4434 = vadd.f32 %v4321, %v4433
      %4435 = vmatmul.f32.gmra.mxu0 %v4121
      %v4436 = vpop.f32.mrf.mxu0
      %v4437 = vadd.f32 %v4324, %v4436
      %4438 = vmatmul.f32.gmra.mxu0 %v4123
      %v4439 = vpop.f32.mrf.mxu0
      %v4440 = vadd.f32 %v4327, %v4439
      %4441 = vmatmul.f32.gmra.mxu0 %v4125
      %v4442 = vpop.f32.mrf.mxu0
      %v4443 = vadd.f32 %v4330, %v4442
      %4444 = vmatmul.f32.gmra.mxu0 %v4127
      %v4445 = vpop.f32.mrf.mxu0
      %v4446 = vadd.f32 %v4333, %v4445
      %4447 = vmatmul.f32.gmra.mxu0 %v4129
      %v4448 = vpop.f32.mrf.mxu0
      %v4449 = vadd.f32 %v4336, %v4448
      %4450 = vmatmul.f32.gmra.mxu0 %v4131
      %v4451 = vpop.f32.mrf.mxu0
      %v4452 = vadd.f32 %v4339, %v4451
      %4453 = vmatmul.f32.gmra.mxu0 %v4133
      %v4454 = vpop.f32.mrf.mxu0
      %v4455 = vadd.f32 %v4342, %v4454
      %4456 = vmatmul.f32.gmra.mxu0 %v4135
      %v4457 = vpop.f32.mrf.mxu0
      %v4458 = vadd.f32 %v4345, %v4457
      %4459 = vmatmul.f32.gmra.mxu0 %v4137
      %v4460 = vpop.f32.mrf.mxu0
      %v4461 = vadd.f32 %v4348, %v4460
      %4462 = vmatmul.f32.gmra.mxu0 %v4139
      %v4463 = vpop.f32.mrf.mxu0
      %v4464 = vadd.f32 %v4351, %v4463
      %4465 = vmatmul.f32.gmra.mxu0 %v4141
      %v4466 = vpop.f32.mrf.mxu0
      %v4467 = vadd.f32 %v4354, %v4466
      %4468 = vmatmul.f32.gmra.mxu0 %v4143
      %v4469 = vpop.f32.mrf.mxu0
      %v4470 = vadd.f32 %v4357, %v4469
      %4471 = vmatmul.f32.gmra.mxu0 %v4145
      %v4472 = vpop.f32.mrf.mxu0
      %v4473 = vadd.f32 %v4360, %v4472
      %4474 = vmatmul.f32.gmra.mxu0 %v4147
      %v4475 = vpop.f32.mrf.mxu0
      %v4476 = vadd.f32 %v4363, %v4475
      %4477 = vmatmul.f32.gmra.mxu0 %v4149
      %v4478 = vpop.f32.mrf.mxu0
      %v4479 = vadd.f32 %v4366, %v4478
      %4480 = vmatmul.f32.gmra.mxu0 %v4151
      %v4481 = vpop.f32.mrf.mxu0
      %v4482 = vadd.f32 %v4369, %v4481
      %4483 = vmatmul.f32.gmra.mxu0 %v4153
      %v4484 = vpop.f32.mrf.mxu0
      %v4485 = vadd.f32 %v4372, %v4484
      %4486 = vmatmul.f32.gmra.mxu0 %v4155
      %v4487 = vpop.f32.mrf.mxu0
      %v4488 = vadd.f32 %v4375, %v4487
      %4489 = vmatmul.f32.gmra.mxu0 %v4157
      %v4490 = vpop.f32.mrf.mxu0
      %v4491 = vadd.f32 %v4378, %v4490
      %4492 = vmatmul.f32.gmra.mxu0 %v4159
      %v4493 = vpop.f32.mrf.mxu0
      %v4494 = vadd.f32 %v4381, %v4493
      %4495 = vmatmul.f32.gmra.mxu0 %v4161
      %v4496 = vpop.f32.mrf.mxu0
      %v4497 = vadd.f32 %v4384, %v4496
      %4498 = vmatmul.f32.gmra.mxu0 %v4163
      %v4499 = vpop.f32.mrf.mxu0
      %v4500 = vadd.f32 %v4387, %v4499
      %4501 = vmatmul.f32.gmra.mxu0 %v4165
      %v4502 = vpop.f32.mrf.mxu0
      %v4503 = vadd.f32 %v4390, %v4502
      %4504 = vmatmul.f32.gmra.mxu0 %v4167
      %v4505 = vpop.f32.mrf.mxu0
      %v4506 = vadd.f32 %v4393, %v4505
      %4507 = vdwg.mxu0
      %v4508 = vmax.f32 %v4413, 0.0
      %v4509 = vmax.f32 %v4416, 0.0
      %v4510 = vmax.f32 %v4419, 0.0
      %v4511 = vmax.f32 %v4422, 0.0
      %v4512 = vmax.f32 %v4425, 0.0
      %v4513 = vmax.f32 %v4428, 0.0
      %v4514 = vmax.f32 %v4431, 0.0
      %v4515 = vmax.f32 %v4434, 0.0
      %v4516 = vmax.f32 %v4437, 0.0
      %v4517 = vmax.f32 %v4440, 0.0
      %v4518 = vmax.f32 %v4443, 0.0
      %v4519 = vmax.f32 %v4446, 0.0
      %v4520 = vmax.f32 %v4449, 0.0
      %v4521 = vmax.f32 %v4452, 0.0
      %v4522 = vmax.f32 %v4455, 0.0
      %v4523 = vmax.f32 %v4458, 0.0
      %v4524 = vmax.f32 %v4461, 0.0
      %v4525 = vmax.f32 %v4464, 0.0
      %v4526 = vmax.f32 %v4467, 0.0
      %v4527 = vmax.f32 %v4470, 0.0
      %v4528 = vmax.f32 %v4473, 0.0
      %v4529 = vmax.f32 %v4476, 0.0
      %v4530 = vmax.f32 %v4479, 0.0
      %v4531 = vmax.f32 %v4482, 0.0
      %v4532 = vmax.f32 %v4485, 0.0
      %v4533 = vmax.f32 %v4488, 0.0
      %v4534 = vmax.f32 %v4491, 0.0
      %v4535 = vmax.f32 %v4494, 0.0
      %v4536 = vmax.f32 %v4497, 0.0
      %v4537 = vmax.f32 %v4500, 0.0
      %v4538 = vmax.f32 %v4503, 0.0
      %v4539 = vmax.f32 %v4506, 0.0
      %v4540 = vsel %vm618, %v4508, 0.0
      %v4541 = vsel %vm618, %v4509, 0.0
      %v4542 = vadd.f32 %v4540, %v4541
      %v4543 = vsel %vm618, %v4510, 0.0
      %v4544 = vadd.f32 %v4542, %v4543
      %v4545 = vsel %vm618, %v4511, 0.0
      %v4546 = vadd.f32 %v4544, %v4545
      %v4547 = vsel %vm618, %v4512, 0.0
      %v4548 = vadd.f32 %v4546, %v4547
      %v4549 = vsel %vm618, %v4513, 0.0
      %v4550 = vadd.f32 %v4548, %v4549
      %v4551 = vsel %vm618, %v4514, 0.0
      %v4552 = vadd.f32 %v4550, %v4551
      %v4553 = vsel %vm618, %v4515, 0.0
      %v4554 = vadd.f32 %v4552, %v4553
      %v4555 = vsel %vm618, %v4516, 0.0
      %v4556 = vadd.f32 %v4554, %v4555
      %v4557 = vsel %vm618, %v4517, 0.0
      %v4558 = vadd.f32 %v4556, %v4557
      %v4559 = vsel %vm618, %v4518, 0.0
      %v4560 = vadd.f32 %v4558, %v4559
      %v4561 = vsel %vm618, %v4519, 0.0
      %v4562 = vadd.f32 %v4560, %v4561
      %v4563 = vsel %vm618, %v4520, 0.0
      %v4564 = vadd.f32 %v4562, %v4563
      %v4565 = vsel %vm618, %v4521, 0.0
      %v4566 = vadd.f32 %v4564, %v4565
      %v4567 = vsel %vm618, %v4522, 0.0
      %v4568 = vadd.f32 %v4566, %v4567
      %v4569 = vsel %vm618, %v4523, 0.0
      %v4570 = vadd.f32 %v4568, %v4569
      %v4571 = vsel %vm618, %v4524, 0.0
      %v4572 = vadd.f32 %v4570, %v4571
      %v4573 = vsel %vm618, %v4525, 0.0
      %v4574 = vadd.f32 %v4572, %v4573
      %v4575 = vsel %vm618, %v4526, 0.0
      %v4576 = vadd.f32 %v4574, %v4575
      %v4577 = vsel %vm618, %v4527, 0.0
      %v4578 = vadd.f32 %v4576, %v4577
      %v4579 = vsel %vm618, %v4528, 0.0
      %v4580 = vadd.f32 %v4578, %v4579
      %v4581 = vsel %vm618, %v4529, 0.0
      %v4582 = vadd.f32 %v4580, %v4581
      %v4583 = vsel %vm618, %v4530, 0.0
      %v4584 = vadd.f32 %v4582, %v4583
      %v4585 = vsel %vm618, %v4531, 0.0
      %v4586 = vadd.f32 %v4584, %v4585
      %v4587 = vsel %vm618, %v4532, 0.0
      %v4588 = vadd.f32 %v4586, %v4587
      %v4589 = vsel %vm618, %v4533, 0.0
      %v4590 = vadd.f32 %v4588, %v4589
      %v4591 = vsel %vm618, %v4534, 0.0
      %v4592 = vadd.f32 %v4590, %v4591
      %v4593 = vsel %vm618, %v4535, 0.0
      %v4594 = vadd.f32 %v4592, %v4593
      %v4595 = vsel %vm618, %v4536, 0.0
      %v4596 = vadd.f32 %v4594, %v4595
      %v4597 = vsel %vm618, %v4537, 0.0
      %v4598 = vadd.f32 %v4596, %v4597
      %v4599 = vsel %vm618, %v4538, 0.0
      %v4600 = vadd.f32 %v4598, %v4599
      %v4601 = vsel %vm618, %v4539, 0.0
      %v4602 = vadd.f32 %v4600, %v4601
      %v4603 = vrot.slane %v4602, 4
      %v4604 = vadd.f32 %v4602, %v4603
      %v4605 = vrot.slane %v4604, 2
      %v4606 = vadd.f32 %v4604, %v4605
      %v4607 = vrot.slane %v4606, 1
      %v4608 = vadd.f32 %v4606, %v4607
      %4609 = vst.msk [vmem:[%s335] sm:$0x1] %vm688, %v4608
      %v4610 = vmul.f32 %v4508, %v4508
      %v4611 = vmul.f32 %v4509, %v4509
      %v4612 = vmul.f32 %v4510, %v4510
      %v4613 = vmul.f32 %v4511, %v4511
      %v4614 = vmul.f32 %v4512, %v4512
      %v4615 = vmul.f32 %v4513, %v4513
      %v4616 = vmul.f32 %v4514, %v4514
      %v4617 = vmul.f32 %v4515, %v4515
      %v4618 = vmul.f32 %v4516, %v4516
      %v4619 = vmul.f32 %v4517, %v4517
      %v4620 = vmul.f32 %v4518, %v4518
      %v4621 = vmul.f32 %v4519, %v4519
      %v4622 = vmul.f32 %v4520, %v4520
      %v4623 = vmul.f32 %v4521, %v4521
      %v4624 = vmul.f32 %v4522, %v4522
      %v4625 = vmul.f32 %v4523, %v4523
      %v4626 = vmul.f32 %v4524, %v4524
      %v4627 = vmul.f32 %v4525, %v4525
      %v4628 = vmul.f32 %v4526, %v4526
      %v4629 = vmul.f32 %v4527, %v4527
      %v4630 = vmul.f32 %v4528, %v4528
      %v4631 = vmul.f32 %v4529, %v4529
      %v4632 = vmul.f32 %v4530, %v4530
      %v4633 = vmul.f32 %v4531, %v4531
      %v4634 = vmul.f32 %v4532, %v4532
      %v4635 = vmul.f32 %v4533, %v4533
      %v4636 = vmul.f32 %v4534, %v4534
      %v4637 = vmul.f32 %v4535, %v4535
      %v4638 = vmul.f32 %v4536, %v4536
      %v4639 = vmul.f32 %v4537, %v4537
      %v4640 = vmul.f32 %v4538, %v4538
      %v4641 = vmul.f32 %v4539, %v4539
      %v4642 = vsel %vm618, %v4610, 0.0
      %v4643 = vsel %vm618, %v4611, 0.0
      %v4644 = vadd.f32 %v4642, %v4643
      %v4645 = vsel %vm618, %v4612, 0.0
      %v4646 = vadd.f32 %v4644, %v4645
      %v4647 = vsel %vm618, %v4613, 0.0
      %v4648 = vadd.f32 %v4646, %v4647
      %v4649 = vsel %vm618, %v4614, 0.0
      %v4650 = vadd.f32 %v4648, %v4649
      %v4651 = vsel %vm618, %v4615, 0.0
      %v4652 = vadd.f32 %v4650, %v4651
      %v4653 = vsel %vm618, %v4616, 0.0
      %v4654 = vadd.f32 %v4652, %v4653
      %v4655 = vsel %vm618, %v4617, 0.0
      %v4656 = vadd.f32 %v4654, %v4655
      %v4657 = vsel %vm618, %v4618, 0.0
      %v4658 = vadd.f32 %v4656, %v4657
      %v4659 = vsel %vm618, %v4619, 0.0
      %v4660 = vadd.f32 %v4658, %v4659
      %v4661 = vsel %vm618, %v4620, 0.0
      %v4662 = vadd.f32 %v4660, %v4661
      %v4663 = vsel %vm618, %v4621, 0.0
      %v4664 = vadd.f32 %v4662, %v4663
      %v4665 = vsel %vm618, %v4622, 0.0
      %v4666 = vadd.f32 %v4664, %v4665
      %v4667 = vsel %vm618, %v4623, 0.0
      %v4668 = vadd.f32 %v4666, %v4667
      %v4669 = vsel %vm618, %v4624, 0.0
      %v4670 = vadd.f32 %v4668, %v4669
      %v4671 = vsel %vm618, %v4625, 0.0
      %v4672 = vadd.f32 %v4670, %v4671
      %v4673 = vsel %vm618, %v4626, 0.0
      %v4674 = vadd.f32 %v4672, %v4673
      %v4675 = vsel %vm618, %v4627, 0.0
      %v4676 = vadd.f32 %v4674, %v4675
      %v4677 = vsel %vm618, %v4628, 0.0
      %v4678 = vadd.f32 %v4676, %v4677
      %v4679 = vsel %vm618, %v4629, 0.0
      %v4680 = vadd.f32 %v4678, %v4679
      %v4681 = vsel %vm618, %v4630, 0.0
      %v4682 = vadd.f32 %v4680, %v4681
      %v4683 = vsel %vm618, %v4631, 0.0
      %v4684 = vadd.f32 %v4682, %v4683
      %v4685 = vsel %vm618, %v4632, 0.0
      %v4686 = vadd.f32 %v4684, %v4685
      %v4687 = vsel %vm618, %v4633, 0.0
      %v4688 = vadd.f32 %v4686, %v4687
      %v4689 = vsel %vm618, %v4634, 0.0
      %v4690 = vadd.f32 %v4688, %v4689
      %v4691 = vsel %vm618, %v4635, 0.0
      %v4692 = vadd.f32 %v4690, %v4691
      %v4693 = vsel %vm618, %v4636, 0.0
      %v4694 = vadd.f32 %v4692, %v4693
      %v4695 = vsel %vm618, %v4637, 0.0
      %v4696 = vadd.f32 %v4694, %v4695
      %v4697 = vsel %vm618, %v4638, 0.0
      %v4698 = vadd.f32 %v4696, %v4697
      %v4699 = vsel %vm618, %v4639, 0.0
      %v4700 = vadd.f32 %v4698, %v4699
      %v4701 = vsel %vm618, %v4640, 0.0
      %v4702 = vadd.f32 %v4700, %v4701
      %v4703 = vsel %vm618, %v4641, 0.0
      %v4704 = vadd.f32 %v4702, %v4703
      %v4705 = vrot.slane %v4704, 4
      %v4706 = vadd.f32 %v4704, %v4705
      %v4707 = vrot.slane %v4706, 2
      %v4708 = vadd.f32 %v4706, %v4707
      %v4709 = vrot.slane %v4708, 1
      %v4710 = vadd.f32 %v4708, %v4709
      %4711 = vst.msk [vmem:[%s338] sm:$0x1] %vm688, %v4710
      %v4712 = vrot.slane %v4512, 4
      %v4713 = vsel %vm2395, %v4712, %v4508
      %v4714 = vrot.slane %v4508, 4
      %v4715 = vsel %vm2395, %v4512, %v4714
      %v4717 = vunpack.c.l.s4 1983009808
      %v4718 = vunpack.c.0.s8 %v4717
      %v4719 = vperm.slane %v4713, %v4718
      %v4721 = vunpack.c.l.s4 1983009808
      %v4722 = vunpack.c.0.s8 %v4721
      %v4723 = vperm.slane %v4715, %v4722
      %v4724 = vrot.slane %v4514, 4
      %v4725 = vsel %vm2395, %v4724, %v4510
      %v4726 = vrot.slane %v4510, 4
      %v4727 = vsel %vm2395, %v4514, %v4726
      %v4729 = vunpack.c.l.s4 1983009808
      %v4730 = vunpack.c.0.s8 %v4729
      %v4731 = vperm.slane %v4725, %v4730
      %v4733 = vunpack.c.l.s4 1983009808
      %v4734 = vunpack.c.0.s8 %v4733
      %v4735 = vperm.slane %v4727, %v4734
      %v4736 = vrot.slane %v4520, 4
      %v4737 = vsel %vm2395, %v4736, %v4516
      %v4738 = vrot.slane %v4516, 4
      %v4739 = vsel %vm2395, %v4520, %v4738
      %v4741 = vunpack.c.l.s4 1983009808
      %v4742 = vunpack.c.0.s8 %v4741
      %v4743 = vperm.slane %v4737, %v4742
      %v4745 = vunpack.c.l.s4 1983009808
      %v4746 = vunpack.c.0.s8 %v4745
      %v4747 = vperm.slane %v4739, %v4746
      %v4748 = vrot.slane %v4522, 4
      %v4749 = vsel %vm2395, %v4748, %v4518
      %v4750 = vrot.slane %v4518, 4
      %v4751 = vsel %vm2395, %v4522, %v4750
      %v4753 = vunpack.c.l.s4 1983009808
      %v4754 = vunpack.c.0.s8 %v4753
      %v4755 = vperm.slane %v4749, %v4754
      %v4757 = vunpack.c.l.s4 1983009808
      %v4758 = vunpack.c.0.s8 %v4757
      %v4759 = vperm.slane %v4751, %v4758
      %v4760 = vrot.slane %v4731, 4
      %v4761 = vsel %vm2395, %v4760, %v4719
      %v4762 = vrot.slane %v4719, 4
      %v4763 = vsel %vm2395, %v4731, %v4762
      %v4765 = vunpack.c.l.s4 1934713408
      %v4766 = vunpack.c.0.s8 %v4765
      %v4767 = vperm.slane %v4761, %v4766
      %v4769 = vunpack.c.l.s4 1934713408
      %v4770 = vunpack.c.0.s8 %v4769
      %v4771 = vperm.slane %v4763, %v4770
      %v4772 = vrot.slane %v4735, 4
      %v4773 = vsel %vm2395, %v4772, %v4723
      %v4774 = vrot.slane %v4723, 4
      %v4775 = vsel %vm2395, %v4735, %v4774
      %v4777 = vunpack.c.l.s4 1934713408
      %v4778 = vunpack.c.0.s8 %v4777
      %v4779 = vperm.slane %v4773, %v4778
      %v4781 = vunpack.c.l.s4 1934713408
      %v4782 = vunpack.c.0.s8 %v4781
      %v4783 = vperm.slane %v4775, %v4782
      %v4784 = vrot.slane %v4755, 4
      %v4785 = vsel %vm2395, %v4784, %v4743
      %v4786 = vrot.slane %v4743, 4
      %v4787 = vsel %vm2395, %v4755, %v4786
      %v4789 = vunpack.c.l.s4 1934713408
      %v4790 = vunpack.c.0.s8 %v4789
      %v4791 = vperm.slane %v4785, %v4790
      %v4793 = vunpack.c.l.s4 1934713408
      %v4794 = vunpack.c.0.s8 %v4793
      %v4795 = vperm.slane %v4787, %v4794
      %v4796 = vrot.slane %v4759, 4
      %v4797 = vsel %vm2395, %v4796, %v4747
      %v4798 = vrot.slane %v4747, 4
      %v4799 = vsel %vm2395, %v4759, %v4798
      %v4801 = vunpack.c.l.s4 1934713408
      %v4802 = vunpack.c.0.s8 %v4801
      %v4803 = vperm.slane %v4797, %v4802
      %v4805 = vunpack.c.l.s4 1934713408
      %v4806 = vunpack.c.0.s8 %v4805
      %v4807 = vperm.slane %v4799, %v4806
      %v4808 = vrot.slane %v4791, 4
      %v4809 = vsel %vm2395, %v4808, %v4767
      %v4810 = vrot.slane %v4767, 4
      %v4811 = vsel %vm2395, %v4791, %v4810
      %v4812 = vrot.slane %v4795, 4
      %v4813 = vsel %vm2395, %v4812, %v4771
      %v4814 = vrot.slane %v4771, 4
      %v4815 = vsel %vm2395, %v4795, %v4814
      %v4816 = vrot.slane %v4803, 4
      %v4817 = vsel %vm2395, %v4816, %v4779
      %v4818 = vrot.slane %v4779, 4
      %v4819 = vsel %vm2395, %v4803, %v4818
      %v4820 = vrot.slane %v4807, 4
      %v4821 = vsel %vm2395, %v4820, %v4783
      %v4822 = vrot.slane %v4783, 4
      %v4823 = vsel %vm2395, %v4807, %v4822
      %v4824 = vrot.slane %v4528, 4
      %v4825 = vsel %vm2395, %v4824, %v4524
      %v4826 = vrot.slane %v4524, 4
      %v4827 = vsel %vm2395, %v4528, %v4826
      %v4829 = vunpack.c.l.s4 1983009808
      %v4830 = vunpack.c.0.s8 %v4829
      %v4831 = vperm.slane %v4825, %v4830
      %v4833 = vunpack.c.l.s4 1983009808
      %v4834 = vunpack.c.0.s8 %v4833
      %v4835 = vperm.slane %v4827, %v4834
      %v4836 = vrot.slane %v4530, 4
      %v4837 = vsel %vm2395, %v4836, %v4526
      %v4838 = vrot.slane %v4526, 4
      %v4839 = vsel %vm2395, %v4530, %v4838
      %v4841 = vunpack.c.l.s4 1983009808
      %v4842 = vunpack.c.0.s8 %v4841
      %v4843 = vperm.slane %v4837, %v4842
      %v4845 = vunpack.c.l.s4 1983009808
      %v4846 = vunpack.c.0.s8 %v4845
      %v4847 = vperm.slane %v4839, %v4846
      %v4848 = vrot.slane %v4536, 4
      %v4849 = vsel %vm2395, %v4848, %v4532
      %v4850 = vrot.slane %v4532, 4
      %v4851 = vsel %vm2395, %v4536, %v4850
      %v4853 = vunpack.c.l.s4 1983009808
      %v4854 = vunpack.c.0.s8 %v4853
      %v4855 = vperm.slane %v4849, %v4854
      %v4857 = vunpack.c.l.s4 1983009808
      %v4858 = vunpack.c.0.s8 %v4857
      %v4859 = vperm.slane %v4851, %v4858
      %v4860 = vrot.slane %v4538, 4
      %v4861 = vsel %vm2395, %v4860, %v4534
      %v4862 = vrot.slane %v4534, 4
      %v4863 = vsel %vm2395, %v4538, %v4862
      %v4865 = vunpack.c.l.s4 1983009808
      %v4866 = vunpack.c.0.s8 %v4865
      %v4867 = vperm.slane %v4861, %v4866
      %v4869 = vunpack.c.l.s4 1983009808
      %v4870 = vunpack.c.0.s8 %v4869
      %v4871 = vperm.slane %v4863, %v4870
      %v4872 = vrot.slane %v4843, 4
      %v4873 = vsel %vm2395, %v4872, %v4831
      %v4874 = vrot.slane %v4831, 4
      %v4875 = vsel %vm2395, %v4843, %v4874
      %v4877 = vunpack.c.l.s4 1934713408
      %v4878 = vunpack.c.0.s8 %v4877
      %v4879 = vperm.slane %v4873, %v4878
      %v4881 = vunpack.c.l.s4 1934713408
      %v4882 = vunpack.c.0.s8 %v4881
      %v4883 = vperm.slane %v4875, %v4882
      %v4884 = vrot.slane %v4847, 4
      %v4885 = vsel %vm2395, %v4884, %v4835
      %v4886 = vrot.slane %v4835, 4
      %v4887 = vsel %vm2395, %v4847, %v4886
      %v4889 = vunpack.c.l.s4 1934713408
      %v4890 = vunpack.c.0.s8 %v4889
      %v4891 = vperm.slane %v4885, %v4890
      %v4893 = vunpack.c.l.s4 1934713408
      %v4894 = vunpack.c.0.s8 %v4893
      %v4895 = vperm.slane %v4887, %v4894
      %v4896 = vrot.slane %v4867, 4
      %v4897 = vsel %vm2395, %v4896, %v4855
      %v4898 = vrot.slane %v4855, 4
      %v4899 = vsel %vm2395, %v4867, %v4898
      %v4901 = vunpack.c.l.s4 1934713408
      %v4902 = vunpack.c.0.s8 %v4901
      %v4903 = vperm.slane %v4897, %v4902
      %v4905 = vunpack.c.l.s4 1934713408
      %v4906 = vunpack.c.0.s8 %v4905
      %v4907 = vperm.slane %v4899, %v4906
      %v4908 = vrot.slane %v4871, 4
      %v4909 = vsel %vm2395, %v4908, %v4859
      %v4910 = vrot.slane %v4859, 4
      %v4911 = vsel %vm2395, %v4871, %v4910
      %v4913 = vunpack.c.l.s4 1934713408
      %v4914 = vunpack.c.0.s8 %v4913
      %v4915 = vperm.slane %v4909, %v4914
      %v4917 = vunpack.c.l.s4 1934713408
      %v4918 = vunpack.c.0.s8 %v4917
      %v4919 = vperm.slane %v4911, %v4918
      %v4920 = vrot.slane %v4903, 4
      %v4921 = vsel %vm2395, %v4920, %v4879
      %v4922 = vrot.slane %v4879, 4
      %v4923 = vsel %vm2395, %v4903, %v4922
      %v4924 = vrot.slane %v4907, 4
      %v4925 = vsel %vm2395, %v4924, %v4883
      %v4926 = vrot.slane %v4883, 4
      %v4927 = vsel %vm2395, %v4907, %v4926
      %v4928 = vrot.slane %v4915, 4
      %v4929 = vsel %vm2395, %v4928, %v4891
      %v4930 = vrot.slane %v4891, 4
      %v4931 = vsel %vm2395, %v4915, %v4930
      %v4932 = vrot.slane %v4919, 4
      %v4933 = vsel %vm2395, %v4932, %v4895
      %v4934 = vrot.slane %v4895, 4
      %v4935 = vsel %vm2395, %v4919, %v4934
      %v4936 = vrot.slane %v4513, 4
      %v4937 = vsel %vm2395, %v4936, %v4509
      %v4938 = vrot.slane %v4509, 4
      %v4939 = vsel %vm2395, %v4513, %v4938
      %v4941 = vunpack.c.l.s4 1983009808
      %v4942 = vunpack.c.0.s8 %v4941
      %v4943 = vperm.slane %v4937, %v4942
      %v4945 = vunpack.c.l.s4 1983009808
      %v4946 = vunpack.c.0.s8 %v4945
      %v4947 = vperm.slane %v4939, %v4946
      %v4948 = vrot.slane %v4515, 4
      %v4949 = vsel %vm2395, %v4948, %v4511
      %v4950 = vrot.slane %v4511, 4
      %v4951 = vsel %vm2395, %v4515, %v4950
      %v4953 = vunpack.c.l.s4 1983009808
      %v4954 = vunpack.c.0.s8 %v4953
      %v4955 = vperm.slane %v4949, %v4954
      %v4957 = vunpack.c.l.s4 1983009808
      %v4958 = vunpack.c.0.s8 %v4957
      %v4959 = vperm.slane %v4951, %v4958
      %v4960 = vrot.slane %v4521, 4
      %v4961 = vsel %vm2395, %v4960, %v4517
      %v4962 = vrot.slane %v4517, 4
      %v4963 = vsel %vm2395, %v4521, %v4962
      %v4965 = vunpack.c.l.s4 1983009808
      %v4966 = vunpack.c.0.s8 %v4965
      %v4967 = vperm.slane %v4961, %v4966
      %v4969 = vunpack.c.l.s4 1983009808
      %v4970 = vunpack.c.0.s8 %v4969
      %v4971 = vperm.slane %v4963, %v4970
      %v4972 = vrot.slane %v4523, 4
      %v4973 = vsel %vm2395, %v4972, %v4519
      %v4974 = vrot.slane %v4519, 4
      %v4975 = vsel %vm2395, %v4523, %v4974
      %v4977 = vunpack.c.l.s4 1983009808
      %v4978 = vunpack.c.0.s8 %v4977
      %v4979 = vperm.slane %v4973, %v4978
      %v4981 = vunpack.c.l.s4 1983009808
      %v4982 = vunpack.c.0.s8 %v4981
      %v4983 = vperm.slane %v4975, %v4982
      %v4984 = vrot.slane %v4955, 4
      %v4985 = vsel %vm2395, %v4984, %v4943
      %v4986 = vrot.slane %v4943, 4
      %v4987 = vsel %vm2395, %v4955, %v4986
      %v4989 = vunpack.c.l.s4 1934713408
      %v4990 = vunpack.c.0.s8 %v4989
      %v4991 = vperm.slane %v4985, %v4990
      %v4993 = vunpack.c.l.s4 1934713408
      %v4994 = vunpack.c.0.s8 %v4993
      %v4995 = vperm.slane %v4987, %v4994
      %v4996 = vrot.slane %v4959, 4
      %v4997 = vsel %vm2395, %v4996, %v4947
      %v4998 = vrot.slane %v4947, 4
      %v4999 = vsel %vm2395, %v4959, %v4998
      %v5001 = vunpack.c.l.s4 1934713408
      %v5002 = vunpack.c.0.s8 %v5001
      %v5003 = vperm.slane %v4997, %v5002
      %v5005 = vunpack.c.l.s4 1934713408
      %v5006 = vunpack.c.0.s8 %v5005
      %v5007 = vperm.slane %v4999, %v5006
      %v5008 = vrot.slane %v4979, 4
      %v5009 = vsel %vm2395, %v5008, %v4967
      %v5010 = vrot.slane %v4967, 4
      %v5011 = vsel %vm2395, %v4979, %v5010
      %v5013 = vunpack.c.l.s4 1934713408
      %v5014 = vunpack.c.0.s8 %v5013
      %v5015 = vperm.slane %v5009, %v5014
      %v5017 = vunpack.c.l.s4 1934713408
      %v5018 = vunpack.c.0.s8 %v5017
      %v5019 = vperm.slane %v5011, %v5018
      %v5020 = vrot.slane %v4983, 4
      %v5021 = vsel %vm2395, %v5020, %v4971
      %v5022 = vrot.slane %v4971, 4
      %v5023 = vsel %vm2395, %v4983, %v5022
      %v5025 = vunpack.c.l.s4 1934713408
      %v5026 = vunpack.c.0.s8 %v5025
      %v5027 = vperm.slane %v5021, %v5026
      %v5029 = vunpack.c.l.s4 1934713408
      %v5030 = vunpack.c.0.s8 %v5029
      %v5031 = vperm.slane %v5023, %v5030
      %v5032 = vrot.slane %v5015, 4
      %v5033 = vsel %vm2395, %v5032, %v4991
      %v5034 = vrot.slane %v4991, 4
      %v5035 = vsel %vm2395, %v5015, %v5034
      %v5036 = vrot.slane %v5019, 4
      %v5037 = vsel %vm2395, %v5036, %v4995
      %v5038 = vrot.slane %v4995, 4
      %v5039 = vsel %vm2395, %v5019, %v5038
      %v5040 = vrot.slane %v5027, 4
      %v5041 = vsel %vm2395, %v5040, %v5003
      %v5042 = vrot.slane %v5003, 4
      %v5043 = vsel %vm2395, %v5027, %v5042
      %v5044 = vrot.slane %v5031, 4
      %v5045 = vsel %vm2395, %v5044, %v5007
      %v5046 = vrot.slane %v5007, 4
      %v5047 = vsel %vm2395, %v5031, %v5046
      %v5048 = vrot.slane %v4529, 4
      %v5049 = vsel %vm2395, %v5048, %v4525
      %v5050 = vrot.slane %v4525, 4
      %v5051 = vsel %vm2395, %v4529, %v5050
      %v5053 = vunpack.c.l.s4 1983009808
      %v5054 = vunpack.c.0.s8 %v5053
      %v5055 = vperm.slane %v5049, %v5054
      %v5057 = vunpack.c.l.s4 1983009808
      %v5058 = vunpack.c.0.s8 %v5057
      %v5059 = vperm.slane %v5051, %v5058
      %v5060 = vrot.slane %v4531, 4
      %v5061 = vsel %vm2395, %v5060, %v4527
      %v5062 = vrot.slane %v4527, 4
      %v5063 = vsel %vm2395, %v4531, %v5062
      %v5065 = vunpack.c.l.s4 1983009808
      %v5066 = vunpack.c.0.s8 %v5065
      %v5067 = vperm.slane %v5061, %v5066
      %v5069 = vunpack.c.l.s4 1983009808
      %v5070 = vunpack.c.0.s8 %v5069
      %v5071 = vperm.slane %v5063, %v5070
      %v5072 = vrot.slane %v4537, 4
      %v5073 = vsel %vm2395, %v5072, %v4533
      %v5074 = vrot.slane %v4533, 4
      %v5075 = vsel %vm2395, %v4537, %v5074
      %v5077 = vunpack.c.l.s4 1983009808
      %v5078 = vunpack.c.0.s8 %v5077
      %v5079 = vperm.slane %v5073, %v5078
      %v5081 = vunpack.c.l.s4 1983009808
      %v5082 = vunpack.c.0.s8 %v5081
      %v5083 = vperm.slane %v5075, %v5082
      %v5084 = vrot.slane %v4539, 4
      %v5085 = vsel %vm2395, %v5084, %v4535
      %v5086 = vrot.slane %v4535, 4
      %v5087 = vsel %vm2395, %v4539, %v5086
      %v5089 = vunpack.c.l.s4 1983009808
      %v5090 = vunpack.c.0.s8 %v5089
      %v5091 = vperm.slane %v5085, %v5090
      %v5093 = vunpack.c.l.s4 1983009808
      %v5094 = vunpack.c.0.s8 %v5093
      %v5095 = vperm.slane %v5087, %v5094
      %v5096 = vrot.slane %v5067, 4
      %v5097 = vsel %vm2395, %v5096, %v5055
      %v5098 = vrot.slane %v5055, 4
      %v5099 = vsel %vm2395, %v5067, %v5098
      %v5101 = vunpack.c.l.s4 1934713408
      %v5102 = vunpack.c.0.s8 %v5101
      %v5103 = vperm.slane %v5097, %v5102
      %v5105 = vunpack.c.l.s4 1934713408
      %v5106 = vunpack.c.0.s8 %v5105
      %v5107 = vperm.slane %v5099, %v5106
      %v5108 = vrot.slane %v5071, 4
      %v5109 = vsel %vm2395, %v5108, %v5059
      %v5110 = vrot.slane %v5059, 4
      %v5111 = vsel %vm2395, %v5071, %v5110
      %v5113 = vunpack.c.l.s4 1934713408
      %v5114 = vunpack.c.0.s8 %v5113
      %v5115 = vperm.slane %v5109, %v5114
      %v5117 = vunpack.c.l.s4 1934713408
      %v5118 = vunpack.c.0.s8 %v5117
      %v5119 = vperm.slane %v5111, %v5118
      %v5120 = vrot.slane %v5091, 4
      %v5121 = vsel %vm2395, %v5120, %v5079
      %v5122 = vrot.slane %v5079, 4
      %v5123 = vsel %vm2395, %v5091, %v5122
      %v5125 = vunpack.c.l.s4 1934713408
      %v5126 = vunpack.c.0.s8 %v5125
      %v5127 = vperm.slane %v5121, %v5126
      %v5129 = vunpack.c.l.s4 1934713408
      %v5130 = vunpack.c.0.s8 %v5129
      %v5131 = vperm.slane %v5123, %v5130
      %v5132 = vrot.slane %v5095, 4
      %v5133 = vsel %vm2395, %v5132, %v5083
      %v5134 = vrot.slane %v5083, 4
      %v5135 = vsel %vm2395, %v5095, %v5134
      %v5137 = vunpack.c.l.s4 1934713408
      %v5138 = vunpack.c.0.s8 %v5137
      %v5139 = vperm.slane %v5133, %v5138
      %v5141 = vunpack.c.l.s4 1934713408
      %v5142 = vunpack.c.0.s8 %v5141
      %v5143 = vperm.slane %v5135, %v5142
      %v5144 = vrot.slane %v5127, 4
      %v5145 = vsel %vm2395, %v5144, %v5103
      %v5146 = vrot.slane %v5103, 4
      %v5147 = vsel %vm2395, %v5127, %v5146
      %v5148 = vrot.slane %v5131, 4
      %v5149 = vsel %vm2395, %v5148, %v5107
      %v5150 = vrot.slane %v5107, 4
      %v5151 = vsel %vm2395, %v5131, %v5150
      %v5152 = vrot.slane %v5139, 4
      %v5153 = vsel %vm2395, %v5152, %v5115
      %v5154 = vrot.slane %v5115, 4
      %v5155 = vsel %vm2395, %v5139, %v5154
      %v5156 = vrot.slane %v5143, 4
      %v5157 = vsel %vm2395, %v5156, %v5119
      %v5158 = vrot.slane %v5119, 4
      %v5159 = vsel %vm2395, %v5143, %v5158
      %5160 = vst.msk [vmem:[%s326] sm:$0xff] %vm618, %v4809
      %5161 = vst.msk [vmem:[%s326 + $0x8] sm:$0xff] %vm618, %v4921
      %5162 = vst.msk [vmem:[%s326 + $0x10] sm:$0xff] %vm618, %v4811
      %5163 = vst.msk [vmem:[%s326 + $0x18] sm:$0xff] %vm618, %v4923
      %5164 = vst.msk [vmem:[%s326 + $0x20] sm:$0xff] %vm618, %v4813
      %5165 = vst.msk [vmem:[%s326 + $0x28] sm:$0xff] %vm618, %v4925
      %5166 = vst.msk [vmem:[%s326 + $0x30] sm:$0xff] %vm618, %v4815
      %5167 = vst.msk [vmem:[%s326 + $0x38] sm:$0xff] %vm618, %v4927
      %5168 = vst.msk [vmem:[%s326 + $0x40] sm:$0xff] %vm618, %v4817
      %5169 = vst.msk [vmem:[%s326 + $0x48] sm:$0xff] %vm618, %v4929
      %5170 = vst.msk [vmem:[%s326 + $0x50] sm:$0xff] %vm618, %v4819
      %5171 = vst.msk [vmem:[%s326 + $0x58] sm:$0xff] %vm618, %v4931
      %5172 = vst.msk [vmem:[%s326 + $0x60] sm:$0xff] %vm618, %v4821
      %5173 = vst.msk [vmem:[%s326 + $0x68] sm:$0xff] %vm618, %v4933
      %5174 = vst.msk [vmem:[%s326 + $0x70] sm:$0xff] %vm618, %v4823
      %5175 = vst.msk [vmem:[%s326 + $0x78] sm:$0xff] %vm618, %v4935
      %5176 = vst.msk [vmem:[%s326 + $0x80] sm:$0xff] %vm618, %v5033
      %5177 = vst.msk [vmem:[%s326 + $0x88] sm:$0xff] %vm618, %v5145
      %5178 = vst.msk [vmem:[%s326 + $0x90] sm:$0xff] %vm618, %v5035
      %5179 = vst.msk [vmem:[%s326 + $0x98] sm:$0xff] %vm618, %v5147
      %5180 = vst.msk [vmem:[%s326 + $0xa0] sm:$0xff] %vm618, %v5037
      %5181 = vst.msk [vmem:[%s326 + $0xa8] sm:$0xff] %vm618, %v5149
      %5182 = vst.msk [vmem:[%s326 + $0xb0] sm:$0xff] %vm618, %v5039
      %5183 = vst.msk [vmem:[%s326 + $0xb8] sm:$0xff] %vm618, %v5151
      %5184 = vst.msk [vmem:[%s326 + $0xc0] sm:$0xff] %vm618, %v5041
      %5185 = vst.msk [vmem:[%s326 + $0xc8] sm:$0xff] %vm618, %v5153
      %5186 = vst.msk [vmem:[%s326 + $0xd0] sm:$0xff] %vm618, %v5043
      %5187 = vst.msk [vmem:[%s326 + $0xd8] sm:$0xff] %vm618, %v5155
      %5188 = vst.msk [vmem:[%s326 + $0xe0] sm:$0xff] %vm618, %v5045
      %5189 = vst.msk [vmem:[%s326 + $0xe8] sm:$0xff] %vm618, %v5157
      %5190 = vst.msk [vmem:[%s326 + $0xf0] sm:$0xff] %vm618, %v5047
      %5191 = vst.msk [vmem:[%s326 + $0xf8] sm:$0xff] %vm618, %v5159
      %p5192 = scmp.lt.s32.totalorder %s20, 1
      %s5193 = scalar_select %p5192, %s20, 1
      %s5194 = smul.addr %s5193, 32
      %s5195 = smul.addr %s5194, 8
      %s5196 = scalar_lea.vmem %s4, %s5195
      %p5197 = scmp.lt.s32.totalorder %s20, 1
      %s5198 = scalar_select %p5197, %s20, 1
      %s5199 = scalar_lea.vmem %s5, %s5198
      %p5200 = scmp.lt.s32.totalorder %s20, 1
      %s5201 = scalar_select %p5200, %s20, 1
      %s5202 = scalar_lea.vmem %s6, %s5201
      %p5203 = scmp.lt.s32.totalorder %s20, 1
      %s5204 = scalar_select %p5203, %s20, 1
      %s5205 = scalar_lea.vmem %s7, %s5204
      %p5206 = scmp.lt.s32.totalorder %s20, 1
      %s5207 = scalar_select %p5206, %s20, 1
      %s5208 = scalar_lea.vmem %s8, %s5207
      // Predicated region
      $region37: #{incept_b_forward.2} parent=35 // pred_check
        %p5209 = pneg %p127
      $region38: #{incept_b_forward.2} parent=35 // pred_check_branch
        %5211 = sbr.rel (%p5209) target = $region40
      $region39: #{incept_b_forward.2} parent=35 // pred_region
        _
      $region40: #{incept_b_forward.2} parent=35 // pred_fallthru
        _
      // Predicated region
      $region41: #{incept_b_forward.2} parent=35 // pred_check
        %p5212 = pneg %p153
      $region42: #{incept_b_forward.2} parent=35 // pred_check_branch
        %5214 = sbr.rel (%p5212) target = $region44
      $region43: #{incept_b_forward.2} parent=35 // pred_region
        _
      $region44: #{incept_b_forward.2} parent=35 // pred_fallthru
        _
      // Predicated region
      $region45: #{incept_b_forward.2} parent=35 // pred_check
        %p5215 = pneg %p179
      $region46: #{incept_b_forward.2} parent=35 // pred_check_branch
        %5217 = sbr.rel (%p5215) target = $region48
      $region47: #{incept_b_forward.2} parent=35 // pred_region
        _
      $region48: #{incept_b_forward.2} parent=35 // pred_fallthru
        _
      // Predicated region
      $region49: #{incept_b_forward.2} parent=35 // pred_check
        %p5218 = pneg %p205
      $region50: #{incept_b_forward.2} parent=35 // pred_check_branch
        %5220 = sbr.rel (%p5218) target = $region52
      $region51: #{incept_b_forward.2} parent=35 // pred_region
        _
      $region52: #{incept_b_forward.2} parent=35 // pred_fallthru
        _
      // Predicated region
      $region53: #{incept_b_forward.2} parent=35 // pred_check
        %p5221 = pneg %p231
      $region54: #{incept_b_forward.2} parent=35 // pred_check_branch
        %5223 = sbr.rel (%p5221) target = $region56
      $region55: #{incept_b_forward.2} parent=35 // pred_region
        _
      $region56: #{incept_b_forward.2} parent=35 // pred_fallthru
        _
    $region36: #{incept_b_forward.2} parent=5 // pred_fallthru
      _
    %p5224 = scmp.le.s32.totalorder 2, %s15
    // Predicated region
    $region57: #{incept_b_forward.2} parent=5 // pred_check
      %p5225 = pneg %p5224
    $region58: #{incept_b_forward.2} parent=5 // pred_check_branch
      %5227 = sbr.rel (%p5225) target = $region60
    $region59: #{incept_b_forward.2} parent=5 // pred_region
      %s5228 = ssub.s32 %s15, 2
      // Predicated region
      $region61: #{incept_b_forward.2} parent=59 // pred_check
        %p5229 = pneg %p133
      $region62: #{incept_b_forward.2} parent=59 // pred_check_branch
        %5231 = sbr.rel (%p5229) target = $region64
      $region63: #{incept_b_forward.2} parent=59 // pred_region
        %p5232 = scmp.lt.s32.totalorder %s21, 1
        %s5233 = scalar_select %p5232, %s21, 1
        %s5234 = smul.addr %s5233, 32
        %s5235 = smul.addr %s5234, 8
        %s5236 = scalar_lea.vmem %s4, %s5235
      $region64: #{incept_b_forward.2} parent=59 // pred_fallthru
        _
      // Predicated region
      $region65: #{incept_b_forward.2} parent=59 // pred_check
        %p5237 = pneg %p159
      $region66: #{incept_b_forward.2} parent=59 // pred_check_branch
        %5239 = sbr.rel (%p5237) target = $region68
      $region67: #{incept_b_forward.2} parent=59 // pred_region
        %p5240 = scmp.lt.s32.totalorder %s21, 1
        %s5241 = scalar_select %p5240, %s21, 1
        %s5242 = scalar_lea.vmem %s5, %s5241
      $region68: #{incept_b_forward.2} parent=59 // pred_fallthru
        _
      // Predicated region
      $region69: #{incept_b_forward.2} parent=59 // pred_check
        %p5243 = pneg %p185
      $region70: #{incept_b_forward.2} parent=59 // pred_check_branch
        %5245 = sbr.rel (%p5243) target = $region72
      $region71: #{incept_b_forward.2} parent=59 // pred_region
        %p5246 = scmp.lt.s32.totalorder %s21, 1
        %s5247 = scalar_select %p5246, %s21, 1
        %s5248 = scalar_lea.vmem %s6, %s5247
      $region72: #{incept_b_forward.2} parent=59 // pred_fallthru
        _
      // Predicated region
      $region73: #{incept_b_forward.2} parent=59 // pred_check
        %p5249 = pneg %p211
      $region74: #{incept_b_forward.2} parent=59 // pred_check_branch
        %5251 = sbr.rel (%p5249) target = $region76
      $region75: #{incept_b_forward.2} parent=59 // pred_region
        %p5252 = scmp.lt.s32.totalorder %s21, 1
        %s5253 = scalar_select %p5252, %s21, 1
        %s5254 = scalar_lea.vmem %s7, %s5253
      $region76: #{incept_b_forward.2} parent=59 // pred_fallthru
        _
      // Predicated region
      $region77: #{incept_b_forward.2} parent=59 // pred_check
        %p5255 = pneg %p237
      $region78: #{incept_b_forward.2} parent=59 // pred_check_branch
        %5257 = sbr.rel (%p5255) target = $region80
      $region79: #{incept_b_forward.2} parent=59 // pred_region
        %p5258 = scmp.lt.s32.totalorder %s21, 1
        %s5259 = scalar_select %p5258, %s21, 1
        %s5260 = scalar_lea.vmem %s8, %s5259
      $region80: #{incept_b_forward.2} parent=59 // pred_fallthru
        _
    $region60: #{incept_b_forward.2} parent=5 // pred_fallthru
      _
  $region6: #{incept_b_forward.2} parent=0 // loop_footer
    %s19 = sadd.s32 1, %s15
  $region7: #{incept_b_forward.2} parent=0 // loop_footer_branch
    %14 = sbr.rel target = $region3
  $region8: #{incept_b_forward.2} parent=0 // loop_exit
    _

</llo_original>
